<compile_context>
chip_gen: v7x
topology: tpu7x:2x2x1
jax: 0.10.0
libtpu: 0.0.40
codegen_flags: <defaults>
</compile_context>

<pallas_src>
import math
import jax
import jax.numpy as jnp
from jax.experimental import pallas as pl
from jax.experimental.pallas import tpu as pltpu

CFG = dict(
    image_size=16,
    patch_size=4,
    num_channels=4,
    hidden_size=32,
    num_attention_heads=4,
    intermediate_size=64,
    num_hidden_layers=2,
    num_classes=8,
    qkv_bias=True,
    initializer_range=0.02,
    hidden_dropout_prob=0.0,
    attention_probs_dropout_prob=0.0,
    use_faster_attention=True,
)


# ---------------------------------------------------------------------------
# in-kernel helpers (traced inside the Pallas kernel)
# ---------------------------------------------------------------------------
def _layernorm(x, w, b, eps=1e-5):
    mu = jnp.mean(x, axis=-1, keepdims=True)
    var = jnp.mean(jnp.square(x - mu), axis=-1, keepdims=True)
    return (x - mu) * jax.lax.rsqrt(var + eps) * w + b


def _gelu_new(x):
    # NewGELUActivation: 0.5*x*(1+tanh(sqrt(2/pi)*(x+0.044715*x^3)))
    c = math.sqrt(2.0 / math.pi)
    return 0.5 * x * (1.0 + jnp.tanh(c * (x + 0.044715 * x * x * x)))


def _mxu_dot(a, b):
    # bf16 MXU inputs, f32 accumulation.
    return jnp.dot(a.astype(jnp.bfloat16), b.astype(jnp.bfloat16),
                   preferred_element_type=jnp.float32)


def _mxu_bdot(a, b, dims):
    # head-batched bf16 dot_general, f32 accumulation.
    return jax.lax.dot_general(a.astype(jnp.bfloat16), b.astype(jnp.bfloat16),
                               dims, preferred_element_type=jnp.float32)


# ---------------------------------------------------------------------------
# the single fused kernel (embed + L blocks + classifier)
# ---------------------------------------------------------------------------
def make_fused_kernel(cfg):
    H = cfg["hidden_size"]
    NH = cfg["num_attention_heads"]
    HD = H // NH
    L = cfg["num_hidden_layers"]
    scale = 1.0 / math.sqrt(HD)

    def kernel(patch_ref, pw_ref, pb_ref, cls_ref, pos_ref,
               ln1w_ref, ln1b_ref, qkvw_ref, qkvb_ref, projw_ref, projb_ref,
               ln2w_ref, ln2b_ref, w1_ref, b1_ref, w2_ref, b2_ref,
               cw_ref, cb_ref, logits_ref):
        # ---------------- embeddings ----------------
        # patch_ref: (1, N, C*P*P)  -> projection == Conv2d(k=stride=P)
        # pos[1:] is folded into the per-patch bias path (pos_ref), pos[0]
        # into the cls row (cls_ref) on the host.
        proj = _mxu_dot(patch_ref[0], pw_ref[...]) + pb_ref[...] + pos_ref[...]
        # full (S, H) tile built in registers: [cls+pos0 ; proj+pos1:]
        x = jnp.concatenate([cls_ref[...], proj], axis=0)              # (S, H)

        # ---------------- transformer blocks (static unrolled) ----------------
        for l in range(L):
            # --- pre-LN + fused QKV projection (FasterMultiHeadAttention) ---
            h = _layernorm(x, ln1w_ref[l], ln1b_ref[l])
            qkv = _mxu_dot(h, qkvw_ref[l]) + qkvb_ref[l]               # (S, 3H) f32
            qkv16 = qkv.astype(jnp.bfloat16)

            # head-batched q / k / v: (NH, S, HD)
            qh = jnp.stack([qkv16[:, hh * HD:(hh + 1) * HD]
                            for hh in range(NH)], axis=0)
            kh = jnp.stack([qkv16[:, H + hh * HD:H + (hh + 1) * HD]
                            for hh in range(NH)], axis=0)
            vh = jnp.stack([qkv16[:, 2 * H + hh * HD:2 * H + (hh + 1) * HD]
                            for hh in range(NH)], axis=0)

            # batched QK^T over the head axis: (NH, S, S)
            scores = _mxu_bdot(qh, kh, (((2,), (2,)), ((0,), (0,)))) * scale
            scores = scores - jnp.max(scores, axis=-1, keepdims=True)
            e = jnp.exp(scores)
            probs = e * pl.reciprocal(jnp.sum(e, axis=-1, keepdims=True),
                                      approx=True)

            # batched P@V: (NH, S, HD)
            oh = _mxu_bdot(probs, vh, (((2,), (1,)), ((0,), (0,))))

            # re-flatten heads -> one full-width output projection
            o_flat = jnp.concatenate([oh[hh] for hh in range(NH)], axis=1)  # (S, H)
            attn = _mxu_dot(o_flat, projw_ref[l]) + projb_ref[l]

            # --- residual 1 ---
            x = x + attn

            # --- pre-LN + MLP (dense -> new-GELU -> dense) ---
            h2 = _layernorm(x, ln2w_ref[l], ln2b_ref[l])
            m = _mxu_dot(h2, w1_ref[l]) + b1_ref[l]
            m = _gelu_new(m)
            m = _mxu_dot(m, w2_ref[l]) + b2_ref[l]

            # --- residual 2 ---
            x = x + m

        # ---------------- classifier head (CLS token) ----------------
        cls_x = x[0:1, :]                                              # (1, H)
        # cw/cb are lane-padded to a 128 multiple -> unmasked full-lane store.
        logits_ref[0] = _mxu_dot(cls_x, cw_ref[...]) + cb_ref[...]     # (1, NCP)

    return kernel


# ---------------------------------------------------------------------------
# pallas_call wrapper
# ---------------------------------------------------------------------------
def _const_spec(shape):
    n = len(shape)
    return pl.BlockSpec(shape, lambda b, n=n: (0,) * n)


def vit_forward(x_nchw, params, cfg):
    B, C, Himg, Wimg = x_nchw.shape
    P = cfg["patch_size"]
    H = cfg["hidden_size"]
    NC = cfg["num_classes"]
    gh, gw = Himg // P, Wimg // P
    N = gh * gw
    Cpp = C * P * P
    NCP = ((NC + 127) // 128) * 128     # lane-padded classifier width

    # patch extraction: (B,C,H,W) -> (B, num_patches, C*P*P); row-major patch
    # grid, (c, ph, pw)-ordered inside a patch (matches Conv2d weight
    # flattening followed by flatten(2).transpose(1,2)).  Pure layout op done
    # on the host side.
    patches = (x_nchw.reshape(B, C, gh, P, gw, P)
               .transpose(0, 2, 4, 1, 3, 5)
               .reshape(B, N, Cpp)).astype(jnp.float32)

    # fold positional embedding: pos[0] into cls row, pos[1:] into patch path
    cls_tok = params["cls"] + params["pos"][0:1]                 # (1, H)
    pos_patch = params["pos"][1:]                                # (N, H)

    # lane-pad classifier weight/bias to a full 128-lane output slab
    cls_w_p = jnp.zeros((H, NCP), jnp.bfloat16).at[:, :NC].set(params["cls_w"])
    cls_b_p = jnp.zeros((1, NCP), jnp.float32).at[:, :NC].set(params["cls_b"])

    operands = [
        patches,
        params["patch_w"], params["patch_b"], cls_tok, pos_patch,
        params["ln1_w"], params["ln1_b"],
        params["qkv_w"], params["qkv_b"],
        params["proj_w"], params["proj_b"],
        params["ln2_w"], params["ln2_b"],
        params["mlp1_w"], params["mlp1_b"],
        params["mlp2_w"], params["mlp2_b"],
        cls_w_p, cls_b_p,
    ]

    in_specs = [pl.BlockSpec((1, N, Cpp), lambda b: (b, 0, 0))]
    in_specs += [_const_spec(op.shape) for op in operands[1:]]

    kernel = make_fused_kernel(cfg)
    logits_padded = pl.pallas_call(
        kernel,
        out_shape=jax.ShapeDtypeStruct((B, 1, NCP), jnp.float32),
        grid=(B,),
        in_specs=in_specs,
        out_specs=pl.BlockSpec((1, 1, NCP), lambda b: (b, 0, 0)),
        compiler_params=pltpu.CompilerParams(
            dimension_semantics=("parallel",)),   # B shards across v7x's 2 TCs
    )(*operands)
    return logits_padded[:, 0, :NC]


# ---------------------------------------------------------------------------
# parameter construction (deterministic, synthetic — matches module shapes)
# ---------------------------------------------------------------------------
def init_params(cfg, key):
    std = cfg["initializer_range"]
    H = cfg["hidden_size"]
    I = cfg["intermediate_size"]
    C = cfg["num_channels"]
    P = cfg["patch_size"]
    NC = cfg["num_classes"]
    L = cfg["num_hidden_layers"]
    N = (cfg["image_size"] // P) ** 2
    S = N + 1
    Cpp = C * P * P

    def nrm(k, shape):
        return jax.random.normal(k, shape, jnp.float32) * std

    keys = iter(jax.random.split(key, 8 + 4 * L))
    params = {}
    # PatchEmbeddings.projection (Conv2d k=stride=P) == Linear (C*P*P -> H)
    params["patch_w"] = nrm(next(keys), (Cpp, H)).astype(jnp.bfloat16)
    params["patch_b"] = jnp.zeros((1, H), jnp.float32)
    # TODO(synk): trunc_normal replaced by plain normal for synthetic init.
    params["cls"] = nrm(next(keys), (1, H))
    params["pos"] = nrm(next(keys), (S, H))

    qkvw, projw, w1, w2 = [], [], [], []
    for _ in range(L):
        qkvw.append(nrm(next(keys), (H, 3 * H)))
        projw.append(nrm(next(keys), (H, H)))
        w1.append(nrm(next(keys), (H, I)))
        w2.append(nrm(next(keys), (I, H)))

    # per-layer params stacked along a leading L axis (single fused kernel)
    params["ln1_w"] = jnp.ones((L, 1, H), jnp.float32)
    params["ln1_b"] = jnp.zeros((L, 1, H), jnp.float32)
    params["qkv_w"] = jnp.stack(qkvw).astype(jnp.bfloat16)        # (L, H, 3H)
    params["qkv_b"] = jnp.zeros((L, 1, 3 * H), jnp.float32)
    params["proj_w"] = jnp.stack(projw).astype(jnp.bfloat16)      # (L, H, H)
    params["proj_b"] = jnp.zeros((L, 1, H), jnp.float32)
    params["ln2_w"] = jnp.ones((L, 1, H), jnp.float32)
    params["ln2_b"] = jnp.zeros((L, 1, H), jnp.float32)
    params["mlp1_w"] = jnp.stack(w1).astype(jnp.bfloat16)         # (L, H, I)
    params["mlp1_b"] = jnp.zeros((L, 1, I), jnp.float32)
    params["mlp2_w"] = jnp.stack(w2).astype(jnp.bfloat16)         # (L, I, H)
    params["mlp2_b"] = jnp.zeros((L, 1, H), jnp.float32)

    params["cls_w"] = nrm(next(keys), (H, NC)).astype(jnp.bfloat16)
    params["cls_b"] = jnp.zeros((1, NC), jnp.float32)
    return params


# ---------------------------------------------------------------------------
if __name__ == "__main__":
    key = jax.random.PRNGKey(0)
    k_params, k_x = jax.random.split(key)
    params = init_params(CFG, k_params)
    x = jax.random.normal(
        k_x,
        (2, CFG["num_channels"], CFG["image_size"], CFG["image_size"]),
        jnp.float32,
    )
    logits = vit_forward(x, params, CFG)
    logits = jax.block_until_ready(logits)
    assert logits.shape == (2, CFG["num_classes"])
    assert bool(jnp.all(jnp.isfinite(logits)))
    print("KERNEL_OK")
</pallas_src>

<mosaic_0001>
module attributes {stable_mosaic.version = 11 : i64} {
  func.func @kernel(%arg0: i32, %arg1: memref<1x16x64xf32, #tpu.memory_space<vmem>>, %arg2: memref<64x32xbf16, #tpu.memory_space<vmem>>, %arg3: memref<1x32xf32, #tpu.memory_space<vmem>>, %arg4: memref<1x32xf32, #tpu.memory_space<vmem>>, %arg5: memref<16x32xf32, #tpu.memory_space<vmem>>, %arg6: memref<2x1x32xf32, #tpu.memory_space<vmem>>, %arg7: memref<2x1x32xf32, #tpu.memory_space<vmem>>, %arg8: memref<2x32x96xbf16, #tpu.memory_space<vmem>>, %arg9: memref<2x1x96xf32, #tpu.memory_space<vmem>>, %arg10: memref<2x32x32xbf16, #tpu.memory_space<vmem>>, %arg11: memref<2x1x32xf32, #tpu.memory_space<vmem>>, %arg12: memref<2x1x32xf32, #tpu.memory_space<vmem>>, %arg13: memref<2x1x32xf32, #tpu.memory_space<vmem>>, %arg14: memref<2x32x64xbf16, #tpu.memory_space<vmem>>, %arg15: memref<2x1x64xf32, #tpu.memory_space<vmem>>, %arg16: memref<2x64x32xbf16, #tpu.memory_space<vmem>>, %arg17: memref<2x1x32xf32, #tpu.memory_space<vmem>>, %arg18: memref<32x128xbf16, #tpu.memory_space<vmem>>, %arg19: memref<1x128xf32, #tpu.memory_space<vmem>>, %arg20: memref<1x1x128xf32, #tpu.memory_space<vmem>>) attributes {dimension_semantics = [#tpu.dimension_semantics<parallel>], iteration_bounds = array<i64: 2>, scalar_prefetch = 0 : i64, scratch_operands = 0 : i64, tpu.core_type = #tpu.core_type<tc>, window_params = [{transform_indices = @transform_0, window_bounds = array<i64: 1, 16, 64>}, {pipeline_mode = #tpu.pipeline_mode<synchronous>, transform_indices = @transform_1, window_bounds = array<i64: 64, 32>}, {pipeline_mode = #tpu.pipeline_mode<synchronous>, transform_indices = @transform_2, window_bounds = array<i64: 1, 32>}, {pipeline_mode = #tpu.pipeline_mode<synchronous>, transform_indices = @transform_3, window_bounds = array<i64: 1, 32>}, {pipeline_mode = #tpu.pipeline_mode<synchronous>, transform_indices = @transform_4, window_bounds = array<i64: 16, 32>}, {pipeline_mode = #tpu.pipeline_mode<synchronous>, transform_indices = @transform_5, window_bounds = array<i64: 2, 1, 32>}, {pipeline_mode = #tpu.pipeline_mode<synchronous>, transform_indices = @transform_6, window_bounds = array<i64: 2, 1, 32>}, {pipeline_mode = #tpu.pipeline_mode<synchronous>, transform_indices = @transform_7, window_bounds = array<i64: 2, 32, 96>}, {pipeline_mode = #tpu.pipeline_mode<synchronous>, transform_indices = @transform_8, window_bounds = array<i64: 2, 1, 96>}, {pipeline_mode = #tpu.pipeline_mode<synchronous>, transform_indices = @transform_9, window_bounds = array<i64: 2, 32, 32>}, {pipeline_mode = #tpu.pipeline_mode<synchronous>, transform_indices = @transform_10, window_bounds = array<i64: 2, 1, 32>}, {pipeline_mode = #tpu.pipeline_mode<synchronous>, transform_indices = @transform_11, window_bounds = array<i64: 2, 1, 32>}, {pipeline_mode = #tpu.pipeline_mode<synchronous>, transform_indices = @transform_12, window_bounds = array<i64: 2, 1, 32>}, {pipeline_mode = #tpu.pipeline_mode<synchronous>, transform_indices = @transform_13, window_bounds = array<i64: 2, 32, 64>}, {pipeline_mode = #tpu.pipeline_mode<synchronous>, transform_indices = @transform_14, window_bounds = array<i64: 2, 1, 64>}, {pipeline_mode = #tpu.pipeline_mode<synchronous>, transform_indices = @transform_15, window_bounds = array<i64: 2, 64, 32>}, {pipeline_mode = #tpu.pipeline_mode<synchronous>, transform_indices = @transform_16, window_bounds = array<i64: 2, 1, 32>}, {pipeline_mode = #tpu.pipeline_mode<synchronous>, transform_indices = @transform_17, window_bounds = array<i64: 32, 128>}, {pipeline_mode = #tpu.pipeline_mode<synchronous>, transform_indices = @transform_18, window_bounds = array<i64: 1, 128>}, {transform_indices = @transform_19, window_bounds = array<i64: 1, 1, 128>}]} {
    %c0 = arith.constant 0 : index
    %c0_0 = arith.constant 0 : index
    %c0_1 = arith.constant 0 : index
    %0 = vector.load %arg1[%c0, %c0_0, %c0_1] : memref<1x16x64xf32, #tpu.memory_space<vmem>>, vector<1x16x64xf32>
    %1 = vector.shape_cast %0 : vector<1x16x64xf32> to vector<16x64xf32>
    %c0_2 = arith.constant 0 : index
    %c0_3 = arith.constant 0 : index
    %2 = vector.load %arg2[%c0_2, %c0_3] : memref<64x32xbf16, #tpu.memory_space<vmem>>, vector<64x32xbf16>
    %3 = arith.truncf %1 : vector<16x64xf32> to vector<16x64xbf16>
    %cst = arith.constant dense<0.000000e+00> : vector<16x32xf32>
    %4 = tpu.matmul %3, %2, %cst {dimension_numbers = #tpu.dot_dimension_numbers<[1], [0], [0], [1], [0, 0, 1, 1], [], []>} : vector<16x64xbf16>, vector<64x32xbf16>, vector<16x32xf32> -> vector<16x32xf32>
    %c0_4 = arith.constant 0 : index
    %c0_5 = arith.constant 0 : index
    %5 = vector.load %arg3[%c0_4, %c0_5] : memref<1x32xf32, #tpu.memory_space<vmem>>, vector<1x32xf32>
    %6 = vector.broadcast %5 : vector<1x32xf32> to vector<16x32xf32>
    %7 = arith.addf %4, %6 : vector<16x32xf32>
    %c0_6 = arith.constant 0 : index
    %c0_7 = arith.constant 0 : index
    %8 = vector.load %arg5[%c0_6, %c0_7] : memref<16x32xf32, #tpu.memory_space<vmem>>, vector<16x32xf32>
    %9 = arith.addf %7, %8 : vector<16x32xf32>
    %c0_8 = arith.constant 0 : index
    %c0_9 = arith.constant 0 : index
    %10 = vector.load %arg4[%c0_8, %c0_9] : memref<1x32xf32, #tpu.memory_space<vmem>>, vector<1x32xf32>
    %11 = tpu.concatenate %10, %9 in 0 : vector<1x32xf32>, vector<16x32xf32> -> vector<17x32xf32>
    %c0_10 = arith.constant 0 : index
    %c0_11 = arith.constant 0 : index
    %c0_12 = arith.constant 0 : index
    %12 = vector.load %arg6[%c0_10, %c0_11, %c0_12] : memref<2x1x32xf32, #tpu.memory_space<vmem>>, vector<1x1x32xf32>
    %13 = vector.shape_cast %12 : vector<1x1x32xf32> to vector<1x32xf32>
    %c0_13 = arith.constant 0 : index
    %c0_14 = arith.constant 0 : index
    %c0_15 = arith.constant 0 : index
    %14 = vector.load %arg7[%c0_13, %c0_14, %c0_15] : memref<2x1x32xf32, #tpu.memory_space<vmem>>, vector<1x1x32xf32>
    %15 = vector.shape_cast %14 : vector<1x1x32xf32> to vector<1x32xf32>
    %cst_16 = arith.constant dense<0.000000e+00> : vector<17xf32>
    %16 = vector.multi_reduction <add>, %11, %cst_16 [1] : vector<17x32xf32> to vector<17xf32>
    %17 = vector.shape_cast %16 : vector<17xf32> to vector<17x1xf32>
    %cst_17 = arith.constant 3.200000e+01 : f32
    %18 = vector.broadcast %cst_17 : f32 to vector<17x1xf32>
    %19 = arith.divf %17, %18 : vector<17x1xf32>
    %20 = vector.broadcast %19 : vector<17x1xf32> to vector<17x32xf32>
    %21 = arith.subf %11, %20 : vector<17x32xf32>
    %22 = arith.mulf %21, %21 : vector<17x32xf32>
    %cst_18 = arith.constant dense<0.000000e+00> : vector<17xf32>
    %23 = vector.multi_reduction <add>, %22, %cst_18 [1] : vector<17x32xf32> to vector<17xf32>
    %24 = vector.shape_cast %23 : vector<17xf32> to vector<17x1xf32>
    %cst_19 = arith.constant 3.200000e+01 : f32
    %25 = vector.broadcast %cst_19 : f32 to vector<17x1xf32>
    %26 = arith.divf %24, %25 : vector<17x1xf32>
    %27 = vector.broadcast %19 : vector<17x1xf32> to vector<17x32xf32>
    %28 = arith.subf %11, %27 : vector<17x32xf32>
    %cst_20 = arith.constant 9.99999974E-6 : f32
    %29 = vector.broadcast %cst_20 : f32 to vector<17x1xf32>
    %30 = arith.addf %26, %29 : vector<17x1xf32>
    %31 = math.rsqrt %30 : vector<17x1xf32>
    %32 = vector.broadcast %31 : vector<17x1xf32> to vector<17x32xf32>
    %33 = arith.mulf %28, %32 : vector<17x32xf32>
    %34 = vector.broadcast %13 : vector<1x32xf32> to vector<17x32xf32>
    %35 = arith.mulf %33, %34 : vector<17x32xf32>
    %36 = vector.broadcast %15 : vector<1x32xf32> to vector<17x32xf32>
    %37 = arith.addf %35, %36 : vector<17x32xf32>
    %c0_21 = arith.constant 0 : index
    %c0_22 = arith.constant 0 : index
    %c0_23 = arith.constant 0 : index
    %38 = vector.load %arg8[%c0_21, %c0_22, %c0_23] : memref<2x32x96xbf16, #tpu.memory_space<vmem>>, vector<1x32x96xbf16>
    %39 = vector.shape_cast %38 : vector<1x32x96xbf16> to vector<32x96xbf16>
    %40 = arith.truncf %37 : vector<17x32xf32> to vector<17x32xbf16>
    %cst_24 = arith.constant dense<0.000000e+00> : vector<17x96xf32>
    %41 = tpu.matmul %40, %39, %cst_24 {dimension_numbers = #tpu.dot_dimension_numbers<[1], [0], [0], [1], [0, 0, 1, 1], [], []>} : vector<17x32xbf16>, vector<32x96xbf16>, vector<17x96xf32> -> vector<17x96xf32>
    %c0_25 = arith.constant 0 : index
    %c0_26 = arith.constant 0 : index
    %c0_27 = arith.constant 0 : index
    %42 = vector.load %arg9[%c0_25, %c0_26, %c0_27] : memref<2x1x96xf32, #tpu.memory_space<vmem>>, vector<1x1x96xf32>
    %43 = vector.shape_cast %42 : vector<1x1x96xf32> to vector<1x96xf32>
    %44 = vector.broadcast %43 : vector<1x96xf32> to vector<17x96xf32>
    %45 = arith.addf %41, %44 : vector<17x96xf32>
    %46 = arith.truncf %45 : vector<17x96xf32> to vector<17x96xbf16>
    %47 = vector.extract_strided_slice %46 {offsets = [0, 0], sizes = [17, 8], strides = [1, 1]} : vector<17x96xbf16> to vector<17x8xbf16>
    %48 = vector.extract_strided_slice %46 {offsets = [0, 8], sizes = [17, 8], strides = [1, 1]} : vector<17x96xbf16> to vector<17x8xbf16>
    %49 = vector.extract_strided_slice %46 {offsets = [0, 16], sizes = [17, 8], strides = [1, 1]} : vector<17x96xbf16> to vector<17x8xbf16>
    %50 = vector.extract_strided_slice %46 {offsets = [0, 24], sizes = [17, 8], strides = [1, 1]} : vector<17x96xbf16> to vector<17x8xbf16>
    %51 = vector.shape_cast %47 : vector<17x8xbf16> to vector<1x17x8xbf16>
    %52 = vector.shape_cast %48 : vector<17x8xbf16> to vector<1x17x8xbf16>
    %53 = vector.shape_cast %49 : vector<17x8xbf16> to vector<1x17x8xbf16>
    %54 = vector.shape_cast %50 : vector<17x8xbf16> to vector<1x17x8xbf16>
    %55 = tpu.concatenate %51, %52, %53, %54 in 0 : vector<1x17x8xbf16>, vector<1x17x8xbf16>, vector<1x17x8xbf16>, vector<1x17x8xbf16> -> vector<4x17x8xbf16>
    %56 = vector.extract_strided_slice %46 {offsets = [0, 32], sizes = [17, 8], strides = [1, 1]} : vector<17x96xbf16> to vector<17x8xbf16>
    %57 = vector.extract_strided_slice %46 {offsets = [0, 40], sizes = [17, 8], strides = [1, 1]} : vector<17x96xbf16> to vector<17x8xbf16>
    %58 = vector.extract_strided_slice %46 {offsets = [0, 48], sizes = [17, 8], strides = [1, 1]} : vector<17x96xbf16> to vector<17x8xbf16>
    %59 = vector.extract_strided_slice %46 {offsets = [0, 56], sizes = [17, 8], strides = [1, 1]} : vector<17x96xbf16> to vector<17x8xbf16>
    %60 = vector.shape_cast %56 : vector<17x8xbf16> to vector<1x17x8xbf16>
    %61 = vector.shape_cast %57 : vector<17x8xbf16> to vector<1x17x8xbf16>
    %62 = vector.shape_cast %58 : vector<17x8xbf16> to vector<1x17x8xbf16>
    %63 = vector.shape_cast %59 : vector<17x8xbf16> to vector<1x17x8xbf16>
    %64 = tpu.concatenate %60, %61, %62, %63 in 0 : vector<1x17x8xbf16>, vector<1x17x8xbf16>, vector<1x17x8xbf16>, vector<1x17x8xbf16> -> vector<4x17x8xbf16>
    %65 = vector.extract_strided_slice %46 {offsets = [0, 64], sizes = [17, 8], strides = [1, 1]} : vector<17x96xbf16> to vector<17x8xbf16>
    %66 = vector.extract_strided_slice %46 {offsets = [0, 72], sizes = [17, 8], strides = [1, 1]} : vector<17x96xbf16> to vector<17x8xbf16>
    %67 = vector.extract_strided_slice %46 {offsets = [0, 80], sizes = [17, 8], strides = [1, 1]} : vector<17x96xbf16> to vector<17x8xbf16>
    %68 = vector.extract_strided_slice %46 {offsets = [0, 88], sizes = [17, 8], strides = [1, 1]} : vector<17x96xbf16> to vector<17x8xbf16>
    %69 = vector.shape_cast %65 : vector<17x8xbf16> to vector<1x17x8xbf16>
    %70 = vector.shape_cast %66 : vector<17x8xbf16> to vector<1x17x8xbf16>
    %71 = vector.shape_cast %67 : vector<17x8xbf16> to vector<1x17x8xbf16>
    %72 = vector.shape_cast %68 : vector<17x8xbf16> to vector<1x17x8xbf16>
    %73 = tpu.concatenate %69, %70, %71, %72 in 0 : vector<1x17x8xbf16>, vector<1x17x8xbf16>, vector<1x17x8xbf16>, vector<1x17x8xbf16> -> vector<4x17x8xbf16>
    %cst_28 = arith.constant dense<0.000000e+00> : vector<4x17x17xf32>
    %74 = tpu.matmul %55, %64, %cst_28 {dimension_numbers = #tpu.dot_dimension_numbers<[2], [2], [1], [1], [0, 0, 0, 1, 1, 1], [0], [0]>} : vector<4x17x8xbf16>, vector<4x17x8xbf16>, vector<4x17x17xf32> -> vector<4x17x17xf32>
    %cst_29 = arith.constant 0.353553385 : f32
    %75 = vector.broadcast %cst_29 : f32 to vector<4x17x17xf32>
    %76 = arith.mulf %74, %75 : vector<4x17x17xf32>
    %cst_30 = arith.constant dense<0xFF800000> : vector<4x17xf32>
    %77 = vector.multi_reduction <maximumf>, %76, %cst_30 [2] : vector<4x17x17xf32> to vector<4x17xf32>
    %78 = vector.shape_cast %77 : vector<4x17xf32> to vector<4x17x1xf32>
    %79 = vector.broadcast %78 : vector<4x17x1xf32> to vector<4x17x17xf32>
    %80 = arith.subf %76, %79 : vector<4x17x17xf32>
    %81 = math.exp %80 : vector<4x17x17xf32>
    %cst_31 = arith.constant dense<0.000000e+00> : vector<4x17xf32>
    %82 = vector.multi_reduction <add>, %81, %cst_31 [2] : vector<4x17x17xf32> to vector<4x17xf32>
    %83 = vector.shape_cast %82 : vector<4x17xf32> to vector<4x17x1xf32>
    %84 = tpu.reciprocal %83 {approx = true} : vector<4x17x1xf32> -> vector<4x17x1xf32>
    %85 = vector.broadcast %84 : vector<4x17x1xf32> to vector<4x17x17xf32>
    %86 = arith.mulf %81, %85 : vector<4x17x17xf32>
    %87 = arith.truncf %86 : vector<4x17x17xf32> to vector<4x17x17xbf16>
    %cst_32 = arith.constant dense<0.000000e+00> : vector<4x17x8xf32>
    %88 = tpu.matmul %87, %73, %cst_32 {dimension_numbers = #tpu.dot_dimension_numbers<[2], [1], [1], [2], [0, 0, 0, 1, 1, 2], [0], [0]>} : vector<4x17x17xbf16>, vector<4x17x8xbf16>, vector<4x17x8xf32> -> vector<4x17x8xf32>
    %89 = vector.extract_strided_slice %88 {offsets = [0, 0, 0], sizes = [1, 17, 8], strides = [1, 1, 1]} : vector<4x17x8xf32> to vector<1x17x8xf32>
    %90 = vector.shape_cast %89 : vector<1x17x8xf32> to vector<17x8xf32>
    %91 = vector.extract_strided_slice %88 {offsets = [1, 0, 0], sizes = [1, 17, 8], strides = [1, 1, 1]} : vector<4x17x8xf32> to vector<1x17x8xf32>
    %92 = vector.shape_cast %91 : vector<1x17x8xf32> to vector<17x8xf32>
    %93 = vector.extract_strided_slice %88 {offsets = [2, 0, 0], sizes = [1, 17, 8], strides = [1, 1, 1]} : vector<4x17x8xf32> to vector<1x17x8xf32>
    %94 = vector.shape_cast %93 : vector<1x17x8xf32> to vector<17x8xf32>
    %95 = vector.extract_strided_slice %88 {offsets = [3, 0, 0], sizes = [1, 17, 8], strides = [1, 1, 1]} : vector<4x17x8xf32> to vector<1x17x8xf32>
    %96 = vector.shape_cast %95 : vector<1x17x8xf32> to vector<17x8xf32>
    %97 = tpu.concatenate %90, %92, %94, %96 in 1 : vector<17x8xf32>, vector<17x8xf32>, vector<17x8xf32>, vector<17x8xf32> -> vector<17x32xf32>
    %c0_33 = arith.constant 0 : index
    %c0_34 = arith.constant 0 : index
    %c0_35 = arith.constant 0 : index
    %98 = vector.load %arg10[%c0_33, %c0_34, %c0_35] : memref<2x32x32xbf16, #tpu.memory_space<vmem>>, vector<1x32x32xbf16>
    %99 = vector.shape_cast %98 : vector<1x32x32xbf16> to vector<32x32xbf16>
    %100 = arith.truncf %97 : vector<17x32xf32> to vector<17x32xbf16>
    %cst_36 = arith.constant dense<0.000000e+00> : vector<17x32xf32>
    %101 = tpu.matmul %100, %99, %cst_36 {dimension_numbers = #tpu.dot_dimension_numbers<[1], [0], [0], [1], [0, 0, 1, 1], [], []>} : vector<17x32xbf16>, vector<32x32xbf16>, vector<17x32xf32> -> vector<17x32xf32>
    %c0_37 = arith.constant 0 : index
    %c0_38 = arith.constant 0 : index
    %c0_39 = arith.constant 0 : index
    %102 = vector.load %arg11[%c0_37, %c0_38, %c0_39] : memref<2x1x32xf32, #tpu.memory_space<vmem>>, vector<1x1x32xf32>
    %103 = vector.shape_cast %102 : vector<1x1x32xf32> to vector<1x32xf32>
    %104 = vector.broadcast %103 : vector<1x32xf32> to vector<17x32xf32>
    %105 = arith.addf %101, %104 : vector<17x32xf32>
    %106 = arith.addf %11, %105 : vector<17x32xf32>
    %c0_40 = arith.constant 0 : index
    %c0_41 = arith.constant 0 : index
    %c0_42 = arith.constant 0 : index
    %107 = vector.load %arg12[%c0_40, %c0_41, %c0_42] : memref<2x1x32xf32, #tpu.memory_space<vmem>>, vector<1x1x32xf32>
    %108 = vector.shape_cast %107 : vector<1x1x32xf32> to vector<1x32xf32>
    %c0_43 = arith.constant 0 : index
    %c0_44 = arith.constant 0 : index
    %c0_45 = arith.constant 0 : index
    %109 = vector.load %arg13[%c0_43, %c0_44, %c0_45] : memref<2x1x32xf32, #tpu.memory_space<vmem>>, vector<1x1x32xf32>
    %110 = vector.shape_cast %109 : vector<1x1x32xf32> to vector<1x32xf32>
    %cst_46 = arith.constant dense<0.000000e+00> : vector<17xf32>
    %111 = vector.multi_reduction <add>, %106, %cst_46 [1] : vector<17x32xf32> to vector<17xf32>
    %112 = vector.shape_cast %111 : vector<17xf32> to vector<17x1xf32>
    %cst_47 = arith.constant 3.200000e+01 : f32
    %113 = vector.broadcast %cst_47 : f32 to vector<17x1xf32>
    %114 = arith.divf %112, %113 : vector<17x1xf32>
    %115 = vector.broadcast %114 : vector<17x1xf32> to vector<17x32xf32>
    %116 = arith.subf %106, %115 : vector<17x32xf32>
    %117 = arith.mulf %116, %116 : vector<17x32xf32>
    %cst_48 = arith.constant dense<0.000000e+00> : vector<17xf32>
    %118 = vector.multi_reduction <add>, %117, %cst_48 [1] : vector<17x32xf32> to vector<17xf32>
    %119 = vector.shape_cast %118 : vector<17xf32> to vector<17x1xf32>
    %cst_49 = arith.constant 3.200000e+01 : f32
    %120 = vector.broadcast %cst_49 : f32 to vector<17x1xf32>
    %121 = arith.divf %119, %120 : vector<17x1xf32>
    %122 = vector.broadcast %114 : vector<17x1xf32> to vector<17x32xf32>
    %123 = arith.subf %106, %122 : vector<17x32xf32>
    %cst_50 = arith.constant 9.99999974E-6 : f32
    %124 = vector.broadcast %cst_50 : f32 to vector<17x1xf32>
    %125 = arith.addf %121, %124 : vector<17x1xf32>
    %126 = math.rsqrt %125 : vector<17x1xf32>
    %127 = vector.broadcast %126 : vector<17x1xf32> to vector<17x32xf32>
    %128 = arith.mulf %123, %127 : vector<17x32xf32>
    %129 = vector.broadcast %108 : vector<1x32xf32> to vector<17x32xf32>
    %130 = arith.mulf %128, %129 : vector<17x32xf32>
    %131 = vector.broadcast %110 : vector<1x32xf32> to vector<17x32xf32>
    %132 = arith.addf %130, %131 : vector<17x32xf32>
    %c0_51 = arith.constant 0 : index
    %c0_52 = arith.constant 0 : index
    %c0_53 = arith.constant 0 : index
    %133 = vector.load %arg14[%c0_51, %c0_52, %c0_53] : memref<2x32x64xbf16, #tpu.memory_space<vmem>>, vector<1x32x64xbf16>
    %134 = vector.shape_cast %133 : vector<1x32x64xbf16> to vector<32x64xbf16>
    %135 = arith.truncf %132 : vector<17x32xf32> to vector<17x32xbf16>
    %cst_54 = arith.constant dense<0.000000e+00> : vector<17x64xf32>
    %136 = tpu.matmul %135, %134, %cst_54 {dimension_numbers = #tpu.dot_dimension_numbers<[1], [0], [0], [1], [0, 0, 1, 1], [], []>} : vector<17x32xbf16>, vector<32x64xbf16>, vector<17x64xf32> -> vector<17x64xf32>
    %c0_55 = arith.constant 0 : index
    %c0_56 = arith.constant 0 : index
    %c0_57 = arith.constant 0 : index
    %137 = vector.load %arg15[%c0_55, %c0_56, %c0_57] : memref<2x1x64xf32, #tpu.memory_space<vmem>>, vector<1x1x64xf32>
    %138 = vector.shape_cast %137 : vector<1x1x64xf32> to vector<1x64xf32>
    %139 = vector.broadcast %138 : vector<1x64xf32> to vector<17x64xf32>
    %140 = arith.addf %136, %139 : vector<17x64xf32>
    %cst_58 = arith.constant 5.000000e-01 : f32
    %141 = vector.broadcast %cst_58 : f32 to vector<17x64xf32>
    %142 = arith.mulf %141, %140 : vector<17x64xf32>
    %cst_59 = arith.constant 4.471500e-02 : f32
    %143 = vector.broadcast %cst_59 : f32 to vector<17x64xf32>
    %144 = arith.mulf %143, %140 : vector<17x64xf32>
    %145 = arith.mulf %144, %140 : vector<17x64xf32>
    %146 = arith.mulf %145, %140 : vector<17x64xf32>
    %147 = arith.addf %140, %146 : vector<17x64xf32>
    %cst_60 = arith.constant 0.797884583 : f32
    %148 = vector.broadcast %cst_60 : f32 to vector<17x64xf32>
    %149 = arith.mulf %148, %147 : vector<17x64xf32>
    %150 = math.tanh %149 : vector<17x64xf32>
    %cst_61 = arith.constant 1.000000e+00 : f32
    %151 = vector.broadcast %cst_61 : f32 to vector<17x64xf32>
    %152 = arith.addf %151, %150 : vector<17x64xf32>
    %153 = arith.mulf %142, %152 : vector<17x64xf32>
    %c0_62 = arith.constant 0 : index
    %c0_63 = arith.constant 0 : index
    %c0_64 = arith.constant 0 : index
    %154 = vector.load %arg16[%c0_62, %c0_63, %c0_64] : memref<2x64x32xbf16, #tpu.memory_space<vmem>>, vector<1x64x32xbf16>
    %155 = vector.shape_cast %154 : vector<1x64x32xbf16> to vector<64x32xbf16>
    %156 = arith.truncf %153 : vector<17x64xf32> to vector<17x64xbf16>
    %cst_65 = arith.constant dense<0.000000e+00> : vector<17x32xf32>
    %157 = tpu.matmul %156, %155, %cst_65 {dimension_numbers = #tpu.dot_dimension_numbers<[1], [0], [0], [1], [0, 0, 1, 1], [], []>} : vector<17x64xbf16>, vector<64x32xbf16>, vector<17x32xf32> -> vector<17x32xf32>
    %c0_66 = arith.constant 0 : index
    %c0_67 = arith.constant 0 : index
    %c0_68 = arith.constant 0 : index
    %158 = vector.load %arg17[%c0_66, %c0_67, %c0_68] : memref<2x1x32xf32, #tpu.memory_space<vmem>>, vector<1x1x32xf32>
    %159 = vector.shape_cast %158 : vector<1x1x32xf32> to vector<1x32xf32>
    %160 = vector.broadcast %159 : vector<1x32xf32> to vector<17x32xf32>
    %161 = arith.addf %157, %160 : vector<17x32xf32>
    %162 = arith.addf %106, %161 : vector<17x32xf32>
    %c1 = arith.constant 1 : index
    %c0_69 = arith.constant 0 : index
    %c0_70 = arith.constant 0 : index
    %163 = vector.load %arg6[%c1, %c0_69, %c0_70] : memref<2x1x32xf32, #tpu.memory_space<vmem>>, vector<1x1x32xf32>
    %164 = vector.shape_cast %163 : vector<1x1x32xf32> to vector<1x32xf32>
    %c1_71 = arith.constant 1 : index
    %c0_72 = arith.constant 0 : index
    %c0_73 = arith.constant 0 : index
    %165 = vector.load %arg7[%c1_71, %c0_72, %c0_73] : memref<2x1x32xf32, #tpu.memory_space<vmem>>, vector<1x1x32xf32>
    %166 = vector.shape_cast %165 : vector<1x1x32xf32> to vector<1x32xf32>
    %cst_74 = arith.constant dense<0.000000e+00> : vector<17xf32>
    %167 = vector.multi_reduction <add>, %162, %cst_74 [1] : vector<17x32xf32> to vector<17xf32>
    %168 = vector.shape_cast %167 : vector<17xf32> to vector<17x1xf32>
    %cst_75 = arith.constant 3.200000e+01 : f32
    %169 = vector.broadcast %cst_75 : f32 to vector<17x1xf32>
    %170 = arith.divf %168, %169 : vector<17x1xf32>
    %171 = vector.broadcast %170 : vector<17x1xf32> to vector<17x32xf32>
    %172 = arith.subf %162, %171 : vector<17x32xf32>
    %173 = arith.mulf %172, %172 : vector<17x32xf32>
    %cst_76 = arith.constant dense<0.000000e+00> : vector<17xf32>
    %174 = vector.multi_reduction <add>, %173, %cst_76 [1] : vector<17x32xf32> to vector<17xf32>
    %175 = vector.shape_cast %174 : vector<17xf32> to vector<17x1xf32>
    %cst_77 = arith.constant 3.200000e+01 : f32
    %176 = vector.broadcast %cst_77 : f32 to vector<17x1xf32>
    %177 = arith.divf %175, %176 : vector<17x1xf32>
    %178 = vector.broadcast %170 : vector<17x1xf32> to vector<17x32xf32>
    %179 = arith.subf %162, %178 : vector<17x32xf32>
    %cst_78 = arith.constant 9.99999974E-6 : f32
    %180 = vector.broadcast %cst_78 : f32 to vector<17x1xf32>
    %181 = arith.addf %177, %180 : vector<17x1xf32>
    %182 = math.rsqrt %181 : vector<17x1xf32>
    %183 = vector.broadcast %182 : vector<17x1xf32> to vector<17x32xf32>
    %184 = arith.mulf %179, %183 : vector<17x32xf32>
    %185 = vector.broadcast %164 : vector<1x32xf32> to vector<17x32xf32>
    %186 = arith.mulf %184, %185 : vector<17x32xf32>
    %187 = vector.broadcast %166 : vector<1x32xf32> to vector<17x32xf32>
    %188 = arith.addf %186, %187 : vector<17x32xf32>
    %c1_79 = arith.constant 1 : index
    %c0_80 = arith.constant 0 : index
    %c0_81 = arith.constant 0 : index
    %189 = vector.load %arg8[%c1_79, %c0_80, %c0_81] : memref<2x32x96xbf16, #tpu.memory_space<vmem>>, vector<1x32x96xbf16>
    %190 = vector.shape_cast %189 : vector<1x32x96xbf16> to vector<32x96xbf16>
    %191 = arith.truncf %188 : vector<17x32xf32> to vector<17x32xbf16>
    %cst_82 = arith.constant dense<0.000000e+00> : vector<17x96xf32>
    %192 = tpu.matmul %191, %190, %cst_82 {dimension_numbers = #tpu.dot_dimension_numbers<[1], [0], [0], [1], [0, 0, 1, 1], [], []>} : vector<17x32xbf16>, vector<32x96xbf16>, vector<17x96xf32> -> vector<17x96xf32>
    %c1_83 = arith.constant 1 : index
    %c0_84 = arith.constant 0 : index
    %c0_85 = arith.constant 0 : index
    %193 = vector.load %arg9[%c1_83, %c0_84, %c0_85] : memref<2x1x96xf32, #tpu.memory_space<vmem>>, vector<1x1x96xf32>
    %194 = vector.shape_cast %193 : vector<1x1x96xf32> to vector<1x96xf32>
    %195 = vector.broadcast %194 : vector<1x96xf32> to vector<17x96xf32>
    %196 = arith.addf %192, %195 : vector<17x96xf32>
    %197 = arith.truncf %196 : vector<17x96xf32> to vector<17x96xbf16>
    %198 = vector.extract_strided_slice %197 {offsets = [0, 0], sizes = [17, 8], strides = [1, 1]} : vector<17x96xbf16> to vector<17x8xbf16>
    %199 = vector.extract_strided_slice %197 {offsets = [0, 8], sizes = [17, 8], strides = [1, 1]} : vector<17x96xbf16> to vector<17x8xbf16>
    %200 = vector.extract_strided_slice %197 {offsets = [0, 16], sizes = [17, 8], strides = [1, 1]} : vector<17x96xbf16> to vector<17x8xbf16>
    %201 = vector.extract_strided_slice %197 {offsets = [0, 24], sizes = [17, 8], strides = [1, 1]} : vector<17x96xbf16> to vector<17x8xbf16>
    %202 = vector.shape_cast %198 : vector<17x8xbf16> to vector<1x17x8xbf16>
    %203 = vector.shape_cast %199 : vector<17x8xbf16> to vector<1x17x8xbf16>
    %204 = vector.shape_cast %200 : vector<17x8xbf16> to vector<1x17x8xbf16>
    %205 = vector.shape_cast %201 : vector<17x8xbf16> to vector<1x17x8xbf16>
    %206 = tpu.concatenate %202, %203, %204, %205 in 0 : vector<1x17x8xbf16>, vector<1x17x8xbf16>, vector<1x17x8xbf16>, vector<1x17x8xbf16> -> vector<4x17x8xbf16>
    %207 = vector.extract_strided_slice %197 {offsets = [0, 32], sizes = [17, 8], strides = [1, 1]} : vector<17x96xbf16> to vector<17x8xbf16>
    %208 = vector.extract_strided_slice %197 {offsets = [0, 40], sizes = [17, 8], strides = [1, 1]} : vector<17x96xbf16> to vector<17x8xbf16>
    %209 = vector.extract_strided_slice %197 {offsets = [0, 48], sizes = [17, 8], strides = [1, 1]} : vector<17x96xbf16> to vector<17x8xbf16>
    %210 = vector.extract_strided_slice %197 {offsets = [0, 56], sizes = [17, 8], strides = [1, 1]} : vector<17x96xbf16> to vector<17x8xbf16>
    %211 = vector.shape_cast %207 : vector<17x8xbf16> to vector<1x17x8xbf16>
    %212 = vector.shape_cast %208 : vector<17x8xbf16> to vector<1x17x8xbf16>
    %213 = vector.shape_cast %209 : vector<17x8xbf16> to vector<1x17x8xbf16>
    %214 = vector.shape_cast %210 : vector<17x8xbf16> to vector<1x17x8xbf16>
    %215 = tpu.concatenate %211, %212, %213, %214 in 0 : vector<1x17x8xbf16>, vector<1x17x8xbf16>, vector<1x17x8xbf16>, vector<1x17x8xbf16> -> vector<4x17x8xbf16>
    %216 = vector.extract_strided_slice %197 {offsets = [0, 64], sizes = [17, 8], strides = [1, 1]} : vector<17x96xbf16> to vector<17x8xbf16>
    %217 = vector.extract_strided_slice %197 {offsets = [0, 72], sizes = [17, 8], strides = [1, 1]} : vector<17x96xbf16> to vector<17x8xbf16>
    %218 = vector.extract_strided_slice %197 {offsets = [0, 80], sizes = [17, 8], strides = [1, 1]} : vector<17x96xbf16> to vector<17x8xbf16>
    %219 = vector.extract_strided_slice %197 {offsets = [0, 88], sizes = [17, 8], strides = [1, 1]} : vector<17x96xbf16> to vector<17x8xbf16>
    %220 = vector.shape_cast %216 : vector<17x8xbf16> to vector<1x17x8xbf16>
    %221 = vector.shape_cast %217 : vector<17x8xbf16> to vector<1x17x8xbf16>
    %222 = vector.shape_cast %218 : vector<17x8xbf16> to vector<1x17x8xbf16>
    %223 = vector.shape_cast %219 : vector<17x8xbf16> to vector<1x17x8xbf16>
    %224 = tpu.concatenate %220, %221, %222, %223 in 0 : vector<1x17x8xbf16>, vector<1x17x8xbf16>, vector<1x17x8xbf16>, vector<1x17x8xbf16> -> vector<4x17x8xbf16>
    %cst_86 = arith.constant dense<0.000000e+00> : vector<4x17x17xf32>
    %225 = tpu.matmul %206, %215, %cst_86 {dimension_numbers = #tpu.dot_dimension_numbers<[2], [2], [1], [1], [0, 0, 0, 1, 1, 1], [0], [0]>} : vector<4x17x8xbf16>, vector<4x17x8xbf16>, vector<4x17x17xf32> -> vector<4x17x17xf32>
    %cst_87 = arith.constant 0.353553385 : f32
    %226 = vector.broadcast %cst_87 : f32 to vector<4x17x17xf32>
    %227 = arith.mulf %225, %226 : vector<4x17x17xf32>
    %cst_88 = arith.constant dense<0xFF800000> : vector<4x17xf32>
    %228 = vector.multi_reduction <maximumf>, %227, %cst_88 [2] : vector<4x17x17xf32> to vector<4x17xf32>
    %229 = vector.shape_cast %228 : vector<4x17xf32> to vector<4x17x1xf32>
    %230 = vector.broadcast %229 : vector<4x17x1xf32> to vector<4x17x17xf32>
    %231 = arith.subf %227, %230 : vector<4x17x17xf32>
    %232 = math.exp %231 : vector<4x17x17xf32>
    %cst_89 = arith.constant dense<0.000000e+00> : vector<4x17xf32>
    %233 = vector.multi_reduction <add>, %232, %cst_89 [2] : vector<4x17x17xf32> to vector<4x17xf32>
    %234 = vector.shape_cast %233 : vector<4x17xf32> to vector<4x17x1xf32>
    %235 = tpu.reciprocal %234 {approx = true} : vector<4x17x1xf32> -> vector<4x17x1xf32>
    %236 = vector.broadcast %235 : vector<4x17x1xf32> to vector<4x17x17xf32>
    %237 = arith.mulf %232, %236 : vector<4x17x17xf32>
    %238 = arith.truncf %237 : vector<4x17x17xf32> to vector<4x17x17xbf16>
    %cst_90 = arith.constant dense<0.000000e+00> : vector<4x17x8xf32>
    %239 = tpu.matmul %238, %224, %cst_90 {dimension_numbers = #tpu.dot_dimension_numbers<[2], [1], [1], [2], [0, 0, 0, 1, 1, 2], [0], [0]>} : vector<4x17x17xbf16>, vector<4x17x8xbf16>, vector<4x17x8xf32> -> vector<4x17x8xf32>
    %240 = vector.extract_strided_slice %239 {offsets = [0, 0, 0], sizes = [1, 17, 8], strides = [1, 1, 1]} : vector<4x17x8xf32> to vector<1x17x8xf32>
    %241 = vector.shape_cast %240 : vector<1x17x8xf32> to vector<17x8xf32>
    %242 = vector.extract_strided_slice %239 {offsets = [1, 0, 0], sizes = [1, 17, 8], strides = [1, 1, 1]} : vector<4x17x8xf32> to vector<1x17x8xf32>
    %243 = vector.shape_cast %242 : vector<1x17x8xf32> to vector<17x8xf32>
    %244 = vector.extract_strided_slice %239 {offsets = [2, 0, 0], sizes = [1, 17, 8], strides = [1, 1, 1]} : vector<4x17x8xf32> to vector<1x17x8xf32>
    %245 = vector.shape_cast %244 : vector<1x17x8xf32> to vector<17x8xf32>
    %246 = vector.extract_strided_slice %239 {offsets = [3, 0, 0], sizes = [1, 17, 8], strides = [1, 1, 1]} : vector<4x17x8xf32> to vector<1x17x8xf32>
    %247 = vector.shape_cast %246 : vector<1x17x8xf32> to vector<17x8xf32>
    %248 = tpu.concatenate %241, %243, %245, %247 in 1 : vector<17x8xf32>, vector<17x8xf32>, vector<17x8xf32>, vector<17x8xf32> -> vector<17x32xf32>
    %c1_91 = arith.constant 1 : index
    %c0_92 = arith.constant 0 : index
    %c0_93 = arith.constant 0 : index
    %249 = vector.load %arg10[%c1_91, %c0_92, %c0_93] : memref<2x32x32xbf16, #tpu.memory_space<vmem>>, vector<1x32x32xbf16>
    %250 = vector.shape_cast %249 : vector<1x32x32xbf16> to vector<32x32xbf16>
    %251 = arith.truncf %248 : vector<17x32xf32> to vector<17x32xbf16>
    %cst_94 = arith.constant dense<0.000000e+00> : vector<17x32xf32>
    %252 = tpu.matmul %251, %250, %cst_94 {dimension_numbers = #tpu.dot_dimension_numbers<[1], [0], [0], [1], [0, 0, 1, 1], [], []>} : vector<17x32xbf16>, vector<32x32xbf16>, vector<17x32xf32> -> vector<17x32xf32>
    %c1_95 = arith.constant 1 : index
    %c0_96 = arith.constant 0 : index
    %c0_97 = arith.constant 0 : index
    %253 = vector.load %arg11[%c1_95, %c0_96, %c0_97] : memref<2x1x32xf32, #tpu.memory_space<vmem>>, vector<1x1x32xf32>
    %254 = vector.shape_cast %253 : vector<1x1x32xf32> to vector<1x32xf32>
    %255 = vector.broadcast %254 : vector<1x32xf32> to vector<17x32xf32>
    %256 = arith.addf %252, %255 : vector<17x32xf32>
    %257 = arith.addf %162, %256 : vector<17x32xf32>
    %c1_98 = arith.constant 1 : index
    %c0_99 = arith.constant 0 : index
    %c0_100 = arith.constant 0 : index
    %258 = vector.load %arg12[%c1_98, %c0_99, %c0_100] : memref<2x1x32xf32, #tpu.memory_space<vmem>>, vector<1x1x32xf32>
    %259 = vector.shape_cast %258 : vector<1x1x32xf32> to vector<1x32xf32>
    %c1_101 = arith.constant 1 : index
    %c0_102 = arith.constant 0 : index
    %c0_103 = arith.constant 0 : index
    %260 = vector.load %arg13[%c1_101, %c0_102, %c0_103] : memref<2x1x32xf32, #tpu.memory_space<vmem>>, vector<1x1x32xf32>
    %261 = vector.shape_cast %260 : vector<1x1x32xf32> to vector<1x32xf32>
    %cst_104 = arith.constant dense<0.000000e+00> : vector<17xf32>
    %262 = vector.multi_reduction <add>, %257, %cst_104 [1] : vector<17x32xf32> to vector<17xf32>
    %263 = vector.shape_cast %262 : vector<17xf32> to vector<17x1xf32>
    %cst_105 = arith.constant 3.200000e+01 : f32
    %264 = vector.broadcast %cst_105 : f32 to vector<17x1xf32>
    %265 = arith.divf %263, %264 : vector<17x1xf32>
    %266 = vector.broadcast %265 : vector<17x1xf32> to vector<17x32xf32>
    %267 = arith.subf %257, %266 : vector<17x32xf32>
    %268 = arith.mulf %267, %267 : vector<17x32xf32>
    %cst_106 = arith.constant dense<0.000000e+00> : vector<17xf32>
    %269 = vector.multi_reduction <add>, %268, %cst_106 [1] : vector<17x32xf32> to vector<17xf32>
    %270 = vector.shape_cast %269 : vector<17xf32> to vector<17x1xf32>
    %cst_107 = arith.constant 3.200000e+01 : f32
    %271 = vector.broadcast %cst_107 : f32 to vector<17x1xf32>
    %272 = arith.divf %270, %271 : vector<17x1xf32>
    %273 = vector.broadcast %265 : vector<17x1xf32> to vector<17x32xf32>
    %274 = arith.subf %257, %273 : vector<17x32xf32>
    %cst_108 = arith.constant 9.99999974E-6 : f32
    %275 = vector.broadcast %cst_108 : f32 to vector<17x1xf32>
    %276 = arith.addf %272, %275 : vector<17x1xf32>
    %277 = math.rsqrt %276 : vector<17x1xf32>
    %278 = vector.broadcast %277 : vector<17x1xf32> to vector<17x32xf32>
    %279 = arith.mulf %274, %278 : vector<17x32xf32>
    %280 = vector.broadcast %259 : vector<1x32xf32> to vector<17x32xf32>
    %281 = arith.mulf %279, %280 : vector<17x32xf32>
    %282 = vector.broadcast %261 : vector<1x32xf32> to vector<17x32xf32>
    %283 = arith.addf %281, %282 : vector<17x32xf32>
    %c1_109 = arith.constant 1 : index
    %c0_110 = arith.constant 0 : index
    %c0_111 = arith.constant 0 : index
    %284 = vector.load %arg14[%c1_109, %c0_110, %c0_111] : memref<2x32x64xbf16, #tpu.memory_space<vmem>>, vector<1x32x64xbf16>
    %285 = vector.shape_cast %284 : vector<1x32x64xbf16> to vector<32x64xbf16>
    %286 = arith.truncf %283 : vector<17x32xf32> to vector<17x32xbf16>
    %cst_112 = arith.constant dense<0.000000e+00> : vector<17x64xf32>
    %287 = tpu.matmul %286, %285, %cst_112 {dimension_numbers = #tpu.dot_dimension_numbers<[1], [0], [0], [1], [0, 0, 1, 1], [], []>} : vector<17x32xbf16>, vector<32x64xbf16>, vector<17x64xf32> -> vector<17x64xf32>
    %c1_113 = arith.constant 1 : index
    %c0_114 = arith.constant 0 : index
    %c0_115 = arith.constant 0 : index
    %288 = vector.load %arg15[%c1_113, %c0_114, %c0_115] : memref<2x1x64xf32, #tpu.memory_space<vmem>>, vector<1x1x64xf32>
    %289 = vector.shape_cast %288 : vector<1x1x64xf32> to vector<1x64xf32>
    %290 = vector.broadcast %289 : vector<1x64xf32> to vector<17x64xf32>
    %291 = arith.addf %287, %290 : vector<17x64xf32>
    %cst_116 = arith.constant 5.000000e-01 : f32
    %292 = vector.broadcast %cst_116 : f32 to vector<17x64xf32>
    %293 = arith.mulf %292, %291 : vector<17x64xf32>
    %cst_117 = arith.constant 4.471500e-02 : f32
    %294 = vector.broadcast %cst_117 : f32 to vector<17x64xf32>
    %295 = arith.mulf %294, %291 : vector<17x64xf32>
    %296 = arith.mulf %295, %291 : vector<17x64xf32>
    %297 = arith.mulf %296, %291 : vector<17x64xf32>
    %298 = arith.addf %291, %297 : vector<17x64xf32>
    %cst_118 = arith.constant 0.797884583 : f32
    %299 = vector.broadcast %cst_118 : f32 to vector<17x64xf32>
    %300 = arith.mulf %299, %298 : vector<17x64xf32>
    %301 = math.tanh %300 : vector<17x64xf32>
    %cst_119 = arith.constant 1.000000e+00 : f32
    %302 = vector.broadcast %cst_119 : f32 to vector<17x64xf32>
    %303 = arith.addf %302, %301 : vector<17x64xf32>
    %304 = arith.mulf %293, %303 : vector<17x64xf32>
    %c1_120 = arith.constant 1 : index
    %c0_121 = arith.constant 0 : index
    %c0_122 = arith.constant 0 : index
    %305 = vector.load %arg16[%c1_120, %c0_121, %c0_122] : memref<2x64x32xbf16, #tpu.memory_space<vmem>>, vector<1x64x32xbf16>
    %306 = vector.shape_cast %305 : vector<1x64x32xbf16> to vector<64x32xbf16>
    %307 = arith.truncf %304 : vector<17x64xf32> to vector<17x64xbf16>
    %cst_123 = arith.constant dense<0.000000e+00> : vector<17x32xf32>
    %308 = tpu.matmul %307, %306, %cst_123 {dimension_numbers = #tpu.dot_dimension_numbers<[1], [0], [0], [1], [0, 0, 1, 1], [], []>} : vector<17x64xbf16>, vector<64x32xbf16>, vector<17x32xf32> -> vector<17x32xf32>
    %c1_124 = arith.constant 1 : index
    %c0_125 = arith.constant 0 : index
    %c0_126 = arith.constant 0 : index
    %309 = vector.load %arg17[%c1_124, %c0_125, %c0_126] : memref<2x1x32xf32, #tpu.memory_space<vmem>>, vector<1x1x32xf32>
    %310 = vector.shape_cast %309 : vector<1x1x32xf32> to vector<1x32xf32>
    %311 = vector.broadcast %310 : vector<1x32xf32> to vector<17x32xf32>
    %312 = arith.addf %308, %311 : vector<17x32xf32>
    %313 = arith.addf %257, %312 : vector<17x32xf32>
    %314 = vector.extract_strided_slice %313 {offsets = [0, 0], sizes = [1, 32], strides = [1, 1]} : vector<17x32xf32> to vector<1x32xf32>
    %c0_127 = arith.constant 0 : index
    %c0_128 = arith.constant 0 : index
    %315 = vector.load %arg18[%c0_127, %c0_128] : memref<32x128xbf16, #tpu.memory_space<vmem>>, vector<32x128xbf16>
    %316 = arith.truncf %314 : vector<1x32xf32> to vector<1x32xbf16>
    %cst_129 = arith.constant dense<0.000000e+00> : vector<1x128xf32>
    %317 = tpu.matmul %316, %315, %cst_129 {dimension_numbers = #tpu.dot_dimension_numbers<[1], [0], [0], [1], [0, 0, 1, 1], [], []>} : vector<1x32xbf16>, vector<32x128xbf16>, vector<1x128xf32> -> vector<1x128xf32>
    %c0_130 = arith.constant 0 : index
    %c0_131 = arith.constant 0 : index
    %318 = vector.load %arg19[%c0_130, %c0_131] : memref<1x128xf32, #tpu.memory_space<vmem>>, vector<1x128xf32>
    %319 = arith.addf %317, %318 : vector<1x128xf32>
    %c0_132 = arith.constant 0 : index
    %c0_133 = arith.constant 0 : index
    %c0_134 = arith.constant 0 : index
    %320 = vector.load %arg20[%c0_132, %c0_133, %c0_134] : memref<1x1x128xf32, #tpu.memory_space<vmem>>, vector<1x1x128xf32>
    %321 = vector.shape_cast %320 : vector<1x1x128xf32> to vector<1x128xf32>
    %322 = vector.shape_cast %319 : vector<1x128xf32> to vector<1x1x128xf32>
    tpu.vector_store %arg20[%c0_132, %c0_133, %c0_134], %322 {strides = array<i32>} : memref<1x1x128xf32, #tpu.memory_space<vmem>>, vector<1x1x128xf32>,
    return
  }
  func.func @transform_0(%arg0: i32) -> (i32, i32, i32) {
    %c0_i32 = arith.constant 0 : i32
    %c0_i32_0 = arith.constant 0 : i32
    %c0_i32_1 = arith.constant 0 : i32
    return %arg0, %c0_i32, %c0_i32_0 : i32, i32, i32
  }
  func.func @transform_1(%arg0: i32) -> (i32, i32) {
    %c0_i32 = arith.constant 0 : i32
    %c0_i32_0 = arith.constant 0 : i32
    %c0_i32_1 = arith.constant 0 : i32
    return %c0_i32, %c0_i32_0 : i32, i32
  }
  func.func @transform_2(%arg0: i32) -> (i32, i32) {
    %c0_i32 = arith.constant 0 : i32
    %c0_i32_0 = arith.constant 0 : i32
    %c0_i32_1 = arith.constant 0 : i32
    return %c0_i32, %c0_i32_0 : i32, i32
  }
  func.func @transform_3(%arg0: i32) -> (i32, i32) {
    %c0_i32 = arith.constant 0 : i32
    %c0_i32_0 = arith.constant 0 : i32
    %c0_i32_1 = arith.constant 0 : i32
    return %c0_i32, %c0_i32_0 : i32, i32
  }
  func.func @transform_4(%arg0: i32) -> (i32, i32) {
    %c0_i32 = arith.constant 0 : i32
    %c0_i32_0 = arith.constant 0 : i32
    %c0_i32_1 = arith.constant 0 : i32
    return %c0_i32, %c0_i32_0 : i32, i32
  }
  func.func @transform_5(%arg0: i32) -> (i32, i32, i32) {
    %c0_i32 = arith.constant 0 : i32
    %c0_i32_0 = arith.constant 0 : i32
    %c0_i32_1 = arith.constant 0 : i32
    %c0_i32_2 = arith.constant 0 : i32
    return %c0_i32, %c0_i32_0, %c0_i32_1 : i32, i32, i32
  }
  func.func @transform_6(%arg0: i32) -> (i32, i32, i32) {
    %c0_i32 = arith.constant 0 : i32
    %c0_i32_0 = arith.constant 0 : i32
    %c0_i32_1 = arith.constant 0 : i32
    %c0_i32_2 = arith.constant 0 : i32
    return %c0_i32, %c0_i32_0, %c0_i32_1 : i32, i32, i32
  }
  func.func @transform_7(%arg0: i32) -> (i32, i32, i32) {
    %c0_i32 = arith.constant 0 : i32
    %c0_i32_0 = arith.constant 0 : i32
    %c0_i32_1 = arith.constant 0 : i32
    %c0_i32_2 = arith.constant 0 : i32
    return %c0_i32, %c0_i32_0, %c0_i32_1 : i32, i32, i32
  }
  func.func @transform_8(%arg0: i32) -> (i32, i32, i32) {
    %c0_i32 = arith.constant 0 : i32
    %c0_i32_0 = arith.constant 0 : i32
    %c0_i32_1 = arith.constant 0 : i32
    %c0_i32_2 = arith.constant 0 : i32
    return %c0_i32, %c0_i32_0, %c0_i32_1 : i32, i32, i32
  }
  func.func @transform_9(%arg0: i32) -> (i32, i32, i32) {
    %c0_i32 = arith.constant 0 : i32
    %c0_i32_0 = arith.constant 0 : i32
    %c0_i32_1 = arith.constant 0 : i32
    %c0_i32_2 = arith.constant 0 : i32
    return %c0_i32, %c0_i32_0, %c0_i32_1 : i32, i32, i32
  }
  func.func @transform_10(%arg0: i32) -> (i32, i32, i32) {
    %c0_i32 = arith.constant 0 : i32
    %c0_i32_0 = arith.constant 0 : i32
    %c0_i32_1 = arith.constant 0 : i32
    %c0_i32_2 = arith.constant 0 : i32
    return %c0_i32, %c0_i32_0, %c0_i32_1 : i32, i32, i32
  }
  func.func @transform_11(%arg0: i32) -> (i32, i32, i32) {
    %c0_i32 = arith.constant 0 : i32
    %c0_i32_0 = arith.constant 0 : i32
    %c0_i32_1 = arith.constant 0 : i32
    %c0_i32_2 = arith.constant 0 : i32
    return %c0_i32, %c0_i32_0, %c0_i32_1 : i32, i32, i32
  }
  func.func @transform_12(%arg0: i32) -> (i32, i32, i32) {
    %c0_i32 = arith.constant 0 : i32
    %c0_i32_0 = arith.constant 0 : i32
    %c0_i32_1 = arith.constant 0 : i32
    %c0_i32_2 = arith.constant 0 : i32
    return %c0_i32, %c0_i32_0, %c0_i32_1 : i32, i32, i32
  }
  func.func @transform_13(%arg0: i32) -> (i32, i32, i32) {
    %c0_i32 = arith.constant 0 : i32
    %c0_i32_0 = arith.constant 0 : i32
    %c0_i32_1 = arith.constant 0 : i32
    %c0_i32_2 = arith.constant 0 : i32
    return %c0_i32, %c0_i32_0, %c0_i32_1 : i32, i32, i32
  }
  func.func @transform_14(%arg0: i32) -> (i32, i32, i32) {
    %c0_i32 = arith.constant 0 : i32
    %c0_i32_0 = arith.constant 0 : i32
    %c0_i32_1 = arith.constant 0 : i32
    %c0_i32_2 = arith.constant 0 : i32
    return %c0_i32, %c0_i32_0, %c0_i32_1 : i32, i32, i32
  }
  func.func @transform_15(%arg0: i32) -> (i32, i32, i32) {
    %c0_i32 = arith.constant 0 : i32
    %c0_i32_0 = arith.constant 0 : i32
    %c0_i32_1 = arith.constant 0 : i32
    %c0_i32_2 = arith.constant 0 : i32
    return %c0_i32, %c0_i32_0, %c0_i32_1 : i32, i32, i32
  }
  func.func @transform_16(%arg0: i32) -> (i32, i32, i32) {
    %c0_i32 = arith.constant 0 : i32
    %c0_i32_0 = arith.constant 0 : i32
    %c0_i32_1 = arith.constant 0 : i32
    %c0_i32_2 = arith.constant 0 : i32
    return %c0_i32, %c0_i32_0, %c0_i32_1 : i32, i32, i32
  }
  func.func @transform_17(%arg0: i32) -> (i32, i32) {
    %c0_i32 = arith.constant 0 : i32
    %c0_i32_0 = arith.constant 0 : i32
    %c0_i32_1 = arith.constant 0 : i32
    return %c0_i32, %c0_i32_0 : i32, i32
  }
  func.func @transform_18(%arg0: i32) -> (i32, i32) {
    %c0_i32 = arith.constant 0 : i32
    %c0_i32_0 = arith.constant 0 : i32
    %c0_i32_1 = arith.constant 0 : i32
    return %c0_i32, %c0_i32_0 : i32, i32
  }
  func.func @transform_19(%arg0: i32) -> (i32, i32, i32) {
    %c0_i32 = arith.constant 0 : i32
    %c0_i32_0 = arith.constant 0 : i32
    %c0_i32_1 = arith.constant 0 : i32
    return %arg0, %c0_i32, %c0_i32_0 : i32, i32, i32
  }
}

</mosaic_0001>

<llo_original>
// kernel: tpu_custom_call.1
$region0: #{tpu_custom_call.1}
  #allocation0 [shape = 'u32[]', space=smem, size = 0x4, offset = 0x4, fixed_abs, tag = 'smem constant byte address 0x4 - core index']
  #allocation1 [shape = 'u32[144,128]{1,0:T(1,128)}', space=vmem, size = 0x12000, scoped, tag = 'internal scratch']
  %s0 = inlined_call_operand.vmem [shape: f32[2,16,64], index: 0, kind: input, shape index: {}]
  %s1 = inlined_call_operand.vmem [shape: bf16[64,32], index: 1, kind: input, shape index: {}]
  %s2 = inlined_call_operand.hbm [shape: f32[1,32], index: 2, kind: input, shape index: {}]
  %s3 = inlined_call_operand.hbm [shape: f32[1,32], index: 3, kind: input, shape index: {}]
  %s4 = inlined_call_operand.hbm [shape: f32[16,32], index: 4, kind: input, shape index: {}]
  %s5 = inlined_call_operand.vmem [shape: f32[2,1,32], index: 5, kind: input, shape index: {}]
  %s6 = inlined_call_operand.hbm [shape: f32[2,1,32], index: 6, kind: input, shape index: {}]
  %s7 = inlined_call_operand.vmem [shape: bf16[2,32,96], index: 7, kind: input, shape index: {}]
  %s8 = inlined_call_operand.hbm [shape: f32[2,1,96], index: 8, kind: input, shape index: {}]
  %s9 = inlined_call_operand.vmem [shape: bf16[2,32,32], index: 9, kind: input, shape index: {}]
  %s10 = inlined_call_operand.vmem [shape: f32[2,1,32], index: 10, kind: input, shape index: {}]
  %s11 = inlined_call_operand.vmem [shape: f32[2,1,32], index: 11, kind: input, shape index: {}]
  %s12 = inlined_call_operand.vmem [shape: f32[2,1,32], index: 12, kind: input, shape index: {}]
  %s13 = inlined_call_operand.vmem [shape: bf16[2,32,64], index: 13, kind: input, shape index: {}]
  %s14 = inlined_call_operand.vmem [shape: f32[2,1,64], index: 14, kind: input, shape index: {}]
  %s15 = inlined_call_operand.vmem [shape: bf16[2,64,32], index: 15, kind: input, shape index: {}]
  %s16 = inlined_call_operand.vmem [shape: f32[2,1,32], index: 16, kind: input, shape index: {}]
  %s17 = inlined_call_operand.vmem [shape: bf16[32,128], index: 17, kind: input, shape index: {}]
  %s18 = inlined_call_operand.vmem [shape: f32[1,128], index: 18, kind: input, shape index: {}]
  %s19 = inlined_call_operand.hbm [shape: f32[2,1,128], index: 19, kind: output, shape index: {}]
  %s20 = sld [smem:[#allocation0]]
  $region129: #{tpu_custom_call.1} parent=0
    _
  %s22 = ssub.s32 1, %s20
  %s23 = scalar_select 0, %s22, %s20
  $region1: #{tpu_custom_call.1} parent=0
    #allocation2 [shape = 'u8[512]{0}', space=vmem, size = 0x400, scoped, tag = 'input window, operand 2, single buffered']
    #allocation3 [shape = 's32[2]{0}', space=sflag, size = 0x8, scoped, tag = 'scoped memory for tpu_custom_call.1']
    #allocation4 [shape = 's32[2]{0}', space=sflag, size = 0x8, scoped, tag = 'scoped memory for tpu_custom_call.1']
    #allocation5 [shape = 'u8[512]{0}', space=vmem, size = 0x400, scoped, tag = 'input window, operand 3, single buffered']
    #allocation6 [shape = 's32[1]{0}', space=sflag, size = 0x4, scoped, tag = 'scoped memory for tpu_custom_call.1']
    #allocation7 [shape = 'u8[8192]{0}', space=vmem, size = 0x2000, scoped, tag = 'input window, operand 4, single buffered']
    #allocation8 [shape = 'u8[1024]{0}', space=vmem, size = 0x400, scoped, tag = 'input window, operand 6, single buffered']
    #allocation9 [shape = 's32[1]{0}', space=sflag, size = 0x4, scoped, tag = 'scoped memory for tpu_custom_call.1']
    #allocation10 [shape = 'u8[1024]{0}', space=vmem, size = 0x400, scoped, tag = 'input window, operand 8, single buffered']
    #allocation11 [shape = 'u8[1024]{0}', space=vmem, size = 0x400, scoped, tag = 'output window, operand 0']
    %24 = vsyncpa [#allocation3], 0
    %25 = vsyncpa [#allocation6], 0
    %26 = vsyncpa [#allocation9], 0
    %27 = vsyncpa [#allocation4], 0
    %s28 = scalar_lea.sflag [#allocation4], 1
    %29 = vsyncpa %s28, 0
    loop: start=0, step=1, limit=4
    $region2: #{tpu_custom_call.1} parent=1 // loop_pre_header
      _
    $region3: #{tpu_custom_call.1} parent=1 // loop_header
      %s31 = sphi 0, %s35
      %p32 = scmp.ge.s32.totalorder %s31, 4
      %s41 = sphi 0, %s43
      %s44 = sphi 0, %s41
      %s45 = sphi 0, %s44
      %s61 = sphi 0, %s45
      %s65 = sphi 0, %s65
      %s67 = sphi 0, %s65
      %s68 = sphi 0, %s67
      %s82 = sphi 0, %s68
      %s86 = sphi 0, %s86
      %s88 = sphi 0, %s86
      %s89 = sphi 0, %s88
      %s103 = sphi 0, %s89
      %s107 = sphi 0, %s107
      %s109 = sphi 0, %s107
      %s110 = sphi 0, %s109
      %s124 = sphi 0, %s110
      %s128 = sphi 0, %s128
      %s130 = sphi 0, %s128
      %s131 = sphi 0, %s130
      %s145 = sphi 0, %s131
      %s149 = sphi 0, %s149
      %s151 = sphi 0, %s149
      %s152 = sphi 0, %s151
      %s166 = sphi 0, %s152
      %s170 = sphi 0, %s170
      %s172 = sphi 0, %s170
      %s173 = sphi 0, %s172
      %s187 = sphi 0, %s173
      %s191 = sphi 0, %s191
      %s193 = sphi 0, %s191
      %s194 = sphi 0, %s193
      %s208 = sphi 0, %s194
      %s212 = sphi 0, %s212
      %s214 = sphi 0, %s212
      %s215 = sphi 0, %s214
      %s229 = sphi 0, %s215
      %s233 = sphi 0, %s233
      %s235 = sphi 0, %s233
      %s236 = sphi 0, %s235
      %s250 = sphi 0, %s236
      %s254 = sphi 0, %s254
      %s256 = sphi 0, %s254
      %s257 = sphi 0, %s256
      %s271 = sphi 0, %s257
      %s275 = sphi 0, %s275
      %s277 = sphi 0, %s275
      %s278 = sphi 0, %s277
      %s292 = sphi 0, %s278
      %s296 = sphi 0, %s296
      %s298 = sphi 0, %s296
      %s299 = sphi 0, %s298
      %s313 = sphi 0, %s299
      %s317 = sphi 0, %s317
      %s319 = sphi 0, %s317
      %s320 = sphi 0, %s319
      %s334 = sphi 0, %s320
      %s338 = sphi 0, %s338
      %s340 = sphi 0, %s338
      %s341 = sphi 0, %s340
      %s355 = sphi 0, %s341
      %s359 = sphi 0, %s359
      %s361 = sphi 0, %s359
      %s362 = sphi 0, %s361
      %s376 = sphi 0, %s362
      %s380 = sphi 0, %s380
      %s382 = sphi 0, %s380
      %s383 = sphi 0, %s382
      %s397 = sphi 0, %s383
      %s401 = sphi 0, %s401
      %s403 = sphi 0, %s401
      %s404 = sphi 0, %s403
      %s418 = sphi 0, %s404
      %s422 = sphi 0, %s422
      %s424 = sphi 0, %s422
      %s425 = sphi 0, %s424
      %s439 = sphi 0, %s425
      %s445 = sphi 0, %s447
      %s448 = sphi 0, %s445
      %s449 = sphi 0, %s448
      %s465 = sphi 0, %s449
    $region4: #{tpu_custom_call.1} parent=1 // loop_header_branch
      %34 = sbr.rel (%p32) target = $region8
    $region5: #{tpu_custom_call.1} parent=1 // loop_body
      %s36 = ssub.s32 %s31, 1
      %s37 = ssub.s32 %s31, 2
      %s38 = sadd.s32 %s31, 1
      %s39 = ssub.s32 %s31, %s38
      %p40 = scmp.eq.s32.totalorder %s39, 0
      %s42 = sadd.s32 %s41, 1
      %s43 = scalar_select %p40, %s41, %s42
      %p46 = pneg %p40
      %p47 = scmp.eq.s32.totalorder %s31, 1
      %p48 = por %p46, %p47
      %p49 = scmp.ne.s32.totalorder %s41, %s44
      %p50 = scmp.eq.s32.totalorder %s31, 0
      %p51 = por %p49, %p50
      %p52 = scmp.ne.s32.totalorder %s41, %s44
      %p53 = scmp.eq.s32.totalorder %s36, 1
      %p54 = por %p52, %p53
      %p55 = scmp.ne.s32.totalorder %s44, %s45
      %p56 = scmp.eq.s32.totalorder %s36, 0
      %p57 = por %p55, %p56
      %p58 = scmp.ne.s32.totalorder %s44, %s45
      %p59 = scmp.eq.s32.totalorder %s37, 1
      %p60 = por %p58, %p59
      %p62 = scmp.ne.s32.totalorder %s45, %s61
      %p63 = scmp.eq.s32.totalorder %s37, 0
      %p64 = por %p62, %p63
      %s66 = sadd.s32 %s65, 1
      %p69 = scmp.eq.s32.totalorder %s31, 1
      %p70 = scmp.ne.s32.totalorder %s65, %s67
      %p71 = scmp.eq.s32.totalorder %s31, 0
      %p72 = por %p70, %p71
      %p73 = scmp.ne.s32.totalorder %s65, %s67
      %p74 = scmp.eq.s32.totalorder %s36, 1
      %p75 = por %p73, %p74
      %p76 = scmp.ne.s32.totalorder %s67, %s68
      %p77 = scmp.eq.s32.totalorder %s36, 0
      %p78 = por %p76, %p77
      %p79 = scmp.ne.s32.totalorder %s67, %s68
      %p80 = scmp.eq.s32.totalorder %s37, 1
      %p81 = por %p79, %p80
      %p83 = scmp.ne.s32.totalorder %s68, %s82
      %p84 = scmp.eq.s32.totalorder %s37, 0
      %p85 = por %p83, %p84
      %s87 = sadd.s32 %s86, 1
      %p90 = scmp.eq.s32.totalorder %s31, 1
      %p91 = scmp.ne.s32.totalorder %s86, %s88
      %p92 = scmp.eq.s32.totalorder %s31, 0
      %p93 = por %p91, %p92
      %p94 = scmp.ne.s32.totalorder %s86, %s88
      %p95 = scmp.eq.s32.totalorder %s36, 1
      %p96 = por %p94, %p95
      %p97 = scmp.ne.s32.totalorder %s88, %s89
      %p98 = scmp.eq.s32.totalorder %s36, 0
      %p99 = por %p97, %p98
      %p100 = scmp.ne.s32.totalorder %s88, %s89
      %p101 = scmp.eq.s32.totalorder %s37, 1
      %p102 = por %p100, %p101
      %p104 = scmp.ne.s32.totalorder %s89, %s103
      %p105 = scmp.eq.s32.totalorder %s37, 0
      %p106 = por %p104, %p105
      %s108 = sadd.s32 %s107, 1
      %p111 = scmp.eq.s32.totalorder %s31, 1
      %p112 = scmp.ne.s32.totalorder %s107, %s109
      %p113 = scmp.eq.s32.totalorder %s31, 0
      %p114 = por %p112, %p113
      %p115 = scmp.ne.s32.totalorder %s107, %s109
      %p116 = scmp.eq.s32.totalorder %s36, 1
      %p117 = por %p115, %p116
      %p118 = scmp.ne.s32.totalorder %s109, %s110
      %p119 = scmp.eq.s32.totalorder %s36, 0
      %p120 = por %p118, %p119
      %p121 = scmp.ne.s32.totalorder %s109, %s110
      %p122 = scmp.eq.s32.totalorder %s37, 1
      %p123 = por %p121, %p122
      %p125 = scmp.ne.s32.totalorder %s110, %s124
      %p126 = scmp.eq.s32.totalorder %s37, 0
      %p127 = por %p125, %p126
      %s129 = sadd.s32 %s128, 1
      %p132 = scmp.eq.s32.totalorder %s31, 1
      %p133 = scmp.ne.s32.totalorder %s128, %s130
      %p134 = scmp.eq.s32.totalorder %s31, 0
      %p135 = por %p133, %p134
      %p136 = scmp.ne.s32.totalorder %s128, %s130
      %p137 = scmp.eq.s32.totalorder %s36, 1
      %p138 = por %p136, %p137
      %p139 = scmp.ne.s32.totalorder %s130, %s131
      %p140 = scmp.eq.s32.totalorder %s36, 0
      %p141 = por %p139, %p140
      %p142 = scmp.ne.s32.totalorder %s130, %s131
      %p143 = scmp.eq.s32.totalorder %s37, 1
      %p144 = por %p142, %p143
      %p146 = scmp.ne.s32.totalorder %s131, %s145
      %p147 = scmp.eq.s32.totalorder %s37, 0
      %p148 = por %p146, %p147
      %s150 = sadd.s32 %s149, 1
      %p153 = scmp.eq.s32.totalorder %s31, 1
      %p154 = scmp.ne.s32.totalorder %s149, %s151
      %p155 = scmp.eq.s32.totalorder %s31, 0
      %p156 = por %p154, %p155
      %p157 = scmp.ne.s32.totalorder %s149, %s151
      %p158 = scmp.eq.s32.totalorder %s36, 1
      %p159 = por %p157, %p158
      %p160 = scmp.ne.s32.totalorder %s151, %s152
      %p161 = scmp.eq.s32.totalorder %s36, 0
      %p162 = por %p160, %p161
      %p163 = scmp.ne.s32.totalorder %s151, %s152
      %p164 = scmp.eq.s32.totalorder %s37, 1
      %p165 = por %p163, %p164
      %p167 = scmp.ne.s32.totalorder %s152, %s166
      %p168 = scmp.eq.s32.totalorder %s37, 0
      %p169 = por %p167, %p168
      %s171 = sadd.s32 %s170, 1
      %p174 = scmp.eq.s32.totalorder %s31, 1
      %p175 = scmp.ne.s32.totalorder %s170, %s172
      %p176 = scmp.eq.s32.totalorder %s31, 0
      %p177 = por %p175, %p176
      %p178 = scmp.ne.s32.totalorder %s170, %s172
      %p179 = scmp.eq.s32.totalorder %s36, 1
      %p180 = por %p178, %p179
      %p181 = scmp.ne.s32.totalorder %s172, %s173
      %p182 = scmp.eq.s32.totalorder %s36, 0
      %p183 = por %p181, %p182
      %p184 = scmp.ne.s32.totalorder %s172, %s173
      %p185 = scmp.eq.s32.totalorder %s37, 1
      %p186 = por %p184, %p185
      %p188 = scmp.ne.s32.totalorder %s173, %s187
      %p189 = scmp.eq.s32.totalorder %s37, 0
      %p190 = por %p188, %p189
      %s192 = sadd.s32 %s191, 1
      %p195 = scmp.eq.s32.totalorder %s31, 1
      %p196 = scmp.ne.s32.totalorder %s191, %s193
      %p197 = scmp.eq.s32.totalorder %s31, 0
      %p198 = por %p196, %p197
      %p199 = scmp.ne.s32.totalorder %s191, %s193
      %p200 = scmp.eq.s32.totalorder %s36, 1
      %p201 = por %p199, %p200
      %p202 = scmp.ne.s32.totalorder %s193, %s194
      %p203 = scmp.eq.s32.totalorder %s36, 0
      %p204 = por %p202, %p203
      %p205 = scmp.ne.s32.totalorder %s193, %s194
      %p206 = scmp.eq.s32.totalorder %s37, 1
      %p207 = por %p205, %p206
      %p209 = scmp.ne.s32.totalorder %s194, %s208
      %p210 = scmp.eq.s32.totalorder %s37, 0
      %p211 = por %p209, %p210
      %s213 = sadd.s32 %s212, 1
      %p216 = scmp.eq.s32.totalorder %s31, 1
      %p217 = scmp.ne.s32.totalorder %s212, %s214
      %p218 = scmp.eq.s32.totalorder %s31, 0
      %p219 = por %p217, %p218
      %p220 = scmp.ne.s32.totalorder %s212, %s214
      %p221 = scmp.eq.s32.totalorder %s36, 1
      %p222 = por %p220, %p221
      %p223 = scmp.ne.s32.totalorder %s214, %s215
      %p224 = scmp.eq.s32.totalorder %s36, 0
      %p225 = por %p223, %p224
      %p226 = scmp.ne.s32.totalorder %s214, %s215
      %p227 = scmp.eq.s32.totalorder %s37, 1
      %p228 = por %p226, %p227
      %p230 = scmp.ne.s32.totalorder %s215, %s229
      %p231 = scmp.eq.s32.totalorder %s37, 0
      %p232 = por %p230, %p231
      %s234 = sadd.s32 %s233, 1
      %p237 = scmp.eq.s32.totalorder %s31, 1
      %p238 = scmp.ne.s32.totalorder %s233, %s235
      %p239 = scmp.eq.s32.totalorder %s31, 0
      %p240 = por %p238, %p239
      %p241 = scmp.ne.s32.totalorder %s233, %s235
      %p242 = scmp.eq.s32.totalorder %s36, 1
      %p243 = por %p241, %p242
      %p244 = scmp.ne.s32.totalorder %s235, %s236
      %p245 = scmp.eq.s32.totalorder %s36, 0
      %p246 = por %p244, %p245
      %p247 = scmp.ne.s32.totalorder %s235, %s236
      %p248 = scmp.eq.s32.totalorder %s37, 1
      %p249 = por %p247, %p248
      %p251 = scmp.ne.s32.totalorder %s236, %s250
      %p252 = scmp.eq.s32.totalorder %s37, 0
      %p253 = por %p251, %p252
      %s255 = sadd.s32 %s254, 1
      %p258 = scmp.eq.s32.totalorder %s31, 1
      %p259 = scmp.ne.s32.totalorder %s254, %s256
      %p260 = scmp.eq.s32.totalorder %s31, 0
      %p261 = por %p259, %p260
      %p262 = scmp.ne.s32.totalorder %s254, %s256
      %p263 = scmp.eq.s32.totalorder %s36, 1
      %p264 = por %p262, %p263
      %p265 = scmp.ne.s32.totalorder %s256, %s257
      %p266 = scmp.eq.s32.totalorder %s36, 0
      %p267 = por %p265, %p266
      %p268 = scmp.ne.s32.totalorder %s256, %s257
      %p269 = scmp.eq.s32.totalorder %s37, 1
      %p270 = por %p268, %p269
      %p272 = scmp.ne.s32.totalorder %s257, %s271
      %p273 = scmp.eq.s32.totalorder %s37, 0
      %p274 = por %p272, %p273
      %s276 = sadd.s32 %s275, 1
      %p279 = scmp.eq.s32.totalorder %s31, 1
      %p280 = scmp.ne.s32.totalorder %s275, %s277
      %p281 = scmp.eq.s32.totalorder %s31, 0
      %p282 = por %p280, %p281
      %p283 = scmp.ne.s32.totalorder %s275, %s277
      %p284 = scmp.eq.s32.totalorder %s36, 1
      %p285 = por %p283, %p284
      %p286 = scmp.ne.s32.totalorder %s277, %s278
      %p287 = scmp.eq.s32.totalorder %s36, 0
      %p288 = por %p286, %p287
      %p289 = scmp.ne.s32.totalorder %s277, %s278
      %p290 = scmp.eq.s32.totalorder %s37, 1
      %p291 = por %p289, %p290
      %p293 = scmp.ne.s32.totalorder %s278, %s292
      %p294 = scmp.eq.s32.totalorder %s37, 0
      %p295 = por %p293, %p294
      %s297 = sadd.s32 %s296, 1
      %p300 = scmp.eq.s32.totalorder %s31, 1
      %p301 = scmp.ne.s32.totalorder %s296, %s298
      %p302 = scmp.eq.s32.totalorder %s31, 0
      %p303 = por %p301, %p302
      %p304 = scmp.ne.s32.totalorder %s296, %s298
      %p305 = scmp.eq.s32.totalorder %s36, 1
      %p306 = por %p304, %p305
      %p307 = scmp.ne.s32.totalorder %s298, %s299
      %p308 = scmp.eq.s32.totalorder %s36, 0
      %p309 = por %p307, %p308
      %p310 = scmp.ne.s32.totalorder %s298, %s299
      %p311 = scmp.eq.s32.totalorder %s37, 1
      %p312 = por %p310, %p311
      %p314 = scmp.ne.s32.totalorder %s299, %s313
      %p315 = scmp.eq.s32.totalorder %s37, 0
      %p316 = por %p314, %p315
      %s318 = sadd.s32 %s317, 1
      %p321 = scmp.eq.s32.totalorder %s31, 1
      %p322 = scmp.ne.s32.totalorder %s317, %s319
      %p323 = scmp.eq.s32.totalorder %s31, 0
      %p324 = por %p322, %p323
      %p325 = scmp.ne.s32.totalorder %s317, %s319
      %p326 = scmp.eq.s32.totalorder %s36, 1
      %p327 = por %p325, %p326
      %p328 = scmp.ne.s32.totalorder %s319, %s320
      %p329 = scmp.eq.s32.totalorder %s36, 0
      %p330 = por %p328, %p329
      %p331 = scmp.ne.s32.totalorder %s319, %s320
      %p332 = scmp.eq.s32.totalorder %s37, 1
      %p333 = por %p331, %p332
      %p335 = scmp.ne.s32.totalorder %s320, %s334
      %p336 = scmp.eq.s32.totalorder %s37, 0
      %p337 = por %p335, %p336
      %s339 = sadd.s32 %s338, 1
      %p342 = scmp.eq.s32.totalorder %s31, 1
      %p343 = scmp.ne.s32.totalorder %s338, %s340
      %p344 = scmp.eq.s32.totalorder %s31, 0
      %p345 = por %p343, %p344
      %p346 = scmp.ne.s32.totalorder %s338, %s340
      %p347 = scmp.eq.s32.totalorder %s36, 1
      %p348 = por %p346, %p347
      %p349 = scmp.ne.s32.totalorder %s340, %s341
      %p350 = scmp.eq.s32.totalorder %s36, 0
      %p351 = por %p349, %p350
      %p352 = scmp.ne.s32.totalorder %s340, %s341
      %p353 = scmp.eq.s32.totalorder %s37, 1
      %p354 = por %p352, %p353
      %p356 = scmp.ne.s32.totalorder %s341, %s355
      %p357 = scmp.eq.s32.totalorder %s37, 0
      %p358 = por %p356, %p357
      %s360 = sadd.s32 %s359, 1
      %p363 = scmp.eq.s32.totalorder %s31, 1
      %p364 = scmp.ne.s32.totalorder %s359, %s361
      %p365 = scmp.eq.s32.totalorder %s31, 0
      %p366 = por %p364, %p365
      %p367 = scmp.ne.s32.totalorder %s359, %s361
      %p368 = scmp.eq.s32.totalorder %s36, 1
      %p369 = por %p367, %p368
      %p370 = scmp.ne.s32.totalorder %s361, %s362
      %p371 = scmp.eq.s32.totalorder %s36, 0
      %p372 = por %p370, %p371
      %p373 = scmp.ne.s32.totalorder %s361, %s362
      %p374 = scmp.eq.s32.totalorder %s37, 1
      %p375 = por %p373, %p374
      %p377 = scmp.ne.s32.totalorder %s362, %s376
      %p378 = scmp.eq.s32.totalorder %s37, 0
      %p379 = por %p377, %p378
      %s381 = sadd.s32 %s380, 1
      %p384 = scmp.eq.s32.totalorder %s31, 1
      %p385 = scmp.ne.s32.totalorder %s380, %s382
      %p386 = scmp.eq.s32.totalorder %s31, 0
      %p387 = por %p385, %p386
      %p388 = scmp.ne.s32.totalorder %s380, %s382
      %p389 = scmp.eq.s32.totalorder %s36, 1
      %p390 = por %p388, %p389
      %p391 = scmp.ne.s32.totalorder %s382, %s383
      %p392 = scmp.eq.s32.totalorder %s36, 0
      %p393 = por %p391, %p392
      %p394 = scmp.ne.s32.totalorder %s382, %s383
      %p395 = scmp.eq.s32.totalorder %s37, 1
      %p396 = por %p394, %p395
      %p398 = scmp.ne.s32.totalorder %s383, %s397
      %p399 = scmp.eq.s32.totalorder %s37, 0
      %p400 = por %p398, %p399
      %s402 = sadd.s32 %s401, 1
      %p405 = scmp.eq.s32.totalorder %s31, 1
      %p406 = scmp.ne.s32.totalorder %s401, %s403
      %p407 = scmp.eq.s32.totalorder %s31, 0
      %p408 = por %p406, %p407
      %p409 = scmp.ne.s32.totalorder %s401, %s403
      %p410 = scmp.eq.s32.totalorder %s36, 1
      %p411 = por %p409, %p410
      %p412 = scmp.ne.s32.totalorder %s403, %s404
      %p413 = scmp.eq.s32.totalorder %s36, 0
      %p414 = por %p412, %p413
      %p415 = scmp.ne.s32.totalorder %s403, %s404
      %p416 = scmp.eq.s32.totalorder %s37, 1
      %p417 = por %p415, %p416
      %p419 = scmp.ne.s32.totalorder %s404, %s418
      %p420 = scmp.eq.s32.totalorder %s37, 0
      %p421 = por %p419, %p420
      %s423 = sadd.s32 %s422, 1
      %p426 = scmp.eq.s32.totalorder %s31, 1
      %p427 = scmp.ne.s32.totalorder %s422, %s424
      %p428 = scmp.eq.s32.totalorder %s31, 0
      %p429 = por %p427, %p428
      %p430 = scmp.ne.s32.totalorder %s422, %s424
      %p431 = scmp.eq.s32.totalorder %s36, 1
      %p432 = por %p430, %p431
      %p433 = scmp.ne.s32.totalorder %s424, %s425
      %p434 = scmp.eq.s32.totalorder %s36, 0
      %p435 = por %p433, %p434
      %p436 = scmp.ne.s32.totalorder %s424, %s425
      %p437 = scmp.eq.s32.totalorder %s37, 1
      %p438 = por %p436, %p437
      %p440 = scmp.ne.s32.totalorder %s425, %s439
      %p441 = scmp.eq.s32.totalorder %s37, 0
      %p442 = por %p440, %p441
      %s443 = ssub.s32 %s31, %s38
      %p444 = scmp.eq.s32.totalorder %s443, 0
      %s446 = sadd.s32 %s445, 1
      %s447 = scalar_select %p444, %s445, %s446
      %p450 = pneg %p444
      %p451 = scmp.eq.s32.totalorder %s31, 1
      %p452 = por %p450, %p451
      %p453 = scmp.ne.s32.totalorder %s445, %s448
      %p454 = scmp.eq.s32.totalorder %s31, 0
      %p455 = por %p453, %p454
      %p456 = scmp.ne.s32.totalorder %s445, %s448
      %p457 = scmp.eq.s32.totalorder %s36, 1
      %p458 = por %p456, %p457
      %p459 = scmp.ne.s32.totalorder %s448, %s449
      %p460 = scmp.eq.s32.totalorder %s36, 0
      %p461 = por %p459, %p460
      %p462 = scmp.ne.s32.totalorder %s448, %s449
      %p463 = scmp.eq.s32.totalorder %s37, 1
      %p464 = por %p462, %p463
      %p466 = scmp.ne.s32.totalorder %s449, %s465
      %p467 = scmp.eq.s32.totalorder %s37, 0
      %p468 = por %p466, %p467
      %p469 = scmp.le.s32.totalorder 1, %s31
      %p470 = scmp.lt.s32.totalorder %s31, 3
      %p471 = pnand %p469, %p470
      %p472 = pneg %p471
      // Predicated region
      $region9: #{tpu_custom_call.1} parent=5 // pred_check
        _
      $region10: #{tpu_custom_call.1} parent=5 // pred_check_branch
        %474 = sbr.rel (%p471) target = $region12
      $region11: #{tpu_custom_call.1} parent=5 // pred_region
        %s475 = ssub.s32 %s31, 1
        // Predicated region
        $region13: #{tpu_custom_call.1} parent=11 // pred_check
          %p476 = pneg %p78
        $region14: #{tpu_custom_call.1} parent=11 // pred_check_branch
          %478 = sbr.rel (%p476) target = $region16
        $region15: #{tpu_custom_call.1} parent=11 // pred_region
          _
        $region16: #{tpu_custom_call.1} parent=11 // pred_fallthru
          _
        // Predicated region
        $region17: #{tpu_custom_call.1} parent=11 // pred_check
          %p479 = pneg %p99
        $region18: #{tpu_custom_call.1} parent=11 // pred_check_branch
          %481 = sbr.rel (%p479) target = $region20
        $region19: #{tpu_custom_call.1} parent=11 // pred_region
          %s483 = ssub.s32 16, 16
          %484 = vsyncadd [#allocation3], %s483
          %s486 = sshll.u32 [#allocation2], 4
          %s487 = int_to_ptr.vmem [resolvable:$true] %s486
          %489 = dma.hbm_to_vmem [thread:$0]  %s2, 16, %s487, [#allocation3]
        $region20: #{tpu_custom_call.1} parent=11 // pred_fallthru
          _
        // Predicated region
        $region21: #{tpu_custom_call.1} parent=11 // pred_check
          %p490 = pneg %p120
        $region22: #{tpu_custom_call.1} parent=11 // pred_check_branch
          %492 = sbr.rel (%p490) target = $region24
        $region23: #{tpu_custom_call.1} parent=11 // pred_region
          %s494 = ssub.s32 16, 16
          %495 = vsyncadd [#allocation6], %s494
          %s497 = sshll.u32 [#allocation5], 4
          %s498 = int_to_ptr.vmem [resolvable:$true] %s497
          %500 = dma.hbm_to_vmem [thread:$0]  %s3, 16, %s498, [#allocation6]
        $region24: #{tpu_custom_call.1} parent=11 // pred_fallthru
          _
        // Predicated region
        $region25: #{tpu_custom_call.1} parent=11 // pred_check
          %p501 = pneg %p141
        $region26: #{tpu_custom_call.1} parent=11 // pred_check_branch
          %503 = sbr.rel (%p501) target = $region28
        $region27: #{tpu_custom_call.1} parent=11 // pred_region
          %s505 = ssub.s32 256, 256
          %506 = vsyncadd [#allocation6], %s505
          %s507 = sshll.u32 [#allocation7], 4
          %s508 = int_to_ptr.vmem [resolvable:$true] %s507
          %513 = dma.hbm_to_vmem [thread:$0]  %s4, 256, %s508, [#allocation6], 128, 128, 8
        $region28: #{tpu_custom_call.1} parent=11 // pred_fallthru
          _
        // Predicated region
        $region29: #{tpu_custom_call.1} parent=11 // pred_check
          %p514 = pneg %p162
        $region30: #{tpu_custom_call.1} parent=11 // pred_check_branch
          %516 = sbr.rel (%p514) target = $region32
        $region31: #{tpu_custom_call.1} parent=11 // pred_region
          _
        $region32: #{tpu_custom_call.1} parent=11 // pred_fallthru
          _
        // Predicated region
        $region33: #{tpu_custom_call.1} parent=11 // pred_check
          %p517 = pneg %p183
        $region34: #{tpu_custom_call.1} parent=11 // pred_check_branch
          %519 = sbr.rel (%p517) target = $region36
        $region35: #{tpu_custom_call.1} parent=11 // pred_region
          %s521 = ssub.s32 32, 32
          %522 = vsyncadd [#allocation9], %s521
          %s523 = sshll.u32 [#allocation8], 4
          %s524 = int_to_ptr.vmem [resolvable:$true] %s523
          %529 = dma.hbm_to_vmem [thread:$0]  %s6, 32, %s524, [#allocation9], 16, 16, 1
        $region36: #{tpu_custom_call.1} parent=11 // pred_fallthru
          _
        // Predicated region
        $region37: #{tpu_custom_call.1} parent=11 // pred_check
          %p530 = pneg %p204
        $region38: #{tpu_custom_call.1} parent=11 // pred_check_branch
          %532 = sbr.rel (%p530) target = $region40
        $region39: #{tpu_custom_call.1} parent=11 // pred_region
          _
        $region40: #{tpu_custom_call.1} parent=11 // pred_fallthru
          _
        // Predicated region
        $region41: #{tpu_custom_call.1} parent=11 // pred_check
          %p533 = pneg %p225
        $region42: #{tpu_custom_call.1} parent=11 // pred_check_branch
          %535 = sbr.rel (%p533) target = $region44
        $region43: #{tpu_custom_call.1} parent=11 // pred_region
          %s537 = ssub.s32 32, 32
          %538 = vsyncadd [#allocation9], %s537
          %s539 = sshll.u32 [#allocation10], 4
          %s540 = int_to_ptr.vmem [resolvable:$true] %s539
          %545 = dma.hbm_to_vmem [thread:$0]  %s8, 32, %s540, [#allocation9], 16, 16, 1
        $region44: #{tpu_custom_call.1} parent=11 // pred_fallthru
          _
        // Predicated region
        $region45: #{tpu_custom_call.1} parent=11 // pred_check
          %p546 = pneg %p246
        $region46: #{tpu_custom_call.1} parent=11 // pred_check_branch
          %548 = sbr.rel (%p546) target = $region48
        $region47: #{tpu_custom_call.1} parent=11 // pred_region
          _
        $region48: #{tpu_custom_call.1} parent=11 // pred_fallthru
          _
        // Predicated region
        $region49: #{tpu_custom_call.1} parent=11 // pred_check
          %p549 = pneg %p267
        $region50: #{tpu_custom_call.1} parent=11 // pred_check_branch
          %551 = sbr.rel (%p549) target = $region52
        $region51: #{tpu_custom_call.1} parent=11 // pred_region
          _
        $region52: #{tpu_custom_call.1} parent=11 // pred_fallthru
          _
        // Predicated region
        $region53: #{tpu_custom_call.1} parent=11 // pred_check
          %p552 = pneg %p288
        $region54: #{tpu_custom_call.1} parent=11 // pred_check_branch
          %554 = sbr.rel (%p552) target = $region56
        $region55: #{tpu_custom_call.1} parent=11 // pred_region
          _
        $region56: #{tpu_custom_call.1} parent=11 // pred_fallthru
          _
        // Predicated region
        $region57: #{tpu_custom_call.1} parent=11 // pred_check
          %p555 = pneg %p309
        $region58: #{tpu_custom_call.1} parent=11 // pred_check_branch
          %557 = sbr.rel (%p555) target = $region60
        $region59: #{tpu_custom_call.1} parent=11 // pred_region
          _
        $region60: #{tpu_custom_call.1} parent=11 // pred_fallthru
          _
        // Predicated region
        $region61: #{tpu_custom_call.1} parent=11 // pred_check
          %p558 = pneg %p330
        $region62: #{tpu_custom_call.1} parent=11 // pred_check_branch
          %560 = sbr.rel (%p558) target = $region64
        $region63: #{tpu_custom_call.1} parent=11 // pred_region
          _
        $region64: #{tpu_custom_call.1} parent=11 // pred_fallthru
          _
        // Predicated region
        $region65: #{tpu_custom_call.1} parent=11 // pred_check
          %p561 = pneg %p351
        $region66: #{tpu_custom_call.1} parent=11 // pred_check_branch
          %563 = sbr.rel (%p561) target = $region68
        $region67: #{tpu_custom_call.1} parent=11 // pred_region
          _
        $region68: #{tpu_custom_call.1} parent=11 // pred_fallthru
          _
        // Predicated region
        $region69: #{tpu_custom_call.1} parent=11 // pred_check
          %p564 = pneg %p372
        $region70: #{tpu_custom_call.1} parent=11 // pred_check_branch
          %566 = sbr.rel (%p564) target = $region72
        $region71: #{tpu_custom_call.1} parent=11 // pred_region
          _
        $region72: #{tpu_custom_call.1} parent=11 // pred_fallthru
          _
        // Predicated region
        $region73: #{tpu_custom_call.1} parent=11 // pred_check
          %p567 = pneg %p393
        $region74: #{tpu_custom_call.1} parent=11 // pred_check_branch
          %569 = sbr.rel (%p567) target = $region76
        $region75: #{tpu_custom_call.1} parent=11 // pred_region
          _
        $region76: #{tpu_custom_call.1} parent=11 // pred_fallthru
          _
        // Predicated region
        $region77: #{tpu_custom_call.1} parent=11 // pred_check
          %p570 = pneg %p414
        $region78: #{tpu_custom_call.1} parent=11 // pred_check_branch
          %572 = sbr.rel (%p570) target = $region80
        $region79: #{tpu_custom_call.1} parent=11 // pred_region
          _
        $region80: #{tpu_custom_call.1} parent=11 // pred_fallthru
          _
        // Predicated region
        $region81: #{tpu_custom_call.1} parent=11 // pred_check
          %p573 = pneg %p435
        $region82: #{tpu_custom_call.1} parent=11 // pred_check_branch
          %575 = sbr.rel (%p573) target = $region84
        $region83: #{tpu_custom_call.1} parent=11 // pred_region
          _
        $region84: #{tpu_custom_call.1} parent=11 // pred_fallthru
          _
      $region12: #{tpu_custom_call.1} parent=5 // pred_fallthru
        _
      %p576 = scmp.lt.s32.totalorder %s31, 2
      // Predicated region
      $region85: #{tpu_custom_call.1} parent=5 // pred_check
        %p577 = pneg %p576
      $region86: #{tpu_custom_call.1} parent=5 // pred_check_branch
        %579 = sbr.rel (%p577) target = $region88
      $region87: #{tpu_custom_call.1} parent=5 // pred_region
        // Predicated region
        $region89: #{tpu_custom_call.1} parent=87 // pred_check
          %p580 = pneg %p51
        $region90: #{tpu_custom_call.1} parent=87 // pred_check_branch
          %582 = sbr.rel (%p580) target = $region92
        $region91: #{tpu_custom_call.1} parent=87 // pred_region
          %p583 = scmp.lt.s32.totalorder %s31, 1
          %s584 = scalar_select %p583, %s31, 1
          %s585 = smul.addr %s584, 2
          %s586 = smul.addr %s585, 8
          %s587 = scalar_lea.vmem %s0, %s586
        $region92: #{tpu_custom_call.1} parent=87 // pred_fallthru
          _
      $region88: #{tpu_custom_call.1} parent=5 // pred_fallthru
        _
      %p588 = scmp.le.s32.totalorder 1, %s31
      %p589 = scmp.lt.s32.totalorder %s31, 3
      %p590 = pnand %p588, %p589
      %p591 = pneg %p590
      // Predicated region
      $region93: #{tpu_custom_call.1} parent=5 // pred_check
        _
      $region94: #{tpu_custom_call.1} parent=5 // pred_check_branch
        %593 = sbr.rel (%p590) target = $region96
      $region95: #{tpu_custom_call.1} parent=5 // pred_region
        %s594 = ssub.s32 %s31, 1
        // Predicated region
        $region97: #{tpu_custom_call.1} parent=95 // pred_check
          %p595 = pneg %p99
        $region98: #{tpu_custom_call.1} parent=95 // pred_check_branch
          %597 = sbr.rel (%p595) target = $region100
        $region99: #{tpu_custom_call.1} parent=95 // pred_region
          %598 = dma.done [#allocation3], 16
        $region100: #{tpu_custom_call.1} parent=95 // pred_fallthru
          _
        // Predicated region
        $region101: #{tpu_custom_call.1} parent=95 // pred_check
          %p599 = pneg %p120
        $region102: #{tpu_custom_call.1} parent=95 // pred_check_branch
          %601 = sbr.rel (%p599) target = $region104
        $region103: #{tpu_custom_call.1} parent=95 // pred_region
          %602 = dma.done [#allocation6], 16
        $region104: #{tpu_custom_call.1} parent=95 // pred_fallthru
          _
        // Predicated region
        $region105: #{tpu_custom_call.1} parent=95 // pred_check
          %p603 = pneg %p141
        $region106: #{tpu_custom_call.1} parent=95 // pred_check_branch
          %605 = sbr.rel (%p603) target = $region108
        $region107: #{tpu_custom_call.1} parent=95 // pred_region
          %606 = dma.done [#allocation6], 256
        $region108: #{tpu_custom_call.1} parent=95 // pred_fallthru
          _
        // Predicated region
        $region109: #{tpu_custom_call.1} parent=95 // pred_check
          %p607 = pneg %p183
        $region110: #{tpu_custom_call.1} parent=95 // pred_check_branch
          %609 = sbr.rel (%p607) target = $region112
        $region111: #{tpu_custom_call.1} parent=95 // pred_region
          %610 = dma.done [#allocation9], 32
        $region112: #{tpu_custom_call.1} parent=95 // pred_fallthru
          _
        // Predicated region
        $region113: #{tpu_custom_call.1} parent=95 // pred_check
          %p611 = pneg %p225
        $region114: #{tpu_custom_call.1} parent=95 // pred_check_branch
          %613 = sbr.rel (%p611) target = $region116
        $region115: #{tpu_custom_call.1} parent=95 // pred_region
          %614 = dma.done [#allocation9], 32
        $region116: #{tpu_custom_call.1} parent=95 // pred_fallthru
          _
        %p615 = scmp.lt.s32.totalorder %s36, 1
        %s616 = scalar_select %p615, %s36, 1
        %s617 = smul.addr %s616, 2
        %s618 = smul.addr %s617, 8
        %s619 = scalar_lea.vmem %s0, %s618
        %p620 = pneg %p57
        %p621 = pneg %p54
        %p622 = pneg %p78
        %p623 = pneg %p75
        %p624 = pneg %p99
        %p625 = pneg %p96
        %p626 = pneg %p120
        %p627 = pneg %p117
        %p628 = pneg %p141
        %p629 = pneg %p138
        %p630 = pneg %p162
        %p631 = pneg %p159
        %p632 = pneg %p183
        %p633 = pneg %p180
        %p634 = pneg %p204
        %p635 = pneg %p201
        %p636 = pneg %p225
        %p637 = pneg %p222
        %p638 = pneg %p246
        %p639 = pneg %p243
        %p640 = pneg %p267
        %p641 = pneg %p264
        %p642 = pneg %p288
        %p643 = pneg %p285
        %p644 = pneg %p309
        %p645 = pneg %p306
        %p646 = pneg %p330
        %p647 = pneg %p327
        %p648 = pneg %p351
        %p649 = pneg %p348
        %p650 = pneg %p372
        %p651 = pneg %p369
        %p652 = pneg %p393
        %p653 = pneg %p390
        %p654 = pneg %p414
        %p655 = pneg %p411
        %p656 = pneg %p435
        %p657 = pneg %p432
        %p658 = pneg %p461
        %p659 = pneg %p458
        %s660 = sand.u32 %s448, 1
        %s661 = scalar_lea.sflag [#allocation4], %s660
        %s662 = sand.u32 %s448, 1
        %s663 = scalar_lea.vmem [#allocation11], %s662
        %p664 = scmp.lt.s32.totalorder %s36, 1
        %s665 = scalar_select %p664, %s36, 1
        %s666 = smul.addr %s665, 2
        %s667 = smul.addr %s666, 8
        %s668 = scalar_lea.vmem %s0, %s667
        %v670 = vld [vmem:[%s668] sm:$0xff]
        %v671 = vld [vmem:[%s668 + $0x8] sm:$0xff]
        %v672 = vld [vmem:[%s1] sm:$0xf]
        %v673 = vld [vmem:[%s1 + $0x4] sm:$0xf]
        %v674 = vld [vmem:[%s1 + $0x8] sm:$0xf]
        %v675 = vld [vmem:[%s1 + $0xc] sm:$0xf]
        %v676 = vld [vmem:[%s1 + $0x10] sm:$0xf]
        %v677 = vld [vmem:[%s1 + $0x14] sm:$0xf]
        %v678 = vld [vmem:[%s1 + $0x18] sm:$0xf]
        %v679 = vld [vmem:[%s1 + $0x1c] sm:$0xf]
        %v680 = vpack.c.bf16 %v671, %v670
        %v681 = vld [vmem:[#allocation2] sm:$0x1]
        %v683 = vlaneseq
        %v684 = vshrl.u32 %v683, 7
        %v685 = vsub.s32 0, %v684
        %v686 = vrot.slane %v681, %v685
        %v696 = vunpack.c.l.b16 %v672
        %v697 = vunpack.c.l.b16 %v673
        %v698 = vunpack.c.l.b16 %v674
        %v699 = vunpack.c.l.b16 %v675
        %v700 = vunpack.c.l.b16 %v676
        %v701 = vunpack.c.l.b16 %v677
        %v702 = vunpack.c.l.b16 %v678
        %v703 = vunpack.c.l.b16 %v679
        %v704 = vpack.c.b16 %v697, %v696
        %v705 = vpack.c.b16 %v699, %v698
        %v706 = vpack.c.b16 %v701, %v700
        %v707 = vpack.c.b16 %v703, %v702
        %vm712 = vcmask 523264
        %v714 = vsel %vm712, %v680, 0
        %716 = vmatprep.subr.bf16.mxu0 0
        %717 = vmatpush1.bf16.msra.mxu0 %v704
        %718 = vmatprep.subr.bf16.mxu0 0
        %719 = vmatpush1.bf16.msra.mxu0 %v705
        %720 = vmatprep.subr.bf16.mxu0 0
        %721 = vmatpush1.bf16.msra.mxu0 %v706
        %722 = vmatprep.subr.bf16.mxu0 0
        %723 = vmatpush1.bf16.msra.mxu0 %v707
        %724 = vmatprep.subr.bf16.mxu0 0
        %725 = vmatpush1.bf16.msra.mxu0 0
        %726 = vmatprep.subr.bf16.mxu0 0
        %727 = vmatpush1.bf16.msra.mxu0 0
        %728 = vmatprep.subr.bf16.mxu0 0
        %729 = vmatpush1.bf16.msra.mxu0 0
        %730 = vmatprep.subr.bf16.mxu0 0
        %731 = vmatpush1.bf16.msra.mxu0 0
        %732 = vmatprep.subr.bf16.mxu0 0
        %733 = vmatpush1.bf16.msra.mxu0 0
        %734 = vmatprep.subr.bf16.mxu0 0
        %735 = vmatpush1.bf16.msra.mxu0 0
        %736 = vmatprep.subr.bf16.mxu0 0
        %737 = vmatpush1.bf16.msra.mxu0 0
        %738 = vmatprep.subr.bf16.mxu0 0
        %739 = vmatpush1.bf16.msra.mxu0 0
        %740 = vmatprep.subr.bf16.mxu0 0
        %741 = vmatpush1.bf16.msra.mxu0 0
        %742 = vmatprep.subr.bf16.mxu0 0
        %743 = vmatpush1.bf16.msra.mxu0 0
        %744 = vmatprep.subr.bf16.mxu0 0
        %745 = vmatpush1.bf16.msra.mxu0 0
        %746 = vmatprep.subr.bf16.mxu0 0
        %747 = vmatpush1.bf16.msra.mxu0 0
        %748 = vmatprep.mubr.bf16.mxu0 0
        %749 = vmatmul.mubr.bf16.gmra.mrb[0].mxu0 %v714
        %v750 = vpop.f32.mrb[0].mxu0
        %v751 = vadd.f32 %v686, %v750
        %v752 = vpop.f32.mrb[0].mxu0
        %v753 = vpop.f32.mrb[0].mxu0
        %v754 = vadd.f32 %v686, %v753
        %v755 = vpop.f32.mrb[0].mxu0
        %756 = vdwg.mxu0
        %v757 = vld [vmem:[#allocation7] sm:$0xff]
        %v758 = vld [vmem:[#allocation7 + $0x8] sm:$0xff]
        %v759 = vadd.f32 %v751, %v757
        %v760 = vadd.f32 %v754, %v758
        %v761 = vld [vmem:[#allocation5] sm:$0x1]
        %vm764 = vcmask 1040384
        %v765 = vrot.slane %v759, 7
        %v766 = vrot.slane %v760, 7
        %v767 = vsel %vm764, %v765, %v766
        %v771 = vsel %vm764, %v761, %v765
        %v772 = vld [vmem:[%s5] sm:$0x1]
        %v773 = vld [vmem:[#allocation8] sm:$0x1]
        %vm774 = vcmask 261120
        %v775 = vsel %vm774, %v771, 0.0
        %776 = vadd.xlane.f32.xlu0 %v775
        %v777 = vpop.xlane.xlu0 %776
        %v778 = vsel %vm774, %v767, 0.0
        %779 = vadd.xlane.f32.xlu0 %v778
        %v780 = vpop.xlane.xlu0 %779
        %vm781 = vcmask 253952
        %v782 = vsel %vm781, %v766, 0.0
        %783 = vadd.xlane.f32.xlu0 %v782
        %v784 = vpop.xlane.xlu0 %783
        %v785 = vrcp.pop 32.0
        %v786 = vmul.f32 %v777, %v785
        %v787 = vmul.f32 %v780, %v785
        %v788 = vmul.f32 %v784, %v785
        %v789 = vsub.f32 %v771, %v786
        %v790 = vsub.f32 %v767, %v787
        %v791 = vsub.f32 %v766, %v788
        %v792 = vmul.f32 %v789, %v789
        %v793 = vmul.f32 %v790, %v790
        %v794 = vmul.f32 %v791, %v791
        %v795 = vsel %vm774, %v792, 0.0
        %796 = vadd.xlane.f32.xlu0 %v795
        %v797 = vpop.xlane.xlu0 %796
        %v798 = vsel %vm774, %v793, 0.0
        %799 = vadd.xlane.f32.xlu0 %v798
        %v800 = vpop.xlane.xlu0 %799
        %v801 = vsel %vm781, %v794, 0.0
        %802 = vadd.xlane.f32.xlu0 %v801
        %v803 = vpop.xlane.xlu0 %802
        %v804 = vmul.f32 %v797, %v785
        %v805 = vmul.f32 %v800, %v785
        %v806 = vmul.f32 %v803, %v785
        %v807 = vadd.f32 %v804, 1e-05
        %v808 = vadd.f32 %v805, 1e-05
        %v809 = vadd.f32 %v806, 1e-05
        %v810 = vrsqrt.pop %v807
        %v811 = vrsqrt.pop %v808
        %v812 = vrsqrt.pop %v809
        %v813 = vmul.f32 %v789, %v810
        %v814 = vmul.f32 %v790, %v811
        %v815 = vmul.f32 %v791, %v812
        %v817 = vlaneseq
        %v818 = vshrl.u32 %v817, 7
        %v819 = vsub.s32 0, %v818
        %v820 = vrot.slane %v772, %v819
        %v822 = vmul.f32 %v813, %v820
        %v823 = vmul.f32 %v814, %v820
        %v824 = vmul.f32 %v815, %v820
        %v826 = vlaneseq
        %v827 = vshrl.u32 %v826, 7
        %v828 = vsub.s32 0, %v827
        %v829 = vrot.slane %v773, %v828
        %v831 = vadd.f32 %v822, %v829
        %v832 = vadd.f32 %v823, %v829
        %v833 = vadd.f32 %v824, %v829
        %v834 = vld [vmem:[%s7] sm:$0xf]
        %v835 = vld [vmem:[%s7 + $0x4] sm:$0xf]
        %v836 = vld [vmem:[%s7 + $0x8] sm:$0xf]
        %v837 = vld [vmem:[%s7 + $0xc] sm:$0xf]
        %v838 = vpack.c.bf16 %v832, %v831
        %v839 = vpack.c.bf16 %v833, %v833
        %v840 = vld [vmem:[#allocation10] sm:$0x1]
        %v842 = vlaneseq
        %v843 = vshrl.u32 %v842, 7
        %v844 = vsub.s32 0, %v843
        %v845 = vrot.slane %v840, %v844
        %v851 = vunpack.c.l.b16 %v834
        %v852 = vunpack.c.l.b16 %v835
        %v853 = vunpack.c.l.b16 %v836
        %v854 = vunpack.c.l.b16 %v837
        %v855 = vpack.c.b16 %v852, %v851
        %v856 = vpack.c.b16 %v854, %v853
        %v860 = vsel %vm774, %v838, 0
        %v863 = vsel %vm774, %v839, 0
        %865 = vmatprep.subr.bf16.mxu0 0
        %866 = vmatpush1.bf16.msra.mxu0 %v855
        %867 = vmatprep.subr.bf16.mxu0 0
        %868 = vmatpush1.bf16.msra.mxu0 %v856
        %869 = vmatprep.subr.bf16.mxu0 0
        %870 = vmatpush1.bf16.msra.mxu0 0
        %871 = vmatprep.subr.bf16.mxu0 0
        %872 = vmatpush1.bf16.msra.mxu0 0
        %873 = vmatprep.subr.bf16.mxu0 0
        %874 = vmatpush1.bf16.msra.mxu0 0
        %875 = vmatprep.subr.bf16.mxu0 0
        %876 = vmatpush1.bf16.msra.mxu0 0
        %877 = vmatprep.subr.bf16.mxu0 0
        %878 = vmatpush1.bf16.msra.mxu0 0
        %879 = vmatprep.subr.bf16.mxu0 0
        %880 = vmatpush1.bf16.msra.mxu0 0
        %881 = vmatprep.subr.bf16.mxu0 0
        %882 = vmatpush1.bf16.msra.mxu0 0
        %883 = vmatprep.subr.bf16.mxu0 0
        %884 = vmatpush1.bf16.msra.mxu0 0
        %885 = vmatprep.subr.bf16.mxu0 0
        %886 = vmatpush1.bf16.msra.mxu0 0
        %887 = vmatprep.subr.bf16.mxu0 0
        %888 = vmatpush1.bf16.msra.mxu0 0
        %889 = vmatprep.subr.bf16.mxu0 0
        %890 = vmatpush1.bf16.msra.mxu0 0
        %891 = vmatprep.subr.bf16.mxu0 0
        %892 = vmatpush1.bf16.msra.mxu0 0
        %893 = vmatprep.subr.bf16.mxu0 0
        %894 = vmatpush1.bf16.msra.mxu0 0
        %895 = vmatprep.subr.bf16.mxu0 0
        %896 = vmatpush1.bf16.msra.mxu0 0
        %897 = vmatprep.mubr.bf16.mxu0 0
        %898 = vmatmul.mubr.bf16.gmra.mrb[0].mxu0 %v860
        %v899 = vpop.f32.mrb[0].mxu0
        %v900 = vadd.f32 %v845, %v899
        %v901 = vpop.f32.mrb[0].mxu0
        %v902 = vpop.f32.mrb[0].mxu0
        %v903 = vadd.f32 %v845, %v902
        %v904 = vpop.f32.mrb[0].mxu0
        %905 = vmatprep.mubr.bf16.mxu0 0
        %906 = vmatmul.mubr.bf16.gmra.mrb[0].mxu0 %v863
        %v907 = vpop.f32.mrb[0].mxu0
        %v908 = vadd.f32 %v845, %v907
        %v909 = vpop.f32.mrb[0].mxu0
        %v910 = vpop.f32.mrb[0].mxu0
        %v911 = vpop.f32.mrb[0].mxu0
        %912 = vdwg.mxu0
        %v913 = vpack.c.bf16 %v903, %v900
        %v914 = vpack.c.bf16 %v908, %v908
        %917 = vrot.lane.b32.xlu0 %v913, 120
        %v918 = vpop.permute.xlu0 %917
        %919 = vrot.lane.b32.xlu0 %v914, 120
        %v920 = vpop.permute.xlu0 %919
        %921 = vrot.lane.b32.xlu0 %v913, 112
        %v922 = vpop.permute.xlu0 %921
        %923 = vrot.lane.b32.xlu0 %v914, 112
        %v924 = vpop.permute.xlu0 %923
        %925 = vrot.lane.b32.xlu0 %v913, 104
        %v926 = vpop.permute.xlu0 %925
        %927 = vrot.lane.b32.xlu0 %v914, 104
        %v928 = vpop.permute.xlu0 %927
        %929 = vrot.lane.b32.xlu0 %v913, 96
        %v930 = vpop.permute.xlu0 %929
        %931 = vrot.lane.b32.xlu0 %v914, 96
        %v932 = vpop.permute.xlu0 %931
        %vm933 = vcmask 64512
        %v935 = vsel %vm933, %v913, 0
        %v938 = vsel %vm933, %v914, 0
        %v941 = vsel %vm933, %v930, 0
        %v944 = vsel %vm933, %v932, 0
        %946 = vmatprep.subr.bf16.mxu0 0
        %947 = vmatpush1.bf16.xpose.msra.mxu0 %v941
        %948 = vmatprep.subr.bf16.mxu0 0
        %949 = vmatpush1.bf16.xpose.msra.mxu0 %v944
        %950 = vmatprep.subr.bf16.mxu0 0
        %951 = vmatpush1.bf16.xpose.msra.mxu0 0
        %952 = vmatprep.subr.bf16.mxu0 0
        %953 = vmatpush1.bf16.xpose.msra.mxu0 0
        %954 = vmatprep.subr.bf16.mxu0 0
        %955 = vmatpush1.bf16.xpose.msra.mxu0 0
        %956 = vmatprep.subr.bf16.mxu0 0
        %957 = vmatpush1.bf16.xpose.msra.mxu0 0
        %958 = vmatprep.subr.bf16.mxu0 0
        %959 = vmatpush1.bf16.xpose.msra.mxu0 0
        %960 = vmatprep.subr.bf16.mxu0 0
        %961 = vmatpush1.bf16.xpose.msra.mxu0 0
        %962 = vmatprep.subr.bf16.mxu0 0
        %963 = vmatpush1.bf16.xpose.msra.mxu0 0
        %964 = vmatprep.subr.bf16.mxu0 0
        %965 = vmatpush1.bf16.xpose.msra.mxu0 0
        %966 = vmatprep.subr.bf16.mxu0 0
        %967 = vmatpush1.bf16.xpose.msra.mxu0 0
        %968 = vmatprep.subr.bf16.mxu0 0
        %969 = vmatpush1.bf16.xpose.msra.mxu0 0
        %970 = vmatprep.subr.bf16.mxu0 0
        %971 = vmatpush1.bf16.xpose.msra.mxu0 0
        %972 = vmatprep.subr.bf16.mxu0 0
        %973 = vmatpush1.bf16.xpose.msra.mxu0 0
        %974 = vmatprep.subr.bf16.mxu0 0
        %975 = vmatpush1.bf16.xpose.msra.mxu0 0
        %976 = vmatprep.subr.bf16.mxu0 0
        %977 = vmatpush1.bf16.xpose.msra.mxu0 0
        %978 = vmatprep.mubr.bf16.mxu0 0
        %979 = vmatmul.mubr.bf16.gmra.mrb[0].mxu0 %v935
        %v980 = vpop.f32.mrb[0].mxu0
        %v981 = vadd.f32 0.0, %v980
        %v982 = vpop.f32.mrb[0].mxu0
        %v983 = vpop.f32.mrb[0].mxu0
        %v984 = vadd.f32 0.0, %v983
        %v985 = vpop.f32.mrb[0].mxu0
        %986 = vmatprep.mubr.bf16.mxu0 0
        %987 = vmatmul.mubr.bf16.gmra.mrb[0].mxu0 %v938
        %v988 = vpop.f32.mrb[0].mxu0
        %v989 = vadd.f32 0.0, %v988
        %v990 = vpop.f32.mrb[0].mxu0
        %v991 = vpop.f32.mrb[0].mxu0
        %v992 = vpop.f32.mrb[0].mxu0
        %993 = vdwg.mxu0
        %994 = vrot.lane.b32.xlu0 %v918, 96
        %v995 = vpop.permute.xlu0 %994
        %996 = vrot.lane.b32.xlu0 %v920, 96
        %v997 = vpop.permute.xlu0 %996
        %v999 = vsel %vm933, %v918, 0
        %v1002 = vsel %vm933, %v920, 0
        %v1005 = vsel %vm933, %v995, 0
        %v1008 = vsel %vm933, %v997, 0
        %1010 = vmatprep.subr.bf16.mxu0 0
        %1011 = vmatpush1.bf16.xpose.msra.mxu0 %v1005
        %1012 = vmatprep.subr.bf16.mxu0 0
        %1013 = vmatpush1.bf16.xpose.msra.mxu0 %v1008
        %1014 = vmatprep.subr.bf16.mxu0 0
        %1015 = vmatpush1.bf16.xpose.msra.mxu0 0
        %1016 = vmatprep.subr.bf16.mxu0 0
        %1017 = vmatpush1.bf16.xpose.msra.mxu0 0
        %1018 = vmatprep.subr.bf16.mxu0 0
        %1019 = vmatpush1.bf16.xpose.msra.mxu0 0
        %1020 = vmatprep.subr.bf16.mxu0 0
        %1021 = vmatpush1.bf16.xpose.msra.mxu0 0
        %1022 = vmatprep.subr.bf16.mxu0 0
        %1023 = vmatpush1.bf16.xpose.msra.mxu0 0
        %1024 = vmatprep.subr.bf16.mxu0 0
        %1025 = vmatpush1.bf16.xpose.msra.mxu0 0
        %1026 = vmatprep.subr.bf16.mxu0 0
        %1027 = vmatpush1.bf16.xpose.msra.mxu0 0
        %1028 = vmatprep.subr.bf16.mxu0 0
        %1029 = vmatpush1.bf16.xpose.msra.mxu0 0
        %1030 = vmatprep.subr.bf16.mxu0 0
        %1031 = vmatpush1.bf16.xpose.msra.mxu0 0
        %1032 = vmatprep.subr.bf16.mxu0 0
        %1033 = vmatpush1.bf16.xpose.msra.mxu0 0
        %1034 = vmatprep.subr.bf16.mxu0 0
        %1035 = vmatpush1.bf16.xpose.msra.mxu0 0
        %1036 = vmatprep.subr.bf16.mxu0 0
        %1037 = vmatpush1.bf16.xpose.msra.mxu0 0
        %1038 = vmatprep.subr.bf16.mxu0 0
        %1039 = vmatpush1.bf16.xpose.msra.mxu0 0
        %1040 = vmatprep.subr.bf16.mxu0 0
        %1041 = vmatpush1.bf16.xpose.msra.mxu0 0
        %1042 = vmatprep.mubr.bf16.mxu0 0
        %1043 = vmatmul.mubr.bf16.gmra.mrb[0].mxu0 %v999
        %v1044 = vpop.f32.mrb[0].mxu0
        %v1045 = vadd.f32 0.0, %v1044
        %v1046 = vpop.f32.mrb[0].mxu0
        %v1047 = vpop.f32.mrb[0].mxu0
        %v1048 = vadd.f32 0.0, %v1047
        %v1049 = vpop.f32.mrb[0].mxu0
        %1050 = vmatprep.mubr.bf16.mxu0 0
        %1051 = vmatmul.mubr.bf16.gmra.mrb[0].mxu0 %v1002
        %v1052 = vpop.f32.mrb[0].mxu0
        %v1053 = vadd.f32 0.0, %v1052
        %v1054 = vpop.f32.mrb[0].mxu0
        %v1055 = vpop.f32.mrb[0].mxu0
        %v1056 = vpop.f32.mrb[0].mxu0
        %1057 = vdwg.mxu0
        %1058 = vrot.lane.b32.xlu0 %v922, 96
        %v1059 = vpop.permute.xlu0 %1058
        %1060 = vrot.lane.b32.xlu0 %v924, 96
        %v1061 = vpop.permute.xlu0 %1060
        %v1063 = vsel %vm933, %v922, 0
        %v1066 = vsel %vm933, %v924, 0
        %v1069 = vsel %vm933, %v1059, 0
        %v1072 = vsel %vm933, %v1061, 0
        %1074 = vmatprep.subr.bf16.mxu0 0
        %1075 = vmatpush1.bf16.xpose.msra.mxu0 %v1069
        %1076 = vmatprep.subr.bf16.mxu0 0
        %1077 = vmatpush1.bf16.xpose.msra.mxu0 %v1072
        %1078 = vmatprep.subr.bf16.mxu0 0
        %1079 = vmatpush1.bf16.xpose.msra.mxu0 0
        %1080 = vmatprep.subr.bf16.mxu0 0
        %1081 = vmatpush1.bf16.xpose.msra.mxu0 0
        %1082 = vmatprep.subr.bf16.mxu0 0
        %1083 = vmatpush1.bf16.xpose.msra.mxu0 0
        %1084 = vmatprep.subr.bf16.mxu0 0
        %1085 = vmatpush1.bf16.xpose.msra.mxu0 0
        %1086 = vmatprep.subr.bf16.mxu0 0
        %1087 = vmatpush1.bf16.xpose.msra.mxu0 0
        %1088 = vmatprep.subr.bf16.mxu0 0
        %1089 = vmatpush1.bf16.xpose.msra.mxu0 0
        %1090 = vmatprep.subr.bf16.mxu0 0
        %1091 = vmatpush1.bf16.xpose.msra.mxu0 0
        %1092 = vmatprep.subr.bf16.mxu0 0
        %1093 = vmatpush1.bf16.xpose.msra.mxu0 0
        %1094 = vmatprep.subr.bf16.mxu0 0
        %1095 = vmatpush1.bf16.xpose.msra.mxu0 0
        %1096 = vmatprep.subr.bf16.mxu0 0
        %1097 = vmatpush1.bf16.xpose.msra.mxu0 0
        %1098 = vmatprep.subr.bf16.mxu0 0
        %1099 = vmatpush1.bf16.xpose.msra.mxu0 0
        %1100 = vmatprep.subr.bf16.mxu0 0
        %1101 = vmatpush1.bf16.xpose.msra.mxu0 0
        %1102 = vmatprep.subr.bf16.mxu0 0
        %1103 = vmatpush1.bf16.xpose.msra.mxu0 0
        %1104 = vmatprep.subr.bf16.mxu0 0
        %1105 = vmatpush1.bf16.xpose.msra.mxu0 0
        %1106 = vmatprep.mubr.bf16.mxu0 0
        %1107 = vmatmul.mubr.bf16.gmra.mrb[0].mxu0 %v1063
        %v1108 = vpop.f32.mrb[0].mxu0
        %v1109 = vadd.f32 0.0, %v1108
        %v1110 = vpop.f32.mrb[0].mxu0
        %v1111 = vpop.f32.mrb[0].mxu0
        %v1112 = vadd.f32 0.0, %v1111
        %v1113 = vpop.f32.mrb[0].mxu0
        %1114 = vmatprep.mubr.bf16.mxu0 0
        %1115 = vmatmul.mubr.bf16.gmra.mrb[0].mxu0 %v1066
        %v1116 = vpop.f32.mrb[0].mxu0
        %v1117 = vadd.f32 0.0, %v1116
        %v1118 = vpop.f32.mrb[0].mxu0
        %v1119 = vpop.f32.mrb[0].mxu0
        %v1120 = vpop.f32.mrb[0].mxu0
        %1121 = vdwg.mxu0
        %1122 = vrot.lane.b32.xlu0 %v926, 96
        %v1123 = vpop.permute.xlu0 %1122
        %1124 = vrot.lane.b32.xlu0 %v928, 96
        %v1125 = vpop.permute.xlu0 %1124
        %v1127 = vsel %vm933, %v926, 0
        %v1130 = vsel %vm933, %v928, 0
        %v1133 = vsel %vm933, %v1123, 0
        %v1136 = vsel %vm933, %v1125, 0
        %1138 = vmatprep.subr.bf16.mxu0 0
        %1139 = vmatpush1.bf16.xpose.msra.mxu0 %v1133
        %1140 = vmatprep.subr.bf16.mxu0 0
        %1141 = vmatpush1.bf16.xpose.msra.mxu0 %v1136
        %1142 = vmatprep.subr.bf16.mxu0 0
        %1143 = vmatpush1.bf16.xpose.msra.mxu0 0
        %1144 = vmatprep.subr.bf16.mxu0 0
        %1145 = vmatpush1.bf16.xpose.msra.mxu0 0
        %1146 = vmatprep.subr.bf16.mxu0 0
        %1147 = vmatpush1.bf16.xpose.msra.mxu0 0
        %1148 = vmatprep.subr.bf16.mxu0 0
        %1149 = vmatpush1.bf16.xpose.msra.mxu0 0
        %1150 = vmatprep.subr.bf16.mxu0 0
        %1151 = vmatpush1.bf16.xpose.msra.mxu0 0
        %1152 = vmatprep.subr.bf16.mxu0 0
        %1153 = vmatpush1.bf16.xpose.msra.mxu0 0
        %1154 = vmatprep.subr.bf16.mxu0 0
        %1155 = vmatpush1.bf16.xpose.msra.mxu0 0
        %1156 = vmatprep.subr.bf16.mxu0 0
        %1157 = vmatpush1.bf16.xpose.msra.mxu0 0
        %1158 = vmatprep.subr.bf16.mxu0 0
        %1159 = vmatpush1.bf16.xpose.msra.mxu0 0
        %1160 = vmatprep.subr.bf16.mxu0 0
        %1161 = vmatpush1.bf16.xpose.msra.mxu0 0
        %1162 = vmatprep.subr.bf16.mxu0 0
        %1163 = vmatpush1.bf16.xpose.msra.mxu0 0
        %1164 = vmatprep.subr.bf16.mxu0 0
        %1165 = vmatpush1.bf16.xpose.msra.mxu0 0
        %1166 = vmatprep.subr.bf16.mxu0 0
        %1167 = vmatpush1.bf16.xpose.msra.mxu0 0
        %1168 = vmatprep.subr.bf16.mxu0 0
        %1169 = vmatpush1.bf16.xpose.msra.mxu0 0
        %1170 = vmatprep.mubr.bf16.mxu0 0
        %1171 = vmatmul.mubr.bf16.gmra.mrb[0].mxu0 %v1127
        %v1172 = vpop.f32.mrb[0].mxu0
        %v1173 = vadd.f32 0.0, %v1172
        %v1174 = vpop.f32.mrb[0].mxu0
        %v1175 = vpop.f32.mrb[0].mxu0
        %v1176 = vadd.f32 0.0, %v1175
        %v1177 = vpop.f32.mrb[0].mxu0
        %1178 = vmatprep.mubr.bf16.mxu0 0
        %1179 = vmatmul.mubr.bf16.gmra.mrb[0].mxu0 %v1130
        %v1180 = vpop.f32.mrb[0].mxu0
        %v1181 = vadd.f32 0.0, %v1180
        %v1182 = vpop.f32.mrb[0].mxu0
        %v1183 = vpop.f32.mrb[0].mxu0
        %v1184 = vpop.f32.mrb[0].mxu0
        %1185 = vdwg.mxu0
        %v1186 = vmul.f32 %v981, 0.35355338
        %v1187 = vmul.f32 %v984, 0.35355338
        %v1188 = vmul.f32 %v989, 0.35355338
        %v1189 = vmul.f32 %v1045, 0.35355338
        %v1190 = vmul.f32 %v1048, 0.35355338
        %v1191 = vmul.f32 %v1053, 0.35355338
        %v1192 = vmul.f32 %v1109, 0.35355338
        %v1193 = vmul.f32 %v1112, 0.35355338
        %v1194 = vmul.f32 %v1117, 0.35355338
        %v1195 = vmul.f32 %v1173, 0.35355338
        %v1196 = vmul.f32 %v1176, 0.35355338
        %v1197 = vmul.f32 %v1181, 0.35355338
        %vm1198 = vcmask 138240
        %v1199 = vsel %vm1198, %v1186, -inf
        %1200 = vmax.xlane.f32.xlu0 %v1199
        %v1201 = vpop.xlane.xlu0 %1200
        %v1202 = vsel %vm1198, %v1187, -inf
        %1203 = vmax.xlane.f32.xlu0 %v1202
        %v1204 = vpop.xlane.xlu0 %1203
        %vm1205 = vcmask 131072
        %v1206 = vsel %vm1205, %v1188, -inf
        %1207 = vmax.xlane.f32.xlu0 %v1206
        %v1208 = vpop.xlane.xlu0 %1207
        %v1209 = vsel %vm1198, %v1189, -inf
        %1210 = vmax.xlane.f32.xlu0 %v1209
        %v1211 = vpop.xlane.xlu0 %1210
        %v1212 = vsel %vm1198, %v1190, -inf
        %1213 = vmax.xlane.f32.xlu0 %v1212
        %v1214 = vpop.xlane.xlu0 %1213
        %v1215 = vsel %vm1205, %v1191, -inf
        %1216 = vmax.xlane.f32.xlu0 %v1215
        %v1217 = vpop.xlane.xlu0 %1216
        %v1218 = vsel %vm1198, %v1192, -inf
        %1219 = vmax.xlane.f32.xlu0 %v1218
        %v1220 = vpop.xlane.xlu0 %1219
        %v1221 = vsel %vm1198, %v1193, -inf
        %1222 = vmax.xlane.f32.xlu0 %v1221
        %v1223 = vpop.xlane.xlu0 %1222
        %v1224 = vsel %vm1205, %v1194, -inf
        %1225 = vmax.xlane.f32.xlu0 %v1224
        %v1226 = vpop.xlane.xlu0 %1225
        %v1227 = vsel %vm1198, %v1195, -inf
        %1228 = vmax.xlane.f32.xlu0 %v1227
        %v1229 = vpop.xlane.xlu0 %1228
        %v1230 = vsel %vm1198, %v1196, -inf
        %1231 = vmax.xlane.f32.xlu0 %v1230
        %v1232 = vpop.xlane.xlu0 %1231
        %v1233 = vsel %vm1205, %v1197, -inf
        %1234 = vmax.xlane.f32.xlu0 %v1233
        %v1235 = vpop.xlane.xlu0 %1234
        %v1236 = vsub.f32 %v1186, %v1201
        %v1237 = vsub.f32 %v1187, %v1204
        %v1238 = vsub.f32 %v1188, %v1208
        %v1239 = vsub.f32 %v1189, %v1211
        %v1240 = vsub.f32 %v1190, %v1214
        %v1241 = vsub.f32 %v1191, %v1217
        %v1242 = vsub.f32 %v1192, %v1220
        %v1243 = vsub.f32 %v1193, %v1223
        %v1244 = vsub.f32 %v1194, %v1226
        %v1245 = vsub.f32 %v1195, %v1229
        %v1246 = vsub.f32 %v1196, %v1232
        %v1247 = vsub.f32 %v1197, %v1235
        %v1248 = vmul.f32 %v1236, 1.442695
        %v1249 = vpow.pop %v1248
        %v1250 = vmul.f32 %v1237, 1.442695
        %v1251 = vpow.pop %v1250
        %v1252 = vmul.f32 %v1238, 1.442695
        %v1253 = vpow.pop %v1252
        %v1254 = vmul.f32 %v1239, 1.442695
        %v1255 = vpow.pop %v1254
        %v1256 = vmul.f32 %v1240, 1.442695
        %v1257 = vpow.pop %v1256
        %v1258 = vmul.f32 %v1241, 1.442695
        %v1259 = vpow.pop %v1258
        %v1260 = vmul.f32 %v1242, 1.442695
        %v1261 = vpow.pop %v1260
        %v1262 = vmul.f32 %v1243, 1.442695
        %v1263 = vpow.pop %v1262
        %v1264 = vmul.f32 %v1244, 1.442695
        %v1265 = vpow.pop %v1264
        %v1266 = vmul.f32 %v1245, 1.442695
        %v1267 = vpow.pop %v1266
        %v1268 = vmul.f32 %v1246, 1.442695
        %v1269 = vpow.pop %v1268
        %v1270 = vmul.f32 %v1247, 1.442695
        %v1271 = vpow.pop %v1270
        %v1272 = vsel %vm1198, %v1249, 0.0
        %1273 = vadd.xlane.f32.xlu0 %v1272
        %v1274 = vpop.xlane.xlu0 %1273
        %v1275 = vsel %vm1198, %v1251, 0.0
        %1276 = vadd.xlane.f32.xlu0 %v1275
        %v1277 = vpop.xlane.xlu0 %1276
        %v1278 = vsel %vm1205, %v1253, 0.0
        %1279 = vadd.xlane.f32.xlu0 %v1278
        %v1280 = vpop.xlane.xlu0 %1279
        %v1281 = vsel %vm1198, %v1255, 0.0
        %1282 = vadd.xlane.f32.xlu0 %v1281
        %v1283 = vpop.xlane.xlu0 %1282
        %v1284 = vsel %vm1198, %v1257, 0.0
        %1285 = vadd.xlane.f32.xlu0 %v1284
        %v1286 = vpop.xlane.xlu0 %1285
        %v1287 = vsel %vm1205, %v1259, 0.0
        %1288 = vadd.xlane.f32.xlu0 %v1287
        %v1289 = vpop.xlane.xlu0 %1288
        %v1290 = vsel %vm1198, %v1261, 0.0
        %1291 = vadd.xlane.f32.xlu0 %v1290
        %v1292 = vpop.xlane.xlu0 %1291
        %v1293 = vsel %vm1198, %v1263, 0.0
        %1294 = vadd.xlane.f32.xlu0 %v1293
        %v1295 = vpop.xlane.xlu0 %1294
        %v1296 = vsel %vm1205, %v1265, 0.0
        %1297 = vadd.xlane.f32.xlu0 %v1296
        %v1298 = vpop.xlane.xlu0 %1297
        %v1299 = vsel %vm1198, %v1267, 0.0
        %1300 = vadd.xlane.f32.xlu0 %v1299
        %v1301 = vpop.xlane.xlu0 %1300
        %v1302 = vsel %vm1198, %v1269, 0.0
        %1303 = vadd.xlane.f32.xlu0 %v1302
        %v1304 = vpop.xlane.xlu0 %1303
        %v1305 = vsel %vm1205, %v1271, 0.0
        %1306 = vadd.xlane.f32.xlu0 %v1305
        %v1307 = vpop.xlane.xlu0 %1306
        %v1308 = vrcp.pop %v1274
        %v1309 = vrcp.pop %v1277
        %v1310 = vrcp.pop %v1280
        %v1311 = vrcp.pop %v1283
        %v1312 = vrcp.pop %v1286
        %v1313 = vrcp.pop %v1289
        %v1314 = vrcp.pop %v1292
        %v1315 = vrcp.pop %v1295
        %v1316 = vrcp.pop %v1298
        %v1317 = vrcp.pop %v1301
        %v1318 = vrcp.pop %v1304
        %v1319 = vrcp.pop %v1307
        %v1320 = vmul.f32 %v1249, %v1308
        %v1321 = vmul.f32 %v1251, %v1309
        %v1322 = vmul.f32 %v1253, %v1310
        %v1323 = vmul.f32 %v1255, %v1311
        %v1324 = vmul.f32 %v1257, %v1312
        %v1325 = vmul.f32 %v1259, %v1313
        %v1326 = vmul.f32 %v1261, %v1314
        %v1327 = vmul.f32 %v1263, %v1315
        %v1328 = vmul.f32 %v1265, %v1316
        %v1329 = vmul.f32 %v1267, %v1317
        %v1330 = vmul.f32 %v1269, %v1318
        %v1331 = vmul.f32 %v1271, %v1319
        %v1332 = vpack.c.bf16 %v1321, %v1320
        %v1333 = vpack.c.bf16 %v1322, %v1322
        %v1334 = vpack.c.bf16 %v1324, %v1323
        %v1335 = vpack.c.bf16 %v1325, %v1325
        %v1336 = vpack.c.bf16 %v1327, %v1326
        %v1337 = vpack.c.bf16 %v1328, %v1328
        %v1338 = vpack.c.bf16 %v1330, %v1329
        %v1339 = vpack.c.bf16 %v1331, %v1331
        %1340 = vrot.lane.b32.xlu0 %v913, 64
        %v1341 = vpop.permute.xlu0 %1340
        %1342 = vrot.lane.b32.xlu0 %v914, 64
        %v1343 = vpop.permute.xlu0 %1342
        %v1346 = vsel %vm1198, %v1332, 0
        %v1349 = vsel %vm1198, %v1333, 0
        %v1351 = vsel 0, 4294967295, 65535
        %v1352 = vsel %vm764, %v1351, 0
        %v1354 = vand.u32 %v1343, %v1352
        %1356 = vmatprep.subr.bf16.mxu0 0
        %1357 = vmatpush1.bf16.msra.mxu0 %v1341
        %1358 = vmatprep.subr.bf16.mxu0 0
        %1359 = vmatpush1.bf16.msra.mxu0 %v1354
        %1360 = vmatprep.subr.bf16.mxu0 0
        %1361 = vmatpush1.bf16.msra.mxu0 0
        %1362 = vmatprep.subr.bf16.mxu0 0
        %1363 = vmatpush1.bf16.msra.mxu0 0
        %1364 = vmatprep.subr.bf16.mxu0 0
        %1365 = vmatpush1.bf16.msra.mxu0 0
        %1366 = vmatprep.subr.bf16.mxu0 0
        %1367 = vmatpush1.bf16.msra.mxu0 0
        %1368 = vmatprep.subr.bf16.mxu0 0
        %1369 = vmatpush1.bf16.msra.mxu0 0
        %1370 = vmatprep.subr.bf16.mxu0 0
        %1371 = vmatpush1.bf16.msra.mxu0 0
        %1372 = vmatprep.subr.bf16.mxu0 0
        %1373 = vmatpush1.bf16.msra.mxu0 0
        %1374 = vmatprep.subr.bf16.mxu0 0
        %1375 = vmatpush1.bf16.msra.mxu0 0
        %1376 = vmatprep.subr.bf16.mxu0 0
        %1377 = vmatpush1.bf16.msra.mxu0 0
        %1378 = vmatprep.subr.bf16.mxu0 0
        %1379 = vmatpush1.bf16.msra.mxu0 0
        %1380 = vmatprep.subr.bf16.mxu0 0
        %1381 = vmatpush1.bf16.msra.mxu0 0
        %1382 = vmatprep.subr.bf16.mxu0 0
        %1383 = vmatpush1.bf16.msra.mxu0 0
        %1384 = vmatprep.subr.bf16.mxu0 0
        %1385 = vmatpush1.bf16.msra.mxu0 0
        %1386 = vmatprep.subr.bf16.mxu0 0
        %1387 = vmatpush1.bf16.msra.mxu0 0
        %1388 = vmatprep.mubr.bf16.mxu0 0
        %1389 = vmatmul.mubr.bf16.gmra.mrb[0].mxu0 %v1346
        %v1390 = vpop.f32.mrb[0].mxu0
        %v1391 = vadd.f32 0.0, %v1390
        %v1392 = vpop.f32.mrb[0].mxu0
        %v1393 = vpop.f32.mrb[0].mxu0
        %v1394 = vadd.f32 0.0, %v1393
        %v1395 = vpop.f32.mrb[0].mxu0
        %1396 = vmatprep.mubr.bf16.mxu0 0
        %1397 = vmatmul.mubr.bf16.gmra.mrb[0].mxu0 %v1349
        %v1398 = vpop.f32.mrb[0].mxu0
        %v1399 = vadd.f32 0.0, %v1398
        %v1400 = vpop.f32.mrb[0].mxu0
        %v1401 = vpop.f32.mrb[0].mxu0
        %v1402 = vpop.f32.mrb[0].mxu0
        %1403 = vdwg.mxu0
        %1404 = vrot.lane.b32.xlu0 %v918, 64
        %v1405 = vpop.permute.xlu0 %1404
        %1406 = vrot.lane.b32.xlu0 %v920, 64
        %v1407 = vpop.permute.xlu0 %1406
        %v1410 = vsel %vm1198, %v1334, 0
        %v1413 = vsel %vm1198, %v1335, 0
        %v1416 = vand.u32 %v1407, %v1352
        %1418 = vmatprep.subr.bf16.mxu0 0
        %1419 = vmatpush1.bf16.msra.mxu0 %v1405
        %1420 = vmatprep.subr.bf16.mxu0 0
        %1421 = vmatpush1.bf16.msra.mxu0 %v1416
        %1422 = vmatprep.subr.bf16.mxu0 0
        %1423 = vmatpush1.bf16.msra.mxu0 0
        %1424 = vmatprep.subr.bf16.mxu0 0
        %1425 = vmatpush1.bf16.msra.mxu0 0
        %1426 = vmatprep.subr.bf16.mxu0 0
        %1427 = vmatpush1.bf16.msra.mxu0 0
        %1428 = vmatprep.subr.bf16.mxu0 0
        %1429 = vmatpush1.bf16.msra.mxu0 0
        %1430 = vmatprep.subr.bf16.mxu0 0
        %1431 = vmatpush1.bf16.msra.mxu0 0
        %1432 = vmatprep.subr.bf16.mxu0 0
        %1433 = vmatpush1.bf16.msra.mxu0 0
        %1434 = vmatprep.subr.bf16.mxu0 0
        %1435 = vmatpush1.bf16.msra.mxu0 0
        %1436 = vmatprep.subr.bf16.mxu0 0
        %1437 = vmatpush1.bf16.msra.mxu0 0
        %1438 = vmatprep.subr.bf16.mxu0 0
        %1439 = vmatpush1.bf16.msra.mxu0 0
        %1440 = vmatprep.subr.bf16.mxu0 0
        %1441 = vmatpush1.bf16.msra.mxu0 0
        %1442 = vmatprep.subr.bf16.mxu0 0
        %1443 = vmatpush1.bf16.msra.mxu0 0
        %1444 = vmatprep.subr.bf16.mxu0 0
        %1445 = vmatpush1.bf16.msra.mxu0 0
        %1446 = vmatprep.subr.bf16.mxu0 0
        %1447 = vmatpush1.bf16.msra.mxu0 0
        %1448 = vmatprep.subr.bf16.mxu0 0
        %1449 = vmatpush1.bf16.msra.mxu0 0
        %1450 = vmatprep.mubr.bf16.mxu0 0
        %1451 = vmatmul.mubr.bf16.gmra.mrb[0].mxu0 %v1410
        %v1452 = vpop.f32.mrb[0].mxu0
        %v1453 = vadd.f32 0.0, %v1452
        %v1454 = vpop.f32.mrb[0].mxu0
        %v1455 = vpop.f32.mrb[0].mxu0
        %v1456 = vadd.f32 0.0, %v1455
        %v1457 = vpop.f32.mrb[0].mxu0
        %1458 = vmatprep.mubr.bf16.mxu0 0
        %1459 = vmatmul.mubr.bf16.gmra.mrb[0].mxu0 %v1413
        %v1460 = vpop.f32.mrb[0].mxu0
        %v1461 = vadd.f32 0.0, %v1460
        %v1462 = vpop.f32.mrb[0].mxu0
        %v1463 = vpop.f32.mrb[0].mxu0
        %v1464 = vpop.f32.mrb[0].mxu0
        %1465 = vdwg.mxu0
        %1466 = vrot.lane.b32.xlu0 %v922, 64
        %v1467 = vpop.permute.xlu0 %1466
        %1468 = vrot.lane.b32.xlu0 %v924, 64
        %v1469 = vpop.permute.xlu0 %1468
        %v1472 = vsel %vm1198, %v1336, 0
        %v1475 = vsel %vm1198, %v1337, 0
        %v1478 = vand.u32 %v1469, %v1352
        %1480 = vmatprep.subr.bf16.mxu0 0
        %1481 = vmatpush1.bf16.msra.mxu0 %v1467
        %1482 = vmatprep.subr.bf16.mxu0 0
        %1483 = vmatpush1.bf16.msra.mxu0 %v1478
        %1484 = vmatprep.subr.bf16.mxu0 0
        %1485 = vmatpush1.bf16.msra.mxu0 0
        %1486 = vmatprep.subr.bf16.mxu0 0
        %1487 = vmatpush1.bf16.msra.mxu0 0
        %1488 = vmatprep.subr.bf16.mxu0 0
        %1489 = vmatpush1.bf16.msra.mxu0 0
        %1490 = vmatprep.subr.bf16.mxu0 0
        %1491 = vmatpush1.bf16.msra.mxu0 0
        %1492 = vmatprep.subr.bf16.mxu0 0
        %1493 = vmatpush1.bf16.msra.mxu0 0
        %1494 = vmatprep.subr.bf16.mxu0 0
        %1495 = vmatpush1.bf16.msra.mxu0 0
        %1496 = vmatprep.subr.bf16.mxu0 0
        %1497 = vmatpush1.bf16.msra.mxu0 0
        %1498 = vmatprep.subr.bf16.mxu0 0
        %1499 = vmatpush1.bf16.msra.mxu0 0
        %1500 = vmatprep.subr.bf16.mxu0 0
        %1501 = vmatpush1.bf16.msra.mxu0 0
        %1502 = vmatprep.subr.bf16.mxu0 0
        %1503 = vmatpush1.bf16.msra.mxu0 0
        %1504 = vmatprep.subr.bf16.mxu0 0
        %1505 = vmatpush1.bf16.msra.mxu0 0
        %1506 = vmatprep.subr.bf16.mxu0 0
        %1507 = vmatpush1.bf16.msra.mxu0 0
        %1508 = vmatprep.subr.bf16.mxu0 0
        %1509 = vmatpush1.bf16.msra.mxu0 0
        %1510 = vmatprep.subr.bf16.mxu0 0
        %1511 = vmatpush1.bf16.msra.mxu0 0
        %1512 = vmatprep.mubr.bf16.mxu0 0
        %1513 = vmatmul.mubr.bf16.gmra.mrb[0].mxu0 %v1472
        %v1514 = vpop.f32.mrb[0].mxu0
        %v1515 = vadd.f32 0.0, %v1514
        %v1516 = vpop.f32.mrb[0].mxu0
        %v1517 = vpop.f32.mrb[0].mxu0
        %v1518 = vadd.f32 0.0, %v1517
        %v1519 = vpop.f32.mrb[0].mxu0
        %1520 = vmatprep.mubr.bf16.mxu0 0
        %1521 = vmatmul.mubr.bf16.gmra.mrb[0].mxu0 %v1475
        %v1522 = vpop.f32.mrb[0].mxu0
        %v1523 = vadd.f32 0.0, %v1522
        %v1524 = vpop.f32.mrb[0].mxu0
        %v1525 = vpop.f32.mrb[0].mxu0
        %v1526 = vpop.f32.mrb[0].mxu0
        %1527 = vdwg.mxu0
        %1528 = vrot.lane.b32.xlu0 %v926, 64
        %v1529 = vpop.permute.xlu0 %1528
        %1530 = vrot.lane.b32.xlu0 %v928, 64
        %v1531 = vpop.permute.xlu0 %1530
        %v1534 = vsel %vm1198, %v1338, 0
        %v1537 = vsel %vm1198, %v1339, 0
        %v1540 = vand.u32 %v1531, %v1352
        %1542 = vmatprep.subr.bf16.mxu0 0
        %1543 = vmatpush1.bf16.msra.mxu0 %v1529
        %1544 = vmatprep.subr.bf16.mxu0 0
        %1545 = vmatpush1.bf16.msra.mxu0 %v1540
        %1546 = vmatprep.subr.bf16.mxu0 0
        %1547 = vmatpush1.bf16.msra.mxu0 0
        %1548 = vmatprep.subr.bf16.mxu0 0
        %1549 = vmatpush1.bf16.msra.mxu0 0
        %1550 = vmatprep.subr.bf16.mxu0 0
        %1551 = vmatpush1.bf16.msra.mxu0 0
        %1552 = vmatprep.subr.bf16.mxu0 0
        %1553 = vmatpush1.bf16.msra.mxu0 0
        %1554 = vmatprep.subr.bf16.mxu0 0
        %1555 = vmatpush1.bf16.msra.mxu0 0
        %1556 = vmatprep.subr.bf16.mxu0 0
        %1557 = vmatpush1.bf16.msra.mxu0 0
        %1558 = vmatprep.subr.bf16.mxu0 0
        %1559 = vmatpush1.bf16.msra.mxu0 0
        %1560 = vmatprep.subr.bf16.mxu0 0
        %1561 = vmatpush1.bf16.msra.mxu0 0
        %1562 = vmatprep.subr.bf16.mxu0 0
        %1563 = vmatpush1.bf16.msra.mxu0 0
        %1564 = vmatprep.subr.bf16.mxu0 0
        %1565 = vmatpush1.bf16.msra.mxu0 0
        %1566 = vmatprep.subr.bf16.mxu0 0
        %1567 = vmatpush1.bf16.msra.mxu0 0
        %1568 = vmatprep.subr.bf16.mxu0 0
        %1569 = vmatpush1.bf16.msra.mxu0 0
        %1570 = vmatprep.subr.bf16.mxu0 0
        %1571 = vmatpush1.bf16.msra.mxu0 0
        %1572 = vmatprep.subr.bf16.mxu0 0
        %1573 = vmatpush1.bf16.msra.mxu0 0
        %1574 = vmatprep.mubr.bf16.mxu0 0
        %1575 = vmatmul.mubr.bf16.gmra.mrb[0].mxu0 %v1534
        %v1576 = vpop.f32.mrb[0].mxu0
        %v1577 = vadd.f32 0.0, %v1576
        %v1578 = vpop.f32.mrb[0].mxu0
        %v1579 = vpop.f32.mrb[0].mxu0
        %v1580 = vadd.f32 0.0, %v1579
        %v1581 = vpop.f32.mrb[0].mxu0
        %1582 = vmatprep.mubr.bf16.mxu0 0
        %1583 = vmatmul.mubr.bf16.gmra.mrb[0].mxu0 %v1537
        %v1584 = vpop.f32.mrb[0].mxu0
        %v1585 = vadd.f32 0.0, %v1584
        %v1586 = vpop.f32.mrb[0].mxu0
        %v1587 = vpop.f32.mrb[0].mxu0
        %v1588 = vpop.f32.mrb[0].mxu0
        %1589 = vdwg.mxu0
        %1593 = vrot.lane.b32.xlu0 %v1453, 8
        %v1594 = vpop.permute.xlu0 %1593
        %1595 = vrot.lane.b32.xlu0 %v1456, 8
        %v1596 = vpop.permute.xlu0 %1595
        %1597 = vrot.lane.b32.xlu0 %v1461, 8
        %v1598 = vpop.permute.xlu0 %1597
        %1605 = vrot.lane.b32.xlu0 %v1515, 16
        %v1606 = vpop.permute.xlu0 %1605
        %1607 = vrot.lane.b32.xlu0 %v1518, 16
        %v1608 = vpop.permute.xlu0 %1607
        %1609 = vrot.lane.b32.xlu0 %v1523, 16
        %v1610 = vpop.permute.xlu0 %1609
        %1617 = vrot.lane.b32.xlu0 %v1577, 24
        %v1618 = vpop.permute.xlu0 %1617
        %1619 = vrot.lane.b32.xlu0 %v1580, 24
        %v1620 = vpop.permute.xlu0 %1619
        %1621 = vrot.lane.b32.xlu0 %v1585, 24
        %v1622 = vpop.permute.xlu0 %1621
        %v1626 = vsel %vm933, %v1391, %v1594
        %v1627 = vsel %vm933, %v1394, %v1596
        %v1628 = vsel %vm933, %v1399, %v1598
        %vm1629 = vcmask 130048
        %v1630 = vsel %vm1629, %v1626, %v1606
        %v1631 = vsel %vm1629, %v1627, %v1608
        %v1632 = vsel %vm1629, %v1628, %v1610
        %vm1633 = vcmask 195584
        %v1634 = vsel %vm1633, %v1630, %v1618
        %v1635 = vsel %vm1633, %v1631, %v1620
        %v1636 = vsel %vm1633, %v1632, %v1622
        %v1637 = vld [vmem:[%s9] sm:$0xf]
        %v1638 = vld [vmem:[%s9 + $0x4] sm:$0xf]
        %v1639 = vld [vmem:[%s9 + $0x8] sm:$0xf]
        %v1640 = vld [vmem:[%s9 + $0xc] sm:$0xf]
        %v1641 = vpack.c.bf16 %v1635, %v1634
        %v1642 = vpack.c.bf16 %v1636, %v1636
        %v1643 = vld [vmem:[%s10] sm:$0x1]
        %v1645 = vlaneseq
        %v1646 = vshrl.u32 %v1645, 7
        %v1647 = vsub.s32 0, %v1646
        %v1648 = vrot.slane %v1643, %v1647
        %v1654 = vunpack.c.l.b16 %v1637
        %v1655 = vunpack.c.l.b16 %v1638
        %v1656 = vunpack.c.l.b16 %v1639
        %v1657 = vunpack.c.l.b16 %v1640
        %v1658 = vpack.c.b16 %v1655, %v1654
        %v1659 = vpack.c.b16 %v1657, %v1656
        %v1663 = vsel %vm774, %v1641, 0
        %v1666 = vsel %vm774, %v1642, 0
        %1668 = vmatprep.subr.bf16.mxu0 0
        %1669 = vmatpush1.bf16.msra.mxu0 %v1658
        %1670 = vmatprep.subr.bf16.mxu0 0
        %1671 = vmatpush1.bf16.msra.mxu0 %v1659
        %1672 = vmatprep.subr.bf16.mxu0 0
        %1673 = vmatpush1.bf16.msra.mxu0 0
        %1674 = vmatprep.subr.bf16.mxu0 0
        %1675 = vmatpush1.bf16.msra.mxu0 0
        %1676 = vmatprep.subr.bf16.mxu0 0
        %1677 = vmatpush1.bf16.msra.mxu0 0
        %1678 = vmatprep.subr.bf16.mxu0 0
        %1679 = vmatpush1.bf16.msra.mxu0 0
        %1680 = vmatprep.subr.bf16.mxu0 0
        %1681 = vmatpush1.bf16.msra.mxu0 0
        %1682 = vmatprep.subr.bf16.mxu0 0
        %1683 = vmatpush1.bf16.msra.mxu0 0
        %1684 = vmatprep.subr.bf16.mxu0 0
        %1685 = vmatpush1.bf16.msra.mxu0 0
        %1686 = vmatprep.subr.bf16.mxu0 0
        %1687 = vmatpush1.bf16.msra.mxu0 0
        %1688 = vmatprep.subr.bf16.mxu0 0
        %1689 = vmatpush1.bf16.msra.mxu0 0
        %1690 = vmatprep.subr.bf16.mxu0 0
        %1691 = vmatpush1.bf16.msra.mxu0 0
        %1692 = vmatprep.subr.bf16.mxu0 0
        %1693 = vmatpush1.bf16.msra.mxu0 0
        %1694 = vmatprep.subr.bf16.mxu0 0
        %1695 = vmatpush1.bf16.msra.mxu0 0
        %1696 = vmatprep.subr.bf16.mxu0 0
        %1697 = vmatpush1.bf16.msra.mxu0 0
        %1698 = vmatprep.subr.bf16.mxu0 0
        %1699 = vmatpush1.bf16.msra.mxu0 0
        %1700 = vmatprep.mubr.bf16.mxu0 0
        %1701 = vmatmul.mubr.bf16.gmra.mrb[0].mxu0 %v1663
        %v1702 = vpop.f32.mrb[0].mxu0
        %v1703 = vadd.f32 %v1648, %v1702
        %v1704 = vpop.f32.mrb[0].mxu0
        %v1705 = vpop.f32.mrb[0].mxu0
        %v1706 = vadd.f32 %v1648, %v1705
        %v1707 = vpop.f32.mrb[0].mxu0
        %1708 = vmatprep.mubr.bf16.mxu0 0
        %1709 = vmatmul.mubr.bf16.gmra.mrb[0].mxu0 %v1666
        %v1710 = vpop.f32.mrb[0].mxu0
        %v1711 = vadd.f32 %v1648, %v1710
        %v1712 = vpop.f32.mrb[0].mxu0
        %v1713 = vpop.f32.mrb[0].mxu0
        %v1714 = vpop.f32.mrb[0].mxu0
        %1715 = vdwg.mxu0
        %v1716 = vadd.f32 %v771, %v1703
        %v1717 = vadd.f32 %v767, %v1706
        %v1718 = vadd.f32 %v766, %v1711
        %v1719 = vld [vmem:[%s11] sm:$0x1]
        %v1720 = vld [vmem:[%s12] sm:$0x1]
        %v1721 = vsel %vm774, %v1716, 0.0
        %1722 = vadd.xlane.f32.xlu0 %v1721
        %v1723 = vpop.xlane.xlu0 %1722
        %v1724 = vsel %vm774, %v1717, 0.0
        %1725 = vadd.xlane.f32.xlu0 %v1724
        %v1726 = vpop.xlane.xlu0 %1725
        %v1727 = vsel %vm781, %v1718, 0.0
        %1728 = vadd.xlane.f32.xlu0 %v1727
        %v1729 = vpop.xlane.xlu0 %1728
        %v1730 = vmul.f32 %v1723, %v785
        %v1731 = vmul.f32 %v1726, %v785
        %v1732 = vmul.f32 %v1729, %v785
        %v1733 = vsub.f32 %v1716, %v1730
        %v1734 = vsub.f32 %v1717, %v1731
        %v1735 = vsub.f32 %v1718, %v1732
        %v1736 = vmul.f32 %v1733, %v1733
        %v1737 = vmul.f32 %v1734, %v1734
        %v1738 = vmul.f32 %v1735, %v1735
        %v1739 = vsel %vm774, %v1736, 0.0
        %1740 = vadd.xlane.f32.xlu0 %v1739
        %v1741 = vpop.xlane.xlu0 %1740
        %v1742 = vsel %vm774, %v1737, 0.0
        %1743 = vadd.xlane.f32.xlu0 %v1742
        %v1744 = vpop.xlane.xlu0 %1743
        %v1745 = vsel %vm781, %v1738, 0.0
        %1746 = vadd.xlane.f32.xlu0 %v1745
        %v1747 = vpop.xlane.xlu0 %1746
        %v1748 = vmul.f32 %v1741, %v785
        %v1749 = vmul.f32 %v1744, %v785
        %v1750 = vmul.f32 %v1747, %v785
        %v1751 = vadd.f32 %v1748, 1e-05
        %v1752 = vadd.f32 %v1749, 1e-05
        %v1753 = vadd.f32 %v1750, 1e-05
        %v1754 = vrsqrt.pop %v1751
        %v1755 = vrsqrt.pop %v1752
        %v1756 = vrsqrt.pop %v1753
        %v1757 = vmul.f32 %v1733, %v1754
        %v1758 = vmul.f32 %v1734, %v1755
        %v1759 = vmul.f32 %v1735, %v1756
        %v1761 = vlaneseq
        %v1762 = vshrl.u32 %v1761, 7
        %v1763 = vsub.s32 0, %v1762
        %v1764 = vrot.slane %v1719, %v1763
        %v1766 = vmul.f32 %v1757, %v1764
        %v1767 = vmul.f32 %v1758, %v1764
        %v1768 = vmul.f32 %v1759, %v1764
        %v1770 = vlaneseq
        %v1771 = vshrl.u32 %v1770, 7
        %v1772 = vsub.s32 0, %v1771
        %v1773 = vrot.slane %v1720, %v1772
        %v1775 = vadd.f32 %v1766, %v1773
        %v1776 = vadd.f32 %v1767, %v1773
        %v1777 = vadd.f32 %v1768, %v1773
        %v1778 = vld [vmem:[%s13] sm:$0xf]
        %v1779 = vld [vmem:[%s13 + $0x4] sm:$0xf]
        %v1780 = vld [vmem:[%s13 + $0x8] sm:$0xf]
        %v1781 = vld [vmem:[%s13 + $0xc] sm:$0xf]
        %v1782 = vpack.c.bf16 %v1776, %v1775
        %v1783 = vpack.c.bf16 %v1777, %v1777
        %v1784 = vld [vmem:[%s14] sm:$0x1]
        %v1786 = vlaneseq
        %v1787 = vshrl.u32 %v1786, 7
        %v1788 = vsub.s32 0, %v1787
        %v1789 = vrot.slane %v1784, %v1788
        %v1795 = vunpack.c.l.b16 %v1778
        %v1796 = vunpack.c.l.b16 %v1779
        %v1797 = vunpack.c.l.b16 %v1780
        %v1798 = vunpack.c.l.b16 %v1781
        %v1799 = vpack.c.b16 %v1796, %v1795
        %v1800 = vpack.c.b16 %v1798, %v1797
        %v1804 = vsel %vm774, %v1782, 0
        %v1807 = vsel %vm774, %v1783, 0
        %1809 = vmatprep.subr.bf16.mxu0 0
        %1810 = vmatpush1.bf16.msra.mxu0 %v1799
        %1811 = vmatprep.subr.bf16.mxu0 0
        %1812 = vmatpush1.bf16.msra.mxu0 %v1800
        %1813 = vmatprep.subr.bf16.mxu0 0
        %1814 = vmatpush1.bf16.msra.mxu0 0
        %1815 = vmatprep.subr.bf16.mxu0 0
        %1816 = vmatpush1.bf16.msra.mxu0 0
        %1817 = vmatprep.subr.bf16.mxu0 0
        %1818 = vmatpush1.bf16.msra.mxu0 0
        %1819 = vmatprep.subr.bf16.mxu0 0
        %1820 = vmatpush1.bf16.msra.mxu0 0
        %1821 = vmatprep.subr.bf16.mxu0 0
        %1822 = vmatpush1.bf16.msra.mxu0 0
        %1823 = vmatprep.subr.bf16.mxu0 0
        %1824 = vmatpush1.bf16.msra.mxu0 0
        %1825 = vmatprep.subr.bf16.mxu0 0
        %1826 = vmatpush1.bf16.msra.mxu0 0
        %1827 = vmatprep.subr.bf16.mxu0 0
        %1828 = vmatpush1.bf16.msra.mxu0 0
        %1829 = vmatprep.subr.bf16.mxu0 0
        %1830 = vmatpush1.bf16.msra.mxu0 0
        %1831 = vmatprep.subr.bf16.mxu0 0
        %1832 = vmatpush1.bf16.msra.mxu0 0
        %1833 = vmatprep.subr.bf16.mxu0 0
        %1834 = vmatpush1.bf16.msra.mxu0 0
        %1835 = vmatprep.subr.bf16.mxu0 0
        %1836 = vmatpush1.bf16.msra.mxu0 0
        %1837 = vmatprep.subr.bf16.mxu0 0
        %1838 = vmatpush1.bf16.msra.mxu0 0
        %1839 = vmatprep.subr.bf16.mxu0 0
        %1840 = vmatpush1.bf16.msra.mxu0 0
        %1841 = vmatprep.mubr.bf16.mxu0 0
        %1842 = vmatmul.mubr.bf16.gmra.mrb[0].mxu0 %v1804
        %v1843 = vpop.f32.mrb[0].mxu0
        %v1844 = vadd.f32 %v1789, %v1843
        %v1845 = vpop.f32.mrb[0].mxu0
        %v1846 = vpop.f32.mrb[0].mxu0
        %v1847 = vadd.f32 %v1789, %v1846
        %v1848 = vpop.f32.mrb[0].mxu0
        %1849 = vmatprep.mubr.bf16.mxu0 0
        %1850 = vmatmul.mubr.bf16.gmra.mrb[0].mxu0 %v1807
        %v1851 = vpop.f32.mrb[0].mxu0
        %v1852 = vadd.f32 %v1789, %v1851
        %v1853 = vpop.f32.mrb[0].mxu0
        %v1854 = vpop.f32.mrb[0].mxu0
        %v1855 = vpop.f32.mrb[0].mxu0
        %1856 = vdwg.mxu0
        %v1857 = vmul.f32 %v1844, 0.5
        %v1858 = vmul.f32 %v1847, 0.5
        %v1859 = vmul.f32 %v1852, 0.5
        %v1860 = vmul.f32 %v1844, 0.044715
        %v1861 = vmul.f32 %v1847, 0.044715
        %v1862 = vmul.f32 %v1852, 0.044715
        %v1863 = vmul.f32 %v1860, %v1844
        %v1864 = vmul.f32 %v1861, %v1847
        %v1865 = vmul.f32 %v1862, %v1852
        %v1866 = vmul.f32 %v1863, %v1844
        %v1867 = vmul.f32 %v1864, %v1847
        %v1868 = vmul.f32 %v1865, %v1852
        %v1869 = vadd.f32 %v1844, %v1866
        %v1870 = vadd.f32 %v1847, %v1867
        %v1871 = vadd.f32 %v1852, %v1868
        %v1872 = vmul.f32 %v1869, 0.7978846
        %v1873 = vmul.f32 %v1870, 0.7978846
        %v1874 = vmul.f32 %v1871, 0.7978846
        %v1875 = vtanh.pop %v1872
        %v1876 = vtanh.pop %v1873
        %v1877 = vtanh.pop %v1874
        %v1878 = vadd.f32 %v1875, 1.0
        %v1879 = vadd.f32 %v1876, 1.0
        %v1880 = vadd.f32 %v1877, 1.0
        %v1881 = vmul.f32 %v1857, %v1878
        %v1882 = vmul.f32 %v1858, %v1879
        %v1883 = vmul.f32 %v1859, %v1880
        %v1884 = vld [vmem:[%s15] sm:$0xf]
        %v1885 = vld [vmem:[%s15 + $0x4] sm:$0xf]
        %v1886 = vld [vmem:[%s15 + $0x8] sm:$0xf]
        %v1887 = vld [vmem:[%s15 + $0xc] sm:$0xf]
        %v1888 = vld [vmem:[%s15 + $0x10] sm:$0xf]
        %v1889 = vld [vmem:[%s15 + $0x14] sm:$0xf]
        %v1890 = vld [vmem:[%s15 + $0x18] sm:$0xf]
        %v1891 = vld [vmem:[%s15 + $0x1c] sm:$0xf]
        %v1892 = vpack.c.bf16 %v1882, %v1881
        %v1893 = vpack.c.bf16 %v1883, %v1883
        %v1894 = vld [vmem:[%s16] sm:$0x1]
        %v1896 = vlaneseq
        %v1897 = vshrl.u32 %v1896, 7
        %v1898 = vsub.s32 0, %v1897
        %v1899 = vrot.slane %v1894, %v1898
        %v1909 = vunpack.c.l.b16 %v1884
        %v1910 = vunpack.c.l.b16 %v1885
        %v1911 = vunpack.c.l.b16 %v1886
        %v1912 = vunpack.c.l.b16 %v1887
        %v1913 = vunpack.c.l.b16 %v1888
        %v1914 = vunpack.c.l.b16 %v1889
        %v1915 = vunpack.c.l.b16 %v1890
        %v1916 = vunpack.c.l.b16 %v1891
        %v1917 = vpack.c.b16 %v1910, %v1909
        %v1918 = vpack.c.b16 %v1912, %v1911
        %v1919 = vpack.c.b16 %v1914, %v1913
        %v1920 = vpack.c.b16 %v1916, %v1915
        %v1926 = vsel %vm712, %v1892, 0
        %v1929 = vsel %vm712, %v1893, 0
        %1931 = vmatprep.subr.bf16.mxu0 0
        %1932 = vmatpush1.bf16.msra.mxu0 %v1917
        %1933 = vmatprep.subr.bf16.mxu0 0
        %1934 = vmatpush1.bf16.msra.mxu0 %v1918
        %1935 = vmatprep.subr.bf16.mxu0 0
        %1936 = vmatpush1.bf16.msra.mxu0 %v1919
        %1937 = vmatprep.subr.bf16.mxu0 0
        %1938 = vmatpush1.bf16.msra.mxu0 %v1920
        %1939 = vmatprep.subr.bf16.mxu0 0
        %1940 = vmatpush1.bf16.msra.mxu0 0
        %1941 = vmatprep.subr.bf16.mxu0 0
        %1942 = vmatpush1.bf16.msra.mxu0 0
        %1943 = vmatprep.subr.bf16.mxu0 0
        %1944 = vmatpush1.bf16.msra.mxu0 0
        %1945 = vmatprep.subr.bf16.mxu0 0
        %1946 = vmatpush1.bf16.msra.mxu0 0
        %1947 = vmatprep.subr.bf16.mxu0 0
        %1948 = vmatpush1.bf16.msra.mxu0 0
        %1949 = vmatprep.subr.bf16.mxu0 0
        %1950 = vmatpush1.bf16.msra.mxu0 0
        %1951 = vmatprep.subr.bf16.mxu0 0
        %1952 = vmatpush1.bf16.msra.mxu0 0
        %1953 = vmatprep.subr.bf16.mxu0 0
        %1954 = vmatpush1.bf16.msra.mxu0 0
        %1955 = vmatprep.subr.bf16.mxu0 0
        %1956 = vmatpush1.bf16.msra.mxu0 0
        %1957 = vmatprep.subr.bf16.mxu0 0
        %1958 = vmatpush1.bf16.msra.mxu0 0
        %1959 = vmatprep.subr.bf16.mxu0 0
        %1960 = vmatpush1.bf16.msra.mxu0 0
        %1961 = vmatprep.subr.bf16.mxu0 0
        %1962 = vmatpush1.bf16.msra.mxu0 0
        %1963 = vmatprep.mubr.bf16.mxu0 0
        %1964 = vmatmul.mubr.bf16.gmra.mrb[0].mxu0 %v1926
        %v1965 = vpop.f32.mrb[0].mxu0
        %v1966 = vadd.f32 %v1899, %v1965
        %v1967 = vpop.f32.mrb[0].mxu0
        %v1968 = vpop.f32.mrb[0].mxu0
        %v1969 = vadd.f32 %v1899, %v1968
        %v1970 = vpop.f32.mrb[0].mxu0
        %1971 = vmatprep.mubr.bf16.mxu0 0
        %1972 = vmatmul.mubr.bf16.gmra.mrb[0].mxu0 %v1929
        %v1973 = vpop.f32.mrb[0].mxu0
        %v1974 = vadd.f32 %v1899, %v1973
        %v1975 = vpop.f32.mrb[0].mxu0
        %v1976 = vpop.f32.mrb[0].mxu0
        %v1977 = vpop.f32.mrb[0].mxu0
        %1978 = vdwg.mxu0
        %v1979 = vadd.f32 %v1716, %v1966
        %v1980 = vadd.f32 %v1717, %v1969
        %v1981 = vadd.f32 %v1718, %v1974
        %s1982 = scalar_lea.vmem %s5, 1
        %v1983 = vld [vmem:[%s1982] sm:$0x1]
        %s1984 = scalar_lea.vmem [#allocation8], 1
        %v1985 = vld [vmem:[%s1984] sm:$0x1]
        %v1986 = vsel %vm774, %v1979, 0.0
        %1987 = vadd.xlane.f32.xlu0 %v1986
        %v1988 = vpop.xlane.xlu0 %1987
        %v1989 = vsel %vm774, %v1980, 0.0
        %1990 = vadd.xlane.f32.xlu0 %v1989
        %v1991 = vpop.xlane.xlu0 %1990
        %v1992 = vsel %vm781, %v1981, 0.0
        %1993 = vadd.xlane.f32.xlu0 %v1992
        %v1994 = vpop.xlane.xlu0 %1993
        %v1995 = vmul.f32 %v1988, %v785
        %v1996 = vmul.f32 %v1991, %v785
        %v1997 = vmul.f32 %v1994, %v785
        %v1998 = vsub.f32 %v1979, %v1995
        %v1999 = vsub.f32 %v1980, %v1996
        %v2000 = vsub.f32 %v1981, %v1997
        %v2001 = vmul.f32 %v1998, %v1998
        %v2002 = vmul.f32 %v1999, %v1999
        %v2003 = vmul.f32 %v2000, %v2000
        %v2004 = vsel %vm774, %v2001, 0.0
        %2005 = vadd.xlane.f32.xlu0 %v2004
        %v2006 = vpop.xlane.xlu0 %2005
        %v2007 = vsel %vm774, %v2002, 0.0
        %2008 = vadd.xlane.f32.xlu0 %v2007
        %v2009 = vpop.xlane.xlu0 %2008
        %v2010 = vsel %vm781, %v2003, 0.0
        %2011 = vadd.xlane.f32.xlu0 %v2010
        %v2012 = vpop.xlane.xlu0 %2011
        %v2013 = vmul.f32 %v2006, %v785
        %v2014 = vmul.f32 %v2009, %v785
        %v2015 = vmul.f32 %v2012, %v785
        %v2016 = vadd.f32 %v2013, 1e-05
        %v2017 = vadd.f32 %v2014, 1e-05
        %v2018 = vadd.f32 %v2015, 1e-05
        %v2019 = vrsqrt.pop %v2016
        %v2020 = vrsqrt.pop %v2017
        %v2021 = vrsqrt.pop %v2018
        %v2022 = vmul.f32 %v1998, %v2019
        %v2023 = vmul.f32 %v1999, %v2020
        %v2024 = vmul.f32 %v2000, %v2021
        %v2026 = vlaneseq
        %v2027 = vshrl.u32 %v2026, 7
        %v2028 = vsub.s32 0, %v2027
        %v2029 = vrot.slane %v1983, %v2028
        %v2031 = vmul.f32 %v2022, %v2029
        %v2032 = vmul.f32 %v2023, %v2029
        %v2033 = vmul.f32 %v2024, %v2029
        %v2035 = vlaneseq
        %v2036 = vshrl.u32 %v2035, 7
        %v2037 = vsub.s32 0, %v2036
        %v2038 = vrot.slane %v1985, %v2037
        %v2040 = vadd.f32 %v2031, %v2038
        %v2041 = vadd.f32 %v2032, %v2038
        %v2042 = vadd.f32 %v2033, %v2038
        %s2043 = scalar_lea.vmem %s7, 16
        %v2044 = vld [vmem:[%s2043] sm:$0xf]
        %v2045 = vld [vmem:[%s2043 + $0x4] sm:$0xf]
        %v2046 = vld [vmem:[%s2043 + $0x8] sm:$0xf]
        %v2047 = vld [vmem:[%s2043 + $0xc] sm:$0xf]
        %v2048 = vpack.c.bf16 %v2041, %v2040
        %v2049 = vpack.c.bf16 %v2042, %v2042
        %s2050 = scalar_lea.vmem [#allocation10], 1
        %v2051 = vld [vmem:[%s2050] sm:$0x1]
        %v2053 = vlaneseq
        %v2054 = vshrl.u32 %v2053, 7
        %v2055 = vsub.s32 0, %v2054
        %v2056 = vrot.slane %v2051, %v2055
        %v2062 = vunpack.c.l.b16 %v2044
        %v2063 = vunpack.c.l.b16 %v2045
        %v2064 = vunpack.c.l.b16 %v2046
        %v2065 = vunpack.c.l.b16 %v2047
        %v2066 = vpack.c.b16 %v2063, %v2062
        %v2067 = vpack.c.b16 %v2065, %v2064
        %v2071 = vsel %vm774, %v2048, 0
        %v2074 = vsel %vm774, %v2049, 0
        %2076 = vmatprep.subr.bf16.mxu0 0
        %2077 = vmatpush1.bf16.msra.mxu0 %v2066
        %2078 = vmatprep.subr.bf16.mxu0 0
        %2079 = vmatpush1.bf16.msra.mxu0 %v2067
        %2080 = vmatprep.subr.bf16.mxu0 0
        %2081 = vmatpush1.bf16.msra.mxu0 0
        %2082 = vmatprep.subr.bf16.mxu0 0
        %2083 = vmatpush1.bf16.msra.mxu0 0
        %2084 = vmatprep.subr.bf16.mxu0 0
        %2085 = vmatpush1.bf16.msra.mxu0 0
        %2086 = vmatprep.subr.bf16.mxu0 0
        %2087 = vmatpush1.bf16.msra.mxu0 0
        %2088 = vmatprep.subr.bf16.mxu0 0
        %2089 = vmatpush1.bf16.msra.mxu0 0
        %2090 = vmatprep.subr.bf16.mxu0 0
        %2091 = vmatpush1.bf16.msra.mxu0 0
        %2092 = vmatprep.subr.bf16.mxu0 0
        %2093 = vmatpush1.bf16.msra.mxu0 0
        %2094 = vmatprep.subr.bf16.mxu0 0
        %2095 = vmatpush1.bf16.msra.mxu0 0
        %2096 = vmatprep.subr.bf16.mxu0 0
        %2097 = vmatpush1.bf16.msra.mxu0 0
        %2098 = vmatprep.subr.bf16.mxu0 0
        %2099 = vmatpush1.bf16.msra.mxu0 0
        %2100 = vmatprep.subr.bf16.mxu0 0
        %2101 = vmatpush1.bf16.msra.mxu0 0
        %2102 = vmatprep.subr.bf16.mxu0 0
        %2103 = vmatpush1.bf16.msra.mxu0 0
        %2104 = vmatprep.subr.bf16.mxu0 0
        %2105 = vmatpush1.bf16.msra.mxu0 0
        %2106 = vmatprep.subr.bf16.mxu0 0
        %2107 = vmatpush1.bf16.msra.mxu0 0
        %2108 = vmatprep.mubr.bf16.mxu0 0
        %2109 = vmatmul.mubr.bf16.gmra.mrb[0].mxu0 %v2071
        %v2110 = vpop.f32.mrb[0].mxu0
        %v2111 = vadd.f32 %v2056, %v2110
        %v2112 = vpop.f32.mrb[0].mxu0
        %v2113 = vpop.f32.mrb[0].mxu0
        %v2114 = vadd.f32 %v2056, %v2113
        %v2115 = vpop.f32.mrb[0].mxu0
        %2116 = vmatprep.mubr.bf16.mxu0 0
        %2117 = vmatmul.mubr.bf16.gmra.mrb[0].mxu0 %v2074
        %v2118 = vpop.f32.mrb[0].mxu0
        %v2119 = vadd.f32 %v2056, %v2118
        %v2120 = vpop.f32.mrb[0].mxu0
        %v2121 = vpop.f32.mrb[0].mxu0
        %v2122 = vpop.f32.mrb[0].mxu0
        %2123 = vdwg.mxu0
        %v2124 = vpack.c.bf16 %v2114, %v2111
        %v2125 = vpack.c.bf16 %v2119, %v2119
        %2128 = vrot.lane.b32.xlu0 %v2124, 120
        %v2129 = vpop.permute.xlu0 %2128
        %2130 = vrot.lane.b32.xlu0 %v2125, 120
        %v2131 = vpop.permute.xlu0 %2130
        %2132 = vrot.lane.b32.xlu0 %v2124, 112
        %v2133 = vpop.permute.xlu0 %2132
        %2134 = vrot.lane.b32.xlu0 %v2125, 112
        %v2135 = vpop.permute.xlu0 %2134
        %2136 = vrot.lane.b32.xlu0 %v2124, 104
        %v2137 = vpop.permute.xlu0 %2136
        %2138 = vrot.lane.b32.xlu0 %v2125, 104
        %v2139 = vpop.permute.xlu0 %2138
        %2140 = vrot.lane.b32.xlu0 %v2124, 96
        %v2141 = vpop.permute.xlu0 %2140
        %2142 = vrot.lane.b32.xlu0 %v2125, 96
        %v2143 = vpop.permute.xlu0 %2142
        %v2145 = vsel %vm933, %v2124, 0
        %v2148 = vsel %vm933, %v2125, 0
        %v2151 = vsel %vm933, %v2141, 0
        %v2154 = vsel %vm933, %v2143, 0
        %2156 = vmatprep.subr.bf16.mxu0 0
        %2157 = vmatpush1.bf16.xpose.msra.mxu0 %v2151
        %2158 = vmatprep.subr.bf16.mxu0 0
        %2159 = vmatpush1.bf16.xpose.msra.mxu0 %v2154
        %2160 = vmatprep.subr.bf16.mxu0 0
        %2161 = vmatpush1.bf16.xpose.msra.mxu0 0
        %2162 = vmatprep.subr.bf16.mxu0 0
        %2163 = vmatpush1.bf16.xpose.msra.mxu0 0
        %2164 = vmatprep.subr.bf16.mxu0 0
        %2165 = vmatpush1.bf16.xpose.msra.mxu0 0
        %2166 = vmatprep.subr.bf16.mxu0 0
        %2167 = vmatpush1.bf16.xpose.msra.mxu0 0
        %2168 = vmatprep.subr.bf16.mxu0 0
        %2169 = vmatpush1.bf16.xpose.msra.mxu0 0
        %2170 = vmatprep.subr.bf16.mxu0 0
        %2171 = vmatpush1.bf16.xpose.msra.mxu0 0
        %2172 = vmatprep.subr.bf16.mxu0 0
        %2173 = vmatpush1.bf16.xpose.msra.mxu0 0
        %2174 = vmatprep.subr.bf16.mxu0 0
        %2175 = vmatpush1.bf16.xpose.msra.mxu0 0
        %2176 = vmatprep.subr.bf16.mxu0 0
        %2177 = vmatpush1.bf16.xpose.msra.mxu0 0
        %2178 = vmatprep.subr.bf16.mxu0 0
        %2179 = vmatpush1.bf16.xpose.msra.mxu0 0
        %2180 = vmatprep.subr.bf16.mxu0 0
        %2181 = vmatpush1.bf16.xpose.msra.mxu0 0
        %2182 = vmatprep.subr.bf16.mxu0 0
        %2183 = vmatpush1.bf16.xpose.msra.mxu0 0
        %2184 = vmatprep.subr.bf16.mxu0 0
        %2185 = vmatpush1.bf16.xpose.msra.mxu0 0
        %2186 = vmatprep.subr.bf16.mxu0 0
        %2187 = vmatpush1.bf16.xpose.msra.mxu0 0
        %2188 = vmatprep.mubr.bf16.mxu0 0
        %2189 = vmatmul.mubr.bf16.gmra.mrb[0].mxu0 %v2145
        %v2190 = vpop.f32.mrb[0].mxu0
        %v2191 = vadd.f32 0.0, %v2190
        %v2192 = vpop.f32.mrb[0].mxu0
        %v2193 = vpop.f32.mrb[0].mxu0
        %v2194 = vadd.f32 0.0, %v2193
        %v2195 = vpop.f32.mrb[0].mxu0
        %2196 = vmatprep.mubr.bf16.mxu0 0
        %2197 = vmatmul.mubr.bf16.gmra.mrb[0].mxu0 %v2148
        %v2198 = vpop.f32.mrb[0].mxu0
        %v2199 = vadd.f32 0.0, %v2198
        %v2200 = vpop.f32.mrb[0].mxu0
        %v2201 = vpop.f32.mrb[0].mxu0
        %v2202 = vpop.f32.mrb[0].mxu0
        %2203 = vdwg.mxu0
        %2204 = vrot.lane.b32.xlu0 %v2129, 96
        %v2205 = vpop.permute.xlu0 %2204
        %2206 = vrot.lane.b32.xlu0 %v2131, 96
        %v2207 = vpop.permute.xlu0 %2206
        %v2209 = vsel %vm933, %v2129, 0
        %v2212 = vsel %vm933, %v2131, 0
        %v2215 = vsel %vm933, %v2205, 0
        %v2218 = vsel %vm933, %v2207, 0
        %2220 = vmatprep.subr.bf16.mxu0 0
        %2221 = vmatpush1.bf16.xpose.msra.mxu0 %v2215
        %2222 = vmatprep.subr.bf16.mxu0 0
        %2223 = vmatpush1.bf16.xpose.msra.mxu0 %v2218
        %2224 = vmatprep.subr.bf16.mxu0 0
        %2225 = vmatpush1.bf16.xpose.msra.mxu0 0
        %2226 = vmatprep.subr.bf16.mxu0 0
        %2227 = vmatpush1.bf16.xpose.msra.mxu0 0
        %2228 = vmatprep.subr.bf16.mxu0 0
        %2229 = vmatpush1.bf16.xpose.msra.mxu0 0
        %2230 = vmatprep.subr.bf16.mxu0 0
        %2231 = vmatpush1.bf16.xpose.msra.mxu0 0
        %2232 = vmatprep.subr.bf16.mxu0 0
        %2233 = vmatpush1.bf16.xpose.msra.mxu0 0
        %2234 = vmatprep.subr.bf16.mxu0 0
        %2235 = vmatpush1.bf16.xpose.msra.mxu0 0
        %2236 = vmatprep.subr.bf16.mxu0 0
        %2237 = vmatpush1.bf16.xpose.msra.mxu0 0
        %2238 = vmatprep.subr.bf16.mxu0 0
        %2239 = vmatpush1.bf16.xpose.msra.mxu0 0
        %2240 = vmatprep.subr.bf16.mxu0 0
        %2241 = vmatpush1.bf16.xpose.msra.mxu0 0
        %2242 = vmatprep.subr.bf16.mxu0 0
        %2243 = vmatpush1.bf16.xpose.msra.mxu0 0
        %2244 = vmatprep.subr.bf16.mxu0 0
        %2245 = vmatpush1.bf16.xpose.msra.mxu0 0
        %2246 = vmatprep.subr.bf16.mxu0 0
        %2247 = vmatpush1.bf16.xpose.msra.mxu0 0
        %2248 = vmatprep.subr.bf16.mxu0 0
        %2249 = vmatpush1.bf16.xpose.msra.mxu0 0
        %2250 = vmatprep.subr.bf16.mxu0 0
        %2251 = vmatpush1.bf16.xpose.msra.mxu0 0
        %2252 = vmatprep.mubr.bf16.mxu0 0
        %2253 = vmatmul.mubr.bf16.gmra.mrb[0].mxu0 %v2209
        %v2254 = vpop.f32.mrb[0].mxu0
        %v2255 = vadd.f32 0.0, %v2254
        %v2256 = vpop.f32.mrb[0].mxu0
        %v2257 = vpop.f32.mrb[0].mxu0
        %v2258 = vadd.f32 0.0, %v2257
        %v2259 = vpop.f32.mrb[0].mxu0
        %2260 = vmatprep.mubr.bf16.mxu0 0
        %2261 = vmatmul.mubr.bf16.gmra.mrb[0].mxu0 %v2212
        %v2262 = vpop.f32.mrb[0].mxu0
        %v2263 = vadd.f32 0.0, %v2262
        %v2264 = vpop.f32.mrb[0].mxu0
        %v2265 = vpop.f32.mrb[0].mxu0
        %v2266 = vpop.f32.mrb[0].mxu0
        %2267 = vdwg.mxu0
        %2268 = vrot.lane.b32.xlu0 %v2133, 96
        %v2269 = vpop.permute.xlu0 %2268
        %2270 = vrot.lane.b32.xlu0 %v2135, 96
        %v2271 = vpop.permute.xlu0 %2270
        %v2273 = vsel %vm933, %v2133, 0
        %v2276 = vsel %vm933, %v2135, 0
        %v2279 = vsel %vm933, %v2269, 0
        %v2282 = vsel %vm933, %v2271, 0
        %2284 = vmatprep.subr.bf16.mxu0 0
        %2285 = vmatpush1.bf16.xpose.msra.mxu0 %v2279
        %2286 = vmatprep.subr.bf16.mxu0 0
        %2287 = vmatpush1.bf16.xpose.msra.mxu0 %v2282
        %2288 = vmatprep.subr.bf16.mxu0 0
        %2289 = vmatpush1.bf16.xpose.msra.mxu0 0
        %2290 = vmatprep.subr.bf16.mxu0 0
        %2291 = vmatpush1.bf16.xpose.msra.mxu0 0
        %2292 = vmatprep.subr.bf16.mxu0 0
        %2293 = vmatpush1.bf16.xpose.msra.mxu0 0
        %2294 = vmatprep.subr.bf16.mxu0 0
        %2295 = vmatpush1.bf16.xpose.msra.mxu0 0
        %2296 = vmatprep.subr.bf16.mxu0 0
        %2297 = vmatpush1.bf16.xpose.msra.mxu0 0
        %2298 = vmatprep.subr.bf16.mxu0 0
        %2299 = vmatpush1.bf16.xpose.msra.mxu0 0
        %2300 = vmatprep.subr.bf16.mxu0 0
        %2301 = vmatpush1.bf16.xpose.msra.mxu0 0
        %2302 = vmatprep.subr.bf16.mxu0 0
        %2303 = vmatpush1.bf16.xpose.msra.mxu0 0
        %2304 = vmatprep.subr.bf16.mxu0 0
        %2305 = vmatpush1.bf16.xpose.msra.mxu0 0
        %2306 = vmatprep.subr.bf16.mxu0 0
        %2307 = vmatpush1.bf16.xpose.msra.mxu0 0
        %2308 = vmatprep.subr.bf16.mxu0 0
        %2309 = vmatpush1.bf16.xpose.msra.mxu0 0
        %2310 = vmatprep.subr.bf16.mxu0 0
        %2311 = vmatpush1.bf16.xpose.msra.mxu0 0
        %2312 = vmatprep.subr.bf16.mxu0 0
        %2313 = vmatpush1.bf16.xpose.msra.mxu0 0
        %2314 = vmatprep.subr.bf16.mxu0 0
        %2315 = vmatpush1.bf16.xpose.msra.mxu0 0
        %2316 = vmatprep.mubr.bf16.mxu0 0
        %2317 = vmatmul.mubr.bf16.gmra.mrb[0].mxu0 %v2273
        %v2318 = vpop.f32.mrb[0].mxu0
        %v2319 = vadd.f32 0.0, %v2318
        %v2320 = vpop.f32.mrb[0].mxu0
        %v2321 = vpop.f32.mrb[0].mxu0
        %v2322 = vadd.f32 0.0, %v2321
        %v2323 = vpop.f32.mrb[0].mxu0
        %2324 = vmatprep.mubr.bf16.mxu0 0
        %2325 = vmatmul.mubr.bf16.gmra.mrb[0].mxu0 %v2276
        %v2326 = vpop.f32.mrb[0].mxu0
        %v2327 = vadd.f32 0.0, %v2326
        %v2328 = vpop.f32.mrb[0].mxu0
        %v2329 = vpop.f32.mrb[0].mxu0
        %v2330 = vpop.f32.mrb[0].mxu0
        %2331 = vdwg.mxu0
        %2332 = vrot.lane.b32.xlu0 %v2137, 96
        %v2333 = vpop.permute.xlu0 %2332
        %2334 = vrot.lane.b32.xlu0 %v2139, 96
        %v2335 = vpop.permute.xlu0 %2334
        %v2337 = vsel %vm933, %v2137, 0
        %v2340 = vsel %vm933, %v2139, 0
        %v2343 = vsel %vm933, %v2333, 0
        %v2346 = vsel %vm933, %v2335, 0
        %2348 = vmatprep.subr.bf16.mxu0 0
        %2349 = vmatpush1.bf16.xpose.msra.mxu0 %v2343
        %2350 = vmatprep.subr.bf16.mxu0 0
        %2351 = vmatpush1.bf16.xpose.msra.mxu0 %v2346
        %2352 = vmatprep.subr.bf16.mxu0 0
        %2353 = vmatpush1.bf16.xpose.msra.mxu0 0
        %2354 = vmatprep.subr.bf16.mxu0 0
        %2355 = vmatpush1.bf16.xpose.msra.mxu0 0
        %2356 = vmatprep.subr.bf16.mxu0 0
        %2357 = vmatpush1.bf16.xpose.msra.mxu0 0
        %2358 = vmatprep.subr.bf16.mxu0 0
        %2359 = vmatpush1.bf16.xpose.msra.mxu0 0
        %2360 = vmatprep.subr.bf16.mxu0 0
        %2361 = vmatpush1.bf16.xpose.msra.mxu0 0
        %2362 = vmatprep.subr.bf16.mxu0 0
        %2363 = vmatpush1.bf16.xpose.msra.mxu0 0
        %2364 = vmatprep.subr.bf16.mxu0 0
        %2365 = vmatpush1.bf16.xpose.msra.mxu0 0
        %2366 = vmatprep.subr.bf16.mxu0 0
        %2367 = vmatpush1.bf16.xpose.msra.mxu0 0
        %2368 = vmatprep.subr.bf16.mxu0 0
        %2369 = vmatpush1.bf16.xpose.msra.mxu0 0
        %2370 = vmatprep.subr.bf16.mxu0 0
        %2371 = vmatpush1.bf16.xpose.msra.mxu0 0
        %2372 = vmatprep.subr.bf16.mxu0 0
        %2373 = vmatpush1.bf16.xpose.msra.mxu0 0
        %2374 = vmatprep.subr.bf16.mxu0 0
        %2375 = vmatpush1.bf16.xpose.msra.mxu0 0
        %2376 = vmatprep.subr.bf16.mxu0 0
        %2377 = vmatpush1.bf16.xpose.msra.mxu0 0
        %2378 = vmatprep.subr.bf16.mxu0 0
        %2379 = vmatpush1.bf16.xpose.msra.mxu0 0
        %2380 = vmatprep.mubr.bf16.mxu0 0
        %2381 = vmatmul.mubr.bf16.gmra.mrb[0].mxu0 %v2337
        %v2382 = vpop.f32.mrb[0].mxu0
        %v2383 = vadd.f32 0.0, %v2382
        %v2384 = vpop.f32.mrb[0].mxu0
        %v2385 = vpop.f32.mrb[0].mxu0
        %v2386 = vadd.f32 0.0, %v2385
        %v2387 = vpop.f32.mrb[0].mxu0
        %2388 = vmatprep.mubr.bf16.mxu0 0
        %2389 = vmatmul.mubr.bf16.gmra.mrb[0].mxu0 %v2340
        %v2390 = vpop.f32.mrb[0].mxu0
        %v2391 = vadd.f32 0.0, %v2390
        %v2392 = vpop.f32.mrb[0].mxu0
        %v2393 = vpop.f32.mrb[0].mxu0
        %v2394 = vpop.f32.mrb[0].mxu0
        %2395 = vdwg.mxu0
        %v2396 = vmul.f32 %v2191, 0.35355338
        %v2397 = vmul.f32 %v2194, 0.35355338
        %v2398 = vmul.f32 %v2199, 0.35355338
        %v2399 = vmul.f32 %v2255, 0.35355338
        %v2400 = vmul.f32 %v2258, 0.35355338
        %v2401 = vmul.f32 %v2263, 0.35355338
        %v2402 = vmul.f32 %v2319, 0.35355338
        %v2403 = vmul.f32 %v2322, 0.35355338
        %v2404 = vmul.f32 %v2327, 0.35355338
        %v2405 = vmul.f32 %v2383, 0.35355338
        %v2406 = vmul.f32 %v2386, 0.35355338
        %v2407 = vmul.f32 %v2391, 0.35355338
        %v2408 = vsel %vm1198, %v2396, -inf
        %2409 = vmax.xlane.f32.xlu0 %v2408
        %v2410 = vpop.xlane.xlu0 %2409
        %v2411 = vsel %vm1198, %v2397, -inf
        %2412 = vmax.xlane.f32.xlu0 %v2411
        %v2413 = vpop.xlane.xlu0 %2412
        %v2414 = vsel %vm1205, %v2398, -inf
        %2415 = vmax.xlane.f32.xlu0 %v2414
        %v2416 = vpop.xlane.xlu0 %2415
        %v2417 = vsel %vm1198, %v2399, -inf
        %2418 = vmax.xlane.f32.xlu0 %v2417
        %v2419 = vpop.xlane.xlu0 %2418
        %v2420 = vsel %vm1198, %v2400, -inf
        %2421 = vmax.xlane.f32.xlu0 %v2420
        %v2422 = vpop.xlane.xlu0 %2421
        %v2423 = vsel %vm1205, %v2401, -inf
        %2424 = vmax.xlane.f32.xlu0 %v2423
        %v2425 = vpop.xlane.xlu0 %2424
        %v2426 = vsel %vm1198, %v2402, -inf
        %2427 = vmax.xlane.f32.xlu0 %v2426
        %v2428 = vpop.xlane.xlu0 %2427
        %v2429 = vsel %vm1198, %v2403, -inf
        %2430 = vmax.xlane.f32.xlu0 %v2429
        %v2431 = vpop.xlane.xlu0 %2430
        %v2432 = vsel %vm1205, %v2404, -inf
        %2433 = vmax.xlane.f32.xlu0 %v2432
        %v2434 = vpop.xlane.xlu0 %2433
        %v2435 = vsel %vm1198, %v2405, -inf
        %2436 = vmax.xlane.f32.xlu0 %v2435
        %v2437 = vpop.xlane.xlu0 %2436
        %v2438 = vsel %vm1198, %v2406, -inf
        %2439 = vmax.xlane.f32.xlu0 %v2438
        %v2440 = vpop.xlane.xlu0 %2439
        %v2441 = vsel %vm1205, %v2407, -inf
        %2442 = vmax.xlane.f32.xlu0 %v2441
        %v2443 = vpop.xlane.xlu0 %2442
        %v2444 = vsub.f32 %v2396, %v2410
        %v2445 = vsub.f32 %v2397, %v2413
        %v2446 = vsub.f32 %v2398, %v2416
        %v2447 = vsub.f32 %v2399, %v2419
        %v2448 = vsub.f32 %v2400, %v2422
        %v2449 = vsub.f32 %v2401, %v2425
        %v2450 = vsub.f32 %v2402, %v2428
        %v2451 = vsub.f32 %v2403, %v2431
        %v2452 = vsub.f32 %v2404, %v2434
        %v2453 = vsub.f32 %v2405, %v2437
        %v2454 = vsub.f32 %v2406, %v2440
        %v2455 = vsub.f32 %v2407, %v2443
        %v2456 = vmul.f32 %v2444, 1.442695
        %v2457 = vpow.pop %v2456
        %v2458 = vmul.f32 %v2445, 1.442695
        %v2459 = vpow.pop %v2458
        %v2460 = vmul.f32 %v2446, 1.442695
        %v2461 = vpow.pop %v2460
        %v2462 = vmul.f32 %v2447, 1.442695
        %v2463 = vpow.pop %v2462
        %v2464 = vmul.f32 %v2448, 1.442695
        %v2465 = vpow.pop %v2464
        %v2466 = vmul.f32 %v2449, 1.442695
        %v2467 = vpow.pop %v2466
        %v2468 = vmul.f32 %v2450, 1.442695
        %v2469 = vpow.pop %v2468
        %v2470 = vmul.f32 %v2451, 1.442695
        %v2471 = vpow.pop %v2470
        %v2472 = vmul.f32 %v2452, 1.442695
        %v2473 = vpow.pop %v2472
        %v2474 = vmul.f32 %v2453, 1.442695
        %v2475 = vpow.pop %v2474
        %v2476 = vmul.f32 %v2454, 1.442695
        %v2477 = vpow.pop %v2476
        %v2478 = vmul.f32 %v2455, 1.442695
        %v2479 = vpow.pop %v2478
        %v2480 = vsel %vm1198, %v2457, 0.0
        %2481 = vadd.xlane.f32.xlu0 %v2480
        %v2482 = vpop.xlane.xlu0 %2481
        %v2483 = vsel %vm1198, %v2459, 0.0
        %2484 = vadd.xlane.f32.xlu0 %v2483
        %v2485 = vpop.xlane.xlu0 %2484
        %v2486 = vsel %vm1205, %v2461, 0.0
        %2487 = vadd.xlane.f32.xlu0 %v2486
        %v2488 = vpop.xlane.xlu0 %2487
        %v2489 = vsel %vm1198, %v2463, 0.0
        %2490 = vadd.xlane.f32.xlu0 %v2489
        %v2491 = vpop.xlane.xlu0 %2490
        %v2492 = vsel %vm1198, %v2465, 0.0
        %2493 = vadd.xlane.f32.xlu0 %v2492
        %v2494 = vpop.xlane.xlu0 %2493
        %v2495 = vsel %vm1205, %v2467, 0.0
        %2496 = vadd.xlane.f32.xlu0 %v2495
        %v2497 = vpop.xlane.xlu0 %2496
        %v2498 = vsel %vm1198, %v2469, 0.0
        %2499 = vadd.xlane.f32.xlu0 %v2498
        %v2500 = vpop.xlane.xlu0 %2499
        %v2501 = vsel %vm1198, %v2471, 0.0
        %2502 = vadd.xlane.f32.xlu0 %v2501
        %v2503 = vpop.xlane.xlu0 %2502
        %v2504 = vsel %vm1205, %v2473, 0.0
        %2505 = vadd.xlane.f32.xlu0 %v2504
        %v2506 = vpop.xlane.xlu0 %2505
        %v2507 = vsel %vm1198, %v2475, 0.0
        %2508 = vadd.xlane.f32.xlu0 %v2507
        %v2509 = vpop.xlane.xlu0 %2508
        %v2510 = vsel %vm1198, %v2477, 0.0
        %2511 = vadd.xlane.f32.xlu0 %v2510
        %v2512 = vpop.xlane.xlu0 %2511
        %v2513 = vsel %vm1205, %v2479, 0.0
        %2514 = vadd.xlane.f32.xlu0 %v2513
        %v2515 = vpop.xlane.xlu0 %2514
        %v2516 = vrcp.pop %v2482
        %v2517 = vrcp.pop %v2485
        %v2518 = vrcp.pop %v2488
        %v2519 = vrcp.pop %v2491
        %v2520 = vrcp.pop %v2494
        %v2521 = vrcp.pop %v2497
        %v2522 = vrcp.pop %v2500
        %v2523 = vrcp.pop %v2503
        %v2524 = vrcp.pop %v2506
        %v2525 = vrcp.pop %v2509
        %v2526 = vrcp.pop %v2512
        %v2527 = vrcp.pop %v2515
        %v2528 = vmul.f32 %v2457, %v2516
        %v2529 = vmul.f32 %v2459, %v2517
        %v2530 = vmul.f32 %v2461, %v2518
        %v2531 = vmul.f32 %v2463, %v2519
        %v2532 = vmul.f32 %v2465, %v2520
        %v2533 = vmul.f32 %v2467, %v2521
        %v2534 = vmul.f32 %v2469, %v2522
        %v2535 = vmul.f32 %v2471, %v2523
        %v2536 = vmul.f32 %v2473, %v2524
        %v2537 = vmul.f32 %v2475, %v2525
        %v2538 = vmul.f32 %v2477, %v2526
        %v2539 = vmul.f32 %v2479, %v2527
        %v2540 = vpack.c.bf16 %v2529, %v2528
        %v2541 = vpack.c.bf16 %v2530, %v2530
        %v2542 = vpack.c.bf16 %v2532, %v2531
        %v2543 = vpack.c.bf16 %v2533, %v2533
        %v2544 = vpack.c.bf16 %v2535, %v2534
        %v2545 = vpack.c.bf16 %v2536, %v2536
        %v2546 = vpack.c.bf16 %v2538, %v2537
        %v2547 = vpack.c.bf16 %v2539, %v2539
        %2548 = vrot.lane.b32.xlu0 %v2124, 64
        %v2549 = vpop.permute.xlu0 %2548
        %2550 = vrot.lane.b32.xlu0 %v2125, 64
        %v2551 = vpop.permute.xlu0 %2550
        %v2554 = vsel %vm1198, %v2540, 0
        %v2557 = vsel %vm1198, %v2541, 0
        %v2560 = vand.u32 %v2551, %v1352
        %2562 = vmatprep.subr.bf16.mxu0 0
        %2563 = vmatpush1.bf16.msra.mxu0 %v2549
        %2564 = vmatprep.subr.bf16.mxu0 0
        %2565 = vmatpush1.bf16.msra.mxu0 %v2560
        %2566 = vmatprep.subr.bf16.mxu0 0
        %2567 = vmatpush1.bf16.msra.mxu0 0
        %2568 = vmatprep.subr.bf16.mxu0 0
        %2569 = vmatpush1.bf16.msra.mxu0 0
        %2570 = vmatprep.subr.bf16.mxu0 0
        %2571 = vmatpush1.bf16.msra.mxu0 0
        %2572 = vmatprep.subr.bf16.mxu0 0
        %2573 = vmatpush1.bf16.msra.mxu0 0
        %2574 = vmatprep.subr.bf16.mxu0 0
        %2575 = vmatpush1.bf16.msra.mxu0 0
        %2576 = vmatprep.subr.bf16.mxu0 0
        %2577 = vmatpush1.bf16.msra.mxu0 0
        %2578 = vmatprep.subr.bf16.mxu0 0
        %2579 = vmatpush1.bf16.msra.mxu0 0
        %2580 = vmatprep.subr.bf16.mxu0 0
        %2581 = vmatpush1.bf16.msra.mxu0 0
        %2582 = vmatprep.subr.bf16.mxu0 0
        %2583 = vmatpush1.bf16.msra.mxu0 0
        %2584 = vmatprep.subr.bf16.mxu0 0
        %2585 = vmatpush1.bf16.msra.mxu0 0
        %2586 = vmatprep.subr.bf16.mxu0 0
        %2587 = vmatpush1.bf16.msra.mxu0 0
        %2588 = vmatprep.subr.bf16.mxu0 0
        %2589 = vmatpush1.bf16.msra.mxu0 0
        %2590 = vmatprep.subr.bf16.mxu0 0
        %2591 = vmatpush1.bf16.msra.mxu0 0
        %2592 = vmatprep.subr.bf16.mxu0 0
        %2593 = vmatpush1.bf16.msra.mxu0 0
        %2594 = vmatprep.mubr.bf16.mxu0 0
        %2595 = vmatmul.mubr.bf16.gmra.mrb[0].mxu0 %v2554
        %v2596 = vpop.f32.mrb[0].mxu0
        %v2597 = vadd.f32 0.0, %v2596
        %v2598 = vpop.f32.mrb[0].mxu0
        %v2599 = vpop.f32.mrb[0].mxu0
        %v2600 = vadd.f32 0.0, %v2599
        %v2601 = vpop.f32.mrb[0].mxu0
        %2602 = vmatprep.mubr.bf16.mxu0 0
        %2603 = vmatmul.mubr.bf16.gmra.mrb[0].mxu0 %v2557
        %v2604 = vpop.f32.mrb[0].mxu0
        %v2605 = vadd.f32 0.0, %v2604
        %v2606 = vpop.f32.mrb[0].mxu0
        %v2607 = vpop.f32.mrb[0].mxu0
        %v2608 = vpop.f32.mrb[0].mxu0
        %2609 = vdwg.mxu0
        %2610 = vrot.lane.b32.xlu0 %v2129, 64
        %v2611 = vpop.permute.xlu0 %2610
        %2612 = vrot.lane.b32.xlu0 %v2131, 64
        %v2613 = vpop.permute.xlu0 %2612
        %v2616 = vsel %vm1198, %v2542, 0
        %v2619 = vsel %vm1198, %v2543, 0
        %v2622 = vand.u32 %v2613, %v1352
        %2624 = vmatprep.subr.bf16.mxu0 0
        %2625 = vmatpush1.bf16.msra.mxu0 %v2611
        %2626 = vmatprep.subr.bf16.mxu0 0
        %2627 = vmatpush1.bf16.msra.mxu0 %v2622
        %2628 = vmatprep.subr.bf16.mxu0 0
        %2629 = vmatpush1.bf16.msra.mxu0 0
        %2630 = vmatprep.subr.bf16.mxu0 0
        %2631 = vmatpush1.bf16.msra.mxu0 0
        %2632 = vmatprep.subr.bf16.mxu0 0
        %2633 = vmatpush1.bf16.msra.mxu0 0
        %2634 = vmatprep.subr.bf16.mxu0 0
        %2635 = vmatpush1.bf16.msra.mxu0 0
        %2636 = vmatprep.subr.bf16.mxu0 0
        %2637 = vmatpush1.bf16.msra.mxu0 0
        %2638 = vmatprep.subr.bf16.mxu0 0
        %2639 = vmatpush1.bf16.msra.mxu0 0
        %2640 = vmatprep.subr.bf16.mxu0 0
        %2641 = vmatpush1.bf16.msra.mxu0 0
        %2642 = vmatprep.subr.bf16.mxu0 0
        %2643 = vmatpush1.bf16.msra.mxu0 0
        %2644 = vmatprep.subr.bf16.mxu0 0
        %2645 = vmatpush1.bf16.msra.mxu0 0
        %2646 = vmatprep.subr.bf16.mxu0 0
        %2647 = vmatpush1.bf16.msra.mxu0 0
        %2648 = vmatprep.subr.bf16.mxu0 0
        %2649 = vmatpush1.bf16.msra.mxu0 0
        %2650 = vmatprep.subr.bf16.mxu0 0
        %2651 = vmatpush1.bf16.msra.mxu0 0
        %2652 = vmatprep.subr.bf16.mxu0 0
        %2653 = vmatpush1.bf16.msra.mxu0 0
        %2654 = vmatprep.subr.bf16.mxu0 0
        %2655 = vmatpush1.bf16.msra.mxu0 0
        %2656 = vmatprep.mubr.bf16.mxu0 0
        %2657 = vmatmul.mubr.bf16.gmra.mrb[0].mxu0 %v2616
        %v2658 = vpop.f32.mrb[0].mxu0
        %v2659 = vadd.f32 0.0, %v2658
        %v2660 = vpop.f32.mrb[0].mxu0
        %v2661 = vpop.f32.mrb[0].mxu0
        %v2662 = vadd.f32 0.0, %v2661
        %v2663 = vpop.f32.mrb[0].mxu0
        %2664 = vmatprep.mubr.bf16.mxu0 0
        %2665 = vmatmul.mubr.bf16.gmra.mrb[0].mxu0 %v2619
        %v2666 = vpop.f32.mrb[0].mxu0
        %v2667 = vadd.f32 0.0, %v2666
        %v2668 = vpop.f32.mrb[0].mxu0
        %v2669 = vpop.f32.mrb[0].mxu0
        %v2670 = vpop.f32.mrb[0].mxu0
        %2671 = vdwg.mxu0
        %2672 = vrot.lane.b32.xlu0 %v2133, 64
        %v2673 = vpop.permute.xlu0 %2672
        %2674 = vrot.lane.b32.xlu0 %v2135, 64
        %v2675 = vpop.permute.xlu0 %2674
        %v2678 = vsel %vm1198, %v2544, 0
        %v2681 = vsel %vm1198, %v2545, 0
        %v2684 = vand.u32 %v2675, %v1352
        %2686 = vmatprep.subr.bf16.mxu0 0
        %2687 = vmatpush1.bf16.msra.mxu0 %v2673
        %2688 = vmatprep.subr.bf16.mxu0 0
        %2689 = vmatpush1.bf16.msra.mxu0 %v2684
        %2690 = vmatprep.subr.bf16.mxu0 0
        %2691 = vmatpush1.bf16.msra.mxu0 0
        %2692 = vmatprep.subr.bf16.mxu0 0
        %2693 = vmatpush1.bf16.msra.mxu0 0
        %2694 = vmatprep.subr.bf16.mxu0 0
        %2695 = vmatpush1.bf16.msra.mxu0 0
        %2696 = vmatprep.subr.bf16.mxu0 0
        %2697 = vmatpush1.bf16.msra.mxu0 0
        %2698 = vmatprep.subr.bf16.mxu0 0
        %2699 = vmatpush1.bf16.msra.mxu0 0
        %2700 = vmatprep.subr.bf16.mxu0 0
        %2701 = vmatpush1.bf16.msra.mxu0 0
        %2702 = vmatprep.subr.bf16.mxu0 0
        %2703 = vmatpush1.bf16.msra.mxu0 0
        %2704 = vmatprep.subr.bf16.mxu0 0
        %2705 = vmatpush1.bf16.msra.mxu0 0
        %2706 = vmatprep.subr.bf16.mxu0 0
        %2707 = vmatpush1.bf16.msra.mxu0 0
        %2708 = vmatprep.subr.bf16.mxu0 0
        %2709 = vmatpush1.bf16.msra.mxu0 0
        %2710 = vmatprep.subr.bf16.mxu0 0
        %2711 = vmatpush1.bf16.msra.mxu0 0
        %2712 = vmatprep.subr.bf16.mxu0 0
        %2713 = vmatpush1.bf16.msra.mxu0 0
        %2714 = vmatprep.subr.bf16.mxu0 0
        %2715 = vmatpush1.bf16.msra.mxu0 0
        %2716 = vmatprep.subr.bf16.mxu0 0
        %2717 = vmatpush1.bf16.msra.mxu0 0
        %2718 = vmatprep.mubr.bf16.mxu0 0
        %2719 = vmatmul.mubr.bf16.gmra.mrb[0].mxu0 %v2678
        %v2720 = vpop.f32.mrb[0].mxu0
        %v2721 = vadd.f32 0.0, %v2720
        %v2722 = vpop.f32.mrb[0].mxu0
        %v2723 = vpop.f32.mrb[0].mxu0
        %v2724 = vadd.f32 0.0, %v2723
        %v2725 = vpop.f32.mrb[0].mxu0
        %2726 = vmatprep.mubr.bf16.mxu0 0
        %2727 = vmatmul.mubr.bf16.gmra.mrb[0].mxu0 %v2681
        %v2728 = vpop.f32.mrb[0].mxu0
        %v2729 = vadd.f32 0.0, %v2728
        %v2730 = vpop.f32.mrb[0].mxu0
        %v2731 = vpop.f32.mrb[0].mxu0
        %v2732 = vpop.f32.mrb[0].mxu0
        %2733 = vdwg.mxu0
        %2734 = vrot.lane.b32.xlu0 %v2137, 64
        %v2735 = vpop.permute.xlu0 %2734
        %2736 = vrot.lane.b32.xlu0 %v2139, 64
        %v2737 = vpop.permute.xlu0 %2736
        %v2740 = vsel %vm1198, %v2546, 0
        %v2743 = vsel %vm1198, %v2547, 0
        %v2746 = vand.u32 %v2737, %v1352
        %2748 = vmatprep.subr.bf16.mxu0 0
        %2749 = vmatpush1.bf16.msra.mxu0 %v2735
        %2750 = vmatprep.subr.bf16.mxu0 0
        %2751 = vmatpush1.bf16.msra.mxu0 %v2746
        %2752 = vmatprep.subr.bf16.mxu0 0
        %2753 = vmatpush1.bf16.msra.mxu0 0
        %2754 = vmatprep.subr.bf16.mxu0 0
        %2755 = vmatpush1.bf16.msra.mxu0 0
        %2756 = vmatprep.subr.bf16.mxu0 0
        %2757 = vmatpush1.bf16.msra.mxu0 0
        %2758 = vmatprep.subr.bf16.mxu0 0
        %2759 = vmatpush1.bf16.msra.mxu0 0
        %2760 = vmatprep.subr.bf16.mxu0 0
        %2761 = vmatpush1.bf16.msra.mxu0 0
        %2762 = vmatprep.subr.bf16.mxu0 0
        %2763 = vmatpush1.bf16.msra.mxu0 0
        %2764 = vmatprep.subr.bf16.mxu0 0
        %2765 = vmatpush1.bf16.msra.mxu0 0
        %2766 = vmatprep.subr.bf16.mxu0 0
        %2767 = vmatpush1.bf16.msra.mxu0 0
        %2768 = vmatprep.subr.bf16.mxu0 0
        %2769 = vmatpush1.bf16.msra.mxu0 0
        %2770 = vmatprep.subr.bf16.mxu0 0
        %2771 = vmatpush1.bf16.msra.mxu0 0
        %2772 = vmatprep.subr.bf16.mxu0 0
        %2773 = vmatpush1.bf16.msra.mxu0 0
        %2774 = vmatprep.subr.bf16.mxu0 0
        %2775 = vmatpush1.bf16.msra.mxu0 0
        %2776 = vmatprep.subr.bf16.mxu0 0
        %2777 = vmatpush1.bf16.msra.mxu0 0
        %2778 = vmatprep.subr.bf16.mxu0 0
        %2779 = vmatpush1.bf16.msra.mxu0 0
        %2780 = vmatprep.mubr.bf16.mxu0 0
        %2781 = vmatmul.mubr.bf16.gmra.mrb[0].mxu0 %v2740
        %v2782 = vpop.f32.mrb[0].mxu0
        %v2783 = vadd.f32 0.0, %v2782
        %v2784 = vpop.f32.mrb[0].mxu0
        %v2785 = vpop.f32.mrb[0].mxu0
        %v2786 = vadd.f32 0.0, %v2785
        %v2787 = vpop.f32.mrb[0].mxu0
        %2788 = vmatprep.mubr.bf16.mxu0 0
        %2789 = vmatmul.mubr.bf16.gmra.mrb[0].mxu0 %v2743
        %v2790 = vpop.f32.mrb[0].mxu0
        %v2791 = vadd.f32 0.0, %v2790
        %v2792 = vpop.f32.mrb[0].mxu0
        %v2793 = vpop.f32.mrb[0].mxu0
        %v2794 = vpop.f32.mrb[0].mxu0
        %2795 = vdwg.mxu0
        %2799 = vrot.lane.b32.xlu0 %v2659, 8
        %v2800 = vpop.permute.xlu0 %2799
        %2801 = vrot.lane.b32.xlu0 %v2662, 8
        %v2802 = vpop.permute.xlu0 %2801
        %2803 = vrot.lane.b32.xlu0 %v2667, 8
        %v2804 = vpop.permute.xlu0 %2803
        %2811 = vrot.lane.b32.xlu0 %v2721, 16
        %v2812 = vpop.permute.xlu0 %2811
        %2813 = vrot.lane.b32.xlu0 %v2724, 16
        %v2814 = vpop.permute.xlu0 %2813
        %2815 = vrot.lane.b32.xlu0 %v2729, 16
        %v2816 = vpop.permute.xlu0 %2815
        %2823 = vrot.lane.b32.xlu0 %v2783, 24
        %v2824 = vpop.permute.xlu0 %2823
        %2825 = vrot.lane.b32.xlu0 %v2786, 24
        %v2826 = vpop.permute.xlu0 %2825
        %2827 = vrot.lane.b32.xlu0 %v2791, 24
        %v2828 = vpop.permute.xlu0 %2827
        %v2832 = vsel %vm933, %v2597, %v2800
        %v2833 = vsel %vm933, %v2600, %v2802
        %v2834 = vsel %vm933, %v2605, %v2804
        %v2835 = vsel %vm1629, %v2832, %v2812
        %v2836 = vsel %vm1629, %v2833, %v2814
        %v2837 = vsel %vm1629, %v2834, %v2816
        %v2838 = vsel %vm1633, %v2835, %v2824
        %v2839 = vsel %vm1633, %v2836, %v2826
        %v2840 = vsel %vm1633, %v2837, %v2828
        %s2841 = scalar_lea.vmem %s9, 16
        %v2842 = vld [vmem:[%s2841] sm:$0xf]
        %v2843 = vld [vmem:[%s2841 + $0x4] sm:$0xf]
        %v2844 = vld [vmem:[%s2841 + $0x8] sm:$0xf]
        %v2845 = vld [vmem:[%s2841 + $0xc] sm:$0xf]
        %v2846 = vpack.c.bf16 %v2839, %v2838
        %v2847 = vpack.c.bf16 %v2840, %v2840
        %s2848 = scalar_lea.vmem %s10, 1
        %v2849 = vld [vmem:[%s2848] sm:$0x1]
        %v2851 = vlaneseq
        %v2852 = vshrl.u32 %v2851, 7
        %v2853 = vsub.s32 0, %v2852
        %v2854 = vrot.slane %v2849, %v2853
        %v2860 = vunpack.c.l.b16 %v2842
        %v2861 = vunpack.c.l.b16 %v2843
        %v2862 = vunpack.c.l.b16 %v2844
        %v2863 = vunpack.c.l.b16 %v2845
        %v2864 = vpack.c.b16 %v2861, %v2860
        %v2865 = vpack.c.b16 %v2863, %v2862
        %v2869 = vsel %vm774, %v2846, 0
        %v2872 = vsel %vm774, %v2847, 0
        %2874 = vmatprep.subr.bf16.mxu0 0
        %2875 = vmatpush1.bf16.msra.mxu0 %v2864
        %2876 = vmatprep.subr.bf16.mxu0 0
        %2877 = vmatpush1.bf16.msra.mxu0 %v2865
        %2878 = vmatprep.subr.bf16.mxu0 0
        %2879 = vmatpush1.bf16.msra.mxu0 0
        %2880 = vmatprep.subr.bf16.mxu0 0
        %2881 = vmatpush1.bf16.msra.mxu0 0
        %2882 = vmatprep.subr.bf16.mxu0 0
        %2883 = vmatpush1.bf16.msra.mxu0 0
        %2884 = vmatprep.subr.bf16.mxu0 0
        %2885 = vmatpush1.bf16.msra.mxu0 0
        %2886 = vmatprep.subr.bf16.mxu0 0
        %2887 = vmatpush1.bf16.msra.mxu0 0
        %2888 = vmatprep.subr.bf16.mxu0 0
        %2889 = vmatpush1.bf16.msra.mxu0 0
        %2890 = vmatprep.subr.bf16.mxu0 0
        %2891 = vmatpush1.bf16.msra.mxu0 0
        %2892 = vmatprep.subr.bf16.mxu0 0
        %2893 = vmatpush1.bf16.msra.mxu0 0
        %2894 = vmatprep.subr.bf16.mxu0 0
        %2895 = vmatpush1.bf16.msra.mxu0 0
        %2896 = vmatprep.subr.bf16.mxu0 0
        %2897 = vmatpush1.bf16.msra.mxu0 0
        %2898 = vmatprep.subr.bf16.mxu0 0
        %2899 = vmatpush1.bf16.msra.mxu0 0
        %2900 = vmatprep.subr.bf16.mxu0 0
        %2901 = vmatpush1.bf16.msra.mxu0 0
        %2902 = vmatprep.subr.bf16.mxu0 0
        %2903 = vmatpush1.bf16.msra.mxu0 0
        %2904 = vmatprep.subr.bf16.mxu0 0
        %2905 = vmatpush1.bf16.msra.mxu0 0
        %2906 = vmatprep.mubr.bf16.mxu0 0
        %2907 = vmatmul.mubr.bf16.gmra.mrb[0].mxu0 %v2869
        %v2908 = vpop.f32.mrb[0].mxu0
        %v2909 = vadd.f32 %v2854, %v2908
        %v2910 = vpop.f32.mrb[0].mxu0
        %v2911 = vpop.f32.mrb[0].mxu0
        %v2912 = vadd.f32 %v2854, %v2911
        %v2913 = vpop.f32.mrb[0].mxu0
        %2914 = vmatprep.mubr.bf16.mxu0 0
        %2915 = vmatmul.mubr.bf16.gmra.mrb[0].mxu0 %v2872
        %v2916 = vpop.f32.mrb[0].mxu0
        %v2917 = vadd.f32 %v2854, %v2916
        %v2918 = vpop.f32.mrb[0].mxu0
        %v2919 = vpop.f32.mrb[0].mxu0
        %v2920 = vpop.f32.mrb[0].mxu0
        %2921 = vdwg.mxu0
        %v2922 = vadd.f32 %v1979, %v2909
        %v2923 = vadd.f32 %v1980, %v2912
        %v2924 = vadd.f32 %v1981, %v2917
        %s2925 = scalar_lea.vmem %s11, 1
        %v2926 = vld [vmem:[%s2925] sm:$0x1]
        %s2927 = scalar_lea.vmem %s12, 1
        %v2928 = vld [vmem:[%s2927] sm:$0x1]
        %v2929 = vsel %vm774, %v2922, 0.0
        %2930 = vadd.xlane.f32.xlu0 %v2929
        %v2931 = vpop.xlane.xlu0 %2930
        %v2932 = vsel %vm774, %v2923, 0.0
        %2933 = vadd.xlane.f32.xlu0 %v2932
        %v2934 = vpop.xlane.xlu0 %2933
        %v2935 = vsel %vm781, %v2924, 0.0
        %2936 = vadd.xlane.f32.xlu0 %v2935
        %v2937 = vpop.xlane.xlu0 %2936
        %v2938 = vmul.f32 %v2931, %v785
        %v2939 = vmul.f32 %v2934, %v785
        %v2940 = vmul.f32 %v2937, %v785
        %v2941 = vsub.f32 %v2922, %v2938
        %v2942 = vsub.f32 %v2923, %v2939
        %v2943 = vsub.f32 %v2924, %v2940
        %v2944 = vmul.f32 %v2941, %v2941
        %v2945 = vmul.f32 %v2942, %v2942
        %v2946 = vmul.f32 %v2943, %v2943
        %v2947 = vsel %vm774, %v2944, 0.0
        %2948 = vadd.xlane.f32.xlu0 %v2947
        %v2949 = vpop.xlane.xlu0 %2948
        %v2950 = vsel %vm774, %v2945, 0.0
        %2951 = vadd.xlane.f32.xlu0 %v2950
        %v2952 = vpop.xlane.xlu0 %2951
        %v2953 = vsel %vm781, %v2946, 0.0
        %2954 = vadd.xlane.f32.xlu0 %v2953
        %v2955 = vpop.xlane.xlu0 %2954
        %v2956 = vmul.f32 %v2949, %v785
        %v2957 = vmul.f32 %v2952, %v785
        %v2958 = vmul.f32 %v2955, %v785
        %v2959 = vadd.f32 %v2956, 1e-05
        %v2960 = vadd.f32 %v2957, 1e-05
        %v2961 = vadd.f32 %v2958, 1e-05
        %v2962 = vrsqrt.pop %v2959
        %v2963 = vrsqrt.pop %v2960
        %v2964 = vrsqrt.pop %v2961
        %v2965 = vmul.f32 %v2941, %v2962
        %v2966 = vmul.f32 %v2942, %v2963
        %v2967 = vmul.f32 %v2943, %v2964
        %v2969 = vlaneseq
        %v2970 = vshrl.u32 %v2969, 7
        %v2971 = vsub.s32 0, %v2970
        %v2972 = vrot.slane %v2926, %v2971
        %v2974 = vmul.f32 %v2965, %v2972
        %v2975 = vmul.f32 %v2966, %v2972
        %v2976 = vmul.f32 %v2967, %v2972
        %v2978 = vlaneseq
        %v2979 = vshrl.u32 %v2978, 7
        %v2980 = vsub.s32 0, %v2979
        %v2981 = vrot.slane %v2928, %v2980
        %v2983 = vadd.f32 %v2974, %v2981
        %v2984 = vadd.f32 %v2975, %v2981
        %v2985 = vadd.f32 %v2976, %v2981
        %s2986 = scalar_lea.vmem %s13, 16
        %v2987 = vld [vmem:[%s2986] sm:$0xf]
        %v2988 = vld [vmem:[%s2986 + $0x4] sm:$0xf]
        %v2989 = vld [vmem:[%s2986 + $0x8] sm:$0xf]
        %v2990 = vld [vmem:[%s2986 + $0xc] sm:$0xf]
        %v2991 = vpack.c.bf16 %v2984, %v2983
        %v2992 = vpack.c.bf16 %v2985, %v2985
        %s2993 = scalar_lea.vmem %s14, 1
        %v2994 = vld [vmem:[%s2993] sm:$0x1]
        %v2996 = vlaneseq
        %v2997 = vshrl.u32 %v2996, 7
        %v2998 = vsub.s32 0, %v2997
        %v2999 = vrot.slane %v2994, %v2998
        %v3005 = vunpack.c.l.b16 %v2987
        %v3006 = vunpack.c.l.b16 %v2988
        %v3007 = vunpack.c.l.b16 %v2989
        %v3008 = vunpack.c.l.b16 %v2990
        %v3009 = vpack.c.b16 %v3006, %v3005
        %v3010 = vpack.c.b16 %v3008, %v3007
        %v3014 = vsel %vm774, %v2991, 0
        %v3017 = vsel %vm774, %v2992, 0
        %3019 = vmatprep.subr.bf16.mxu0 0
        %3020 = vmatpush1.bf16.msra.mxu0 %v3009
        %3021 = vmatprep.subr.bf16.mxu0 0
        %3022 = vmatpush1.bf16.msra.mxu0 %v3010
        %3023 = vmatprep.subr.bf16.mxu0 0
        %3024 = vmatpush1.bf16.msra.mxu0 0
        %3025 = vmatprep.subr.bf16.mxu0 0
        %3026 = vmatpush1.bf16.msra.mxu0 0
        %3027 = vmatprep.subr.bf16.mxu0 0
        %3028 = vmatpush1.bf16.msra.mxu0 0
        %3029 = vmatprep.subr.bf16.mxu0 0
        %3030 = vmatpush1.bf16.msra.mxu0 0
        %3031 = vmatprep.subr.bf16.mxu0 0
        %3032 = vmatpush1.bf16.msra.mxu0 0
        %3033 = vmatprep.subr.bf16.mxu0 0
        %3034 = vmatpush1.bf16.msra.mxu0 0
        %3035 = vmatprep.subr.bf16.mxu0 0
        %3036 = vmatpush1.bf16.msra.mxu0 0
        %3037 = vmatprep.subr.bf16.mxu0 0
        %3038 = vmatpush1.bf16.msra.mxu0 0
        %3039 = vmatprep.subr.bf16.mxu0 0
        %3040 = vmatpush1.bf16.msra.mxu0 0
        %3041 = vmatprep.subr.bf16.mxu0 0
        %3042 = vmatpush1.bf16.msra.mxu0 0
        %3043 = vmatprep.subr.bf16.mxu0 0
        %3044 = vmatpush1.bf16.msra.mxu0 0
        %3045 = vmatprep.subr.bf16.mxu0 0
        %3046 = vmatpush1.bf16.msra.mxu0 0
        %3047 = vmatprep.subr.bf16.mxu0 0
        %3048 = vmatpush1.bf16.msra.mxu0 0
        %3049 = vmatprep.subr.bf16.mxu0 0
        %3050 = vmatpush1.bf16.msra.mxu0 0
        %3051 = vmatprep.mubr.bf16.mxu0 0
        %3052 = vmatmul.mubr.bf16.gmra.mrb[0].mxu0 %v3014
        %v3053 = vpop.f32.mrb[0].mxu0
        %v3054 = vadd.f32 %v2999, %v3053
        %v3055 = vpop.f32.mrb[0].mxu0
        %v3056 = vpop.f32.mrb[0].mxu0
        %v3057 = vadd.f32 %v2999, %v3056
        %v3058 = vpop.f32.mrb[0].mxu0
        %3059 = vmatprep.mubr.bf16.mxu0 0
        %3060 = vmatmul.mubr.bf16.gmra.mrb[0].mxu0 %v3017
        %v3061 = vpop.f32.mrb[0].mxu0
        %v3062 = vadd.f32 %v2999, %v3061
        %v3063 = vpop.f32.mrb[0].mxu0
        %v3064 = vpop.f32.mrb[0].mxu0
        %v3065 = vpop.f32.mrb[0].mxu0
        %3066 = vdwg.mxu0
        %v3067 = vmul.f32 %v3054, 0.5
        %v3068 = vmul.f32 %v3057, 0.5
        %v3069 = vmul.f32 %v3062, 0.5
        %v3070 = vmul.f32 %v3054, 0.044715
        %v3071 = vmul.f32 %v3057, 0.044715
        %v3072 = vmul.f32 %v3062, 0.044715
        %v3073 = vmul.f32 %v3070, %v3054
        %v3074 = vmul.f32 %v3071, %v3057
        %v3075 = vmul.f32 %v3072, %v3062
        %v3076 = vmul.f32 %v3073, %v3054
        %v3077 = vmul.f32 %v3074, %v3057
        %v3078 = vmul.f32 %v3075, %v3062
        %v3079 = vadd.f32 %v3054, %v3076
        %v3080 = vadd.f32 %v3057, %v3077
        %v3081 = vadd.f32 %v3062, %v3078
        %v3082 = vmul.f32 %v3079, 0.7978846
        %v3083 = vmul.f32 %v3080, 0.7978846
        %v3084 = vmul.f32 %v3081, 0.7978846
        %v3085 = vtanh.pop %v3082
        %v3086 = vtanh.pop %v3083
        %v3087 = vtanh.pop %v3084
        %v3088 = vadd.f32 %v3085, 1.0
        %v3089 = vadd.f32 %v3086, 1.0
        %v3090 = vadd.f32 %v3087, 1.0
        %v3091 = vmul.f32 %v3067, %v3088
        %v3092 = vmul.f32 %v3068, %v3089
        %v3093 = vmul.f32 %v3069, %v3090
        %s3094 = scalar_lea.vmem %s15, 32
        %v3095 = vld [vmem:[%s3094] sm:$0xf]
        %v3096 = vld [vmem:[%s3094 + $0x4] sm:$0xf]
        %v3097 = vld [vmem:[%s3094 + $0x8] sm:$0xf]
        %v3098 = vld [vmem:[%s3094 + $0xc] sm:$0xf]
        %v3099 = vld [vmem:[%s3094 + $0x10] sm:$0xf]
        %v3100 = vld [vmem:[%s3094 + $0x14] sm:$0xf]
        %v3101 = vld [vmem:[%s3094 + $0x18] sm:$0xf]
        %v3102 = vld [vmem:[%s3094 + $0x1c] sm:$0xf]
        %v3103 = vpack.c.bf16 %v3092, %v3091
        %v3104 = vpack.c.bf16 %v3093, %v3093
        %s3105 = scalar_lea.vmem %s16, 1
        %v3106 = vld [vmem:[%s3105] sm:$0x1]
        %v3108 = vlaneseq
        %v3109 = vshrl.u32 %v3108, 7
        %v3110 = vsub.s32 0, %v3109
        %v3111 = vrot.slane %v3106, %v3110
        %v3121 = vunpack.c.l.b16 %v3095
        %v3122 = vunpack.c.l.b16 %v3096
        %v3123 = vunpack.c.l.b16 %v3097
        %v3124 = vunpack.c.l.b16 %v3098
        %v3125 = vunpack.c.l.b16 %v3099
        %v3126 = vunpack.c.l.b16 %v3100
        %v3127 = vunpack.c.l.b16 %v3101
        %v3128 = vunpack.c.l.b16 %v3102
        %v3129 = vpack.c.b16 %v3122, %v3121
        %v3130 = vpack.c.b16 %v3124, %v3123
        %v3131 = vpack.c.b16 %v3126, %v3125
        %v3132 = vpack.c.b16 %v3128, %v3127
        %v3138 = vsel %vm712, %v3103, 0
        %v3141 = vsel %vm712, %v3104, 0
        %3143 = vmatprep.subr.bf16.mxu0 0
        %3144 = vmatpush1.bf16.msra.mxu0 %v3129
        %3145 = vmatprep.subr.bf16.mxu0 0
        %3146 = vmatpush1.bf16.msra.mxu0 %v3130
        %3147 = vmatprep.subr.bf16.mxu0 0
        %3148 = vmatpush1.bf16.msra.mxu0 %v3131
        %3149 = vmatprep.subr.bf16.mxu0 0
        %3150 = vmatpush1.bf16.msra.mxu0 %v3132
        %3151 = vmatprep.subr.bf16.mxu0 0
        %3152 = vmatpush1.bf16.msra.mxu0 0
        %3153 = vmatprep.subr.bf16.mxu0 0
        %3154 = vmatpush1.bf16.msra.mxu0 0
        %3155 = vmatprep.subr.bf16.mxu0 0
        %3156 = vmatpush1.bf16.msra.mxu0 0
        %3157 = vmatprep.subr.bf16.mxu0 0
        %3158 = vmatpush1.bf16.msra.mxu0 0
        %3159 = vmatprep.subr.bf16.mxu0 0
        %3160 = vmatpush1.bf16.msra.mxu0 0
        %3161 = vmatprep.subr.bf16.mxu0 0
        %3162 = vmatpush1.bf16.msra.mxu0 0
        %3163 = vmatprep.subr.bf16.mxu0 0
        %3164 = vmatpush1.bf16.msra.mxu0 0
        %3165 = vmatprep.subr.bf16.mxu0 0
        %3166 = vmatpush1.bf16.msra.mxu0 0
        %3167 = vmatprep.subr.bf16.mxu0 0
        %3168 = vmatpush1.bf16.msra.mxu0 0
        %3169 = vmatprep.subr.bf16.mxu0 0
        %3170 = vmatpush1.bf16.msra.mxu0 0
        %3171 = vmatprep.subr.bf16.mxu0 0
        %3172 = vmatpush1.bf16.msra.mxu0 0
        %3173 = vmatprep.subr.bf16.mxu0 0
        %3174 = vmatpush1.bf16.msra.mxu0 0
        %3175 = vmatprep.mubr.bf16.mxu0 0
        %3176 = vmatmul.mubr.bf16.gmra.mrb[0].mxu0 %v3138
        %v3177 = vpop.f32.mrb[0].mxu0
        %v3178 = vadd.f32 %v3111, %v3177
        %v3179 = vpop.f32.mrb[0].mxu0
        %v3180 = vpop.f32.mrb[0].mxu0
        %v3181 = vpop.f32.mrb[0].mxu0
        %3182 = vmatprep.mubr.bf16.mxu0 0
        %3183 = vmatmul.mubr.bf16.gmra.mrb[0].mxu0 %v3141
        %v3184 = vpop.f32.mrb[0].mxu0
        %v3185 = vpop.f32.mrb[0].mxu0
        %v3186 = vpop.f32.mrb[0].mxu0
        %v3187 = vpop.f32.mrb[0].mxu0
        %3188 = vdwg.mxu0
        %v3189 = vadd.f32 %v2922, %v3178
        %v3190 = vld [vmem:[%s17] sm:$0xf]
        %v3191 = vld [vmem:[%s17 + $0x4] sm:$0xf]
        %v3192 = vld [vmem:[%s17 + $0x8] sm:$0xf]
        %v3193 = vld [vmem:[%s17 + $0xc] sm:$0xf]
        %v3194 = vpack.c.bf16 %v3189, %v3189
        %v3195 = vld [vmem:[%s18] sm:$0x1]
        %v3200 = vunpack.c.l.b16 %v3190
        %v3201 = vunpack.c.l.b16 %v3191
        %v3202 = vunpack.c.l.b16 %v3192
        %v3203 = vunpack.c.l.b16 %v3193
        %v3204 = vpack.c.b16 %v3201, %v3200
        %v3205 = vpack.c.b16 %v3203, %v3202
        %v3209 = vsel %vm774, %v3194, 0
        %3211 = vmatprep.subr.bf16.mxu0 0
        %3212 = vmatpush1.bf16.msra.mxu0 %v3204
        %3213 = vmatprep.subr.bf16.mxu0 0
        %3214 = vmatpush1.bf16.msra.mxu0 %v3205
        %3215 = vmatprep.subr.bf16.mxu0 0
        %3216 = vmatpush1.bf16.msra.mxu0 0
        %3217 = vmatprep.subr.bf16.mxu0 0
        %3218 = vmatpush1.bf16.msra.mxu0 0
        %3219 = vmatprep.subr.bf16.mxu0 0
        %3220 = vmatpush1.bf16.msra.mxu0 0
        %3221 = vmatprep.subr.bf16.mxu0 0
        %3222 = vmatpush1.bf16.msra.mxu0 0
        %3223 = vmatprep.subr.bf16.mxu0 0
        %3224 = vmatpush1.bf16.msra.mxu0 0
        %3225 = vmatprep.subr.bf16.mxu0 0
        %3226 = vmatpush1.bf16.msra.mxu0 0
        %3227 = vmatprep.subr.bf16.mxu0 0
        %3228 = vmatpush1.bf16.msra.mxu0 0
        %3229 = vmatprep.subr.bf16.mxu0 0
        %3230 = vmatpush1.bf16.msra.mxu0 0
        %3231 = vmatprep.subr.bf16.mxu0 0
        %3232 = vmatpush1.bf16.msra.mxu0 0
        %3233 = vmatprep.subr.bf16.mxu0 0
        %3234 = vmatpush1.bf16.msra.mxu0 0
        %3235 = vmatprep.subr.bf16.mxu0 0
        %3236 = vmatpush1.bf16.msra.mxu0 0
        %3237 = vmatprep.subr.bf16.mxu0 0
        %3238 = vmatpush1.bf16.msra.mxu0 0
        %3239 = vmatprep.subr.bf16.mxu0 0
        %3240 = vmatpush1.bf16.msra.mxu0 0
        %3241 = vmatprep.subr.bf16.mxu0 0
        %3242 = vmatpush1.bf16.msra.mxu0 0
        %3243 = vmatprep.mubr.bf16.mxu0 0
        %3244 = vmatmul.mubr.bf16.gmra.mrb[0].mxu0 %v3209
        %v3245 = vpop.f32.mrb[0].mxu0
        %v3246 = vadd.f32 %v3195, %v3245
        %v3247 = vpop.f32.mrb[0].mxu0
        %v3248 = vpop.f32.mrb[0].mxu0
        %v3249 = vpop.f32.mrb[0].mxu0
        %3250 = vdwg.mxu0
        %3251 = vst [vmem:[%s663] sm:$0x1] %v3246
        %s3252 = sand.u32 %s448, 1
        %s3253 = scalar_lea.sflag [#allocation4], %s3252
        %s3254 = sand.u32 %s448, 1
        %s3255 = scalar_lea.vmem [#allocation11], %s3254
        // Predicated region
        $region117: #{tpu_custom_call.1} parent=95 // pred_check
          %p3256 = pneg %p458
        $region118: #{tpu_custom_call.1} parent=95 // pred_check_branch
          %3258 = sbr.rel (%p3256) target = $region120
        $region119: #{tpu_custom_call.1} parent=95 // pred_region
          %s3260 = ssub.s32 16, 16
          %3261 = vsyncadd %s3253, %s3260
          %s3262 = smul.addr %s36, 16
          %s3263 = scalar_lea.hbm %s19, %s3262
          %s3265 = sshll.u32 %s3255, 4
          %s3266 = int_to_ptr.vmem [resolvable:$true] %s3265
          %3268 = dma.vmem_to_hbm [thread:$0]  %s3266, 16, %s3263, %s3253
        $region120: #{tpu_custom_call.1} parent=95 // pred_fallthru
          _
      $region96: #{tpu_custom_call.1} parent=5 // pred_fallthru
        _
      %p3269 = scmp.le.s32.totalorder 2, %s31
      // Predicated region
      $region121: #{tpu_custom_call.1} parent=5 // pred_check
        %p3270 = pneg %p3269
      $region122: #{tpu_custom_call.1} parent=5 // pred_check_branch
        %3272 = sbr.rel (%p3270) target = $region124
      $region123: #{tpu_custom_call.1} parent=5 // pred_region
        %s3273 = ssub.s32 %s31, 2
        // Predicated region
        $region125: #{tpu_custom_call.1} parent=123 // pred_check
          %p3274 = pneg %p464
        $region126: #{tpu_custom_call.1} parent=123 // pred_check_branch
          %3276 = sbr.rel (%p3274) target = $region128
        $region127: #{tpu_custom_call.1} parent=123 // pred_region
          %s3277 = sand.u32 %s449, 1
          %s3278 = scalar_lea.sflag [#allocation4], %s3277
          %s3279 = sand.u32 %s449, 1
          %s3280 = scalar_lea.vmem [#allocation11], %s3279
          %3281 = dma.done %s3278, 16
        $region128: #{tpu_custom_call.1} parent=123 // pred_fallthru
          _
      $region124: #{tpu_custom_call.1} parent=5 // pred_fallthru
        _
    $region6: #{tpu_custom_call.1} parent=1 // loop_footer
      %s35 = sadd.s32 1, %s31
    $region7: #{tpu_custom_call.1} parent=1 // loop_footer_branch
      %30 = sbr.rel target = $region3
    $region8: #{tpu_custom_call.1} parent=1 // loop_exit
      _
    %3282 = vsyncpa [#allocation3], 1
    %s3283 = scalar_lea.sflag [#allocation3], 1
    %3284 = vsyncpa %s3283, 1
    %3285 = vsyncpa [#allocation6], 1
    %3286 = vsyncpa [#allocation9], 1
    %3287 = vsyncpa [#allocation4], 1
    %s3288 = scalar_lea.sflag [#allocation4], 1
    %3289 = vsyncpa %s3288, 1

</llo_original>
